<compile_context>
chip_gen: v7x
topology: tpu7x:2x2x1
jax: 0.10.0
libtpu: 0.0.40
codegen_flags: <defaults>
</compile_context>

<pallas_src>
import functools

import numpy as np
import jax
import jax.numpy as jnp
from jax import lax
from jax.experimental import pallas as pl
from jax.experimental.pallas import tpu as pltpu

# Hyper-parameters mirroring BiLSTM_CRF.__init__ (vocab is synthetic since
# `len(dist)` is data dependent).
EMBED_DIM = 50            # self.embedding_dim
EP = 128                  # per-direction embedding rows padded to one K block
HIDDEN_DIM = 100          # self.hidden_dim
H = HIDDEN_DIM // 2       # per-direction hidden size = 50
HBLK = 128                # BOTH directions packed into one 128-lane block
BWD_OFF = 64              # bwd direction occupies lanes [64, 64+H)
NGATE = 4 * HBLK          # gate blocks [i, f, o, g] -> 512 lanes
TAGS = 5                  # self.tagset_size
FEAT_PAD = 128            # lane-dense feats / bp outputs
VOCAB = 20                # synthetic vocab size
NEG = -10000.0            # torch's "impossible" score
PAD_NEG = -1e30           # padding score (reset each step, cannot win a max)

# torch LSTM gate order in weights is (i, f, g, o); our lane-block order is
# [i, f, o, g] so sigmoid covers lanes [0, 384) and tanh covers [384, 512).
_GATE_BLOCK = {0: 0, 1: 1, 3: 2, 2: 3}


def bilstm_crf_kernel(emb_ref, win_ref, bin_ref, whh_ref, h0_ref, c0_ref,
                      wout_ref, bout_ref, trans_ref, transt_ref,
                      feats_ref, bp_ref, last_ref,
                      gates_ref, hcat_ref, *, seq_len):
    f32 = jnp.float32
    L = seq_len

    # ---- (1) ONE batched MXU projection for BOTH directions.  emb rows are
    # already [emb[t] | emb[L-1-t]], w_in is block-diagonal, so row t of the
    # result is [fwd gates of token t | bwd gates of token L-1-t] per gate block.
    gates_ref[...] = (jnp.dot(emb_ref[...], win_ref[...],
                              preferred_element_type=f32) + bin_ref[...])

    whh = whh_ref[...]                                # (128, 512)
    h = h0_ref[...]                                   # (1, 128) [fwd | bwd] packed
    c = c0_ref[...]

    def sigmoid(x):
        return 1.0 / (1.0 + jnp.exp(-x))

    # ---- (2) fully-unrolled interleaved bidirectional recurrence, h/c in vregs.
    # TODO(synk): weight-stationary MXU (matmul_push_rhs/acc_lhs/pop) and a
    # partially-unrolled fori_loop path would be needed for long sequences.
    for t in range(L):
        rb = L - 1 - t
        g_in = gates_ref[t:t + 1, :]                  # (1, 512) static row load
        gates = g_in + jnp.dot(h, whh, preferred_element_type=f32)
        sig = sigmoid(gates[:, :3 * HBLK])
        i_g = sig[:, 0:HBLK]
        f_g = sig[:, HBLK:2 * HBLK]
        o_g = sig[:, 2 * HBLK:3 * HBLK]
        g_g = jnp.tanh(gates[:, 3 * HBLK:])
        c = f_g * c + i_g * g_g
        h = o_g * jnp.tanh(c)
        # fwd half belongs to output row t, bwd half to output row L-1-t.
        # Junk lanes are killed by zero rows of wout, so full-block stores are ok.
        hcat_ref[t:t + 1, 0:HBLK] = h
        hcat_ref[rb:rb + 1, HBLK:2 * HBLK] = h

    # ---- (3) hidden2tag, lane-dense (L, 128) output (cols >= TAGS are exactly 0).
    feats_full = (jnp.dot(hcat_ref[...], wout_ref[...],
                          preferred_element_type=f32) + bout_ref[...])
    feats_ref[...] = feats_full

    # Column-oriented emissions via ONE MXU "transpose": featT[i, t] = feats[t, i].
    row_id8 = lax.broadcasted_iota(jnp.int32, (8, FEAT_PAD), 0)
    col_id8 = lax.broadcasted_iota(jnp.int32, (8, FEAT_PAD), 1)
    sel8 = (row_id8 == col_id8).astype(f32)           # (8, 128) one-hot rows
    featT = lax.dot_general(sel8, feats_full, (((1,), (1,)), ((), ())),
                            preferred_element_type=f32)        # (8, L)

    # ---- (4) CRF Viterbi DP: dual-orientation carry in vregs, fully unrolled,
    # no transposes on the serial chain.
    trans_p = trans_ref[...]                          # (8,128) trans[i,j]=score j->i
    trans_t = transt_ref[...]                         # (8,128) trans.T
    subid = row_id8.astype(f32)
    lane_row = col_id8[0:1, :]                        # (1,128) int lane index
    sub_col = row_id8[:, 0:1]                         # (8,1) int sublane index
    laneid_f = lane_row.astype(f32)

    fvrow = jnp.where(lane_row == 3, 0.0,
                      jnp.where(lane_row < TAGS, NEG, PAD_NEG)).astype(f32)
    fvcol = jnp.where(sub_col == 3, 0.0,
                      jnp.where(sub_col < TAGS, NEG, PAD_NEG)).astype(f32)

    for t in range(L):
        # prev tag j on sublanes -> max/argmax come out directly as rows.
        s_row = trans_t + fvcol                       # (8,128): [j, i]
        max_row = jnp.max(s_row, axis=0, keepdims=True)           # (1,128)
        bp_row = jnp.min(jnp.where(s_row == max_row, subid, 8.0),
                         axis=0, keepdims=True)       # first argmax (torch-style)
        bp_ref[t:t + 1, :] = bp_row.astype(jnp.int32)

        # prev tag j on lanes -> max comes out directly as a column.
        s_col = trans_p + fvrow                       # (8,128): [i, j]
        max_col = jnp.max(s_col, axis=1, keepdims=True)            # (8,1)

        fvrow = max_row + feats_full[t:t + 1, :]
        fvcol = max_col + featT[:, t:t + 1]

    terminal = fvrow + trans_p[4:5, :]                # transition to STOP (tag 4)
    tmax = jnp.max(terminal, axis=1, keepdims=True)
    best = jnp.min(jnp.where(terminal == tmax, laneid_f, float(FEAT_PAD)),
                   axis=1, keepdims=True)             # (1, 1)
    last_ref[...] = best.astype(jnp.int32)


# ---------------- parameter setup & packing (plain-JAX glue) ----------------
def init_params(key):
    ks = jax.random.split(key, 8)
    p = {}
    p["embed"] = 0.1 * jax.random.normal(ks[0], (VOCAB, EMBED_DIM), jnp.float32)

    def lstm_dir(k):
        k1, k2, k3, k4 = jax.random.split(k, 4)
        w_ih = 0.1 * jax.random.normal(k1, (4 * H, EMBED_DIM), jnp.float32)
        w_hh = 0.1 * jax.random.normal(k2, (4 * H, H), jnp.float32)
        b_ih = 0.1 * jax.random.normal(k3, (4 * H,), jnp.float32)
        b_hh = 0.1 * jax.random.normal(k4, (4 * H,), jnp.float32)
        return w_ih, w_hh, b_ih, b_hh

    p["lstm_f"] = lstm_dir(ks[1])
    p["lstm_b"] = lstm_dir(ks[2])
    p["w_out"] = 0.1 * jax.random.normal(ks[3], (TAGS, HIDDEN_DIM), jnp.float32)
    p["b_out"] = 0.1 * jax.random.normal(ks[4], (TAGS,), jnp.float32)
    trans = jax.random.normal(ks[5], (TAGS, TAGS), jnp.float32)
    trans = trans.at[3, :].set(NEG)   # nothing may transition TO start (tag 3)
    trans = trans.at[:, 4].set(NEG)   # nothing may transition FROM stop (tag 4)
    p["transitions"] = trans
    # torch's init_hidden() redraws randn per forward; fixed deterministically here.
    p["h0"] = jax.random.normal(ks[6], (2, 1, H), jnp.float32)
    p["c0"] = jax.random.normal(ks[7], (2, 1, H), jnp.float32)
    return p


def _pack_lstm(params):
    """Pack both directions into one 128-lane hidden block / 512 gate lanes."""
    w_in = jnp.zeros((2 * EP, NGATE), jnp.float32)
    w_hh = jnp.zeros((HBLK, NGATE), jnp.float32)
    b_in = jnp.zeros((1, NGATE), jnp.float32)
    for d, name in enumerate(("lstm_f", "lstm_b")):
        wih, whh, bih, bhh = params[name]
        bias = bih + bhh
        lane_off = BWD_OFF * d
        row_off = EP * d
        for tg in range(4):                       # torch gate order i, f, g, o
            c0 = _GATE_BLOCK[tg] * HBLK + lane_off
            w_in = w_in.at[row_off:row_off + EMBED_DIM, c0:c0 + H].set(
                wih[tg * H:(tg + 1) * H, :].T)
            w_hh = w_hh.at[lane_off:lane_off + H, c0:c0 + H].set(
                whh[tg * H:(tg + 1) * H, :].T)
            b_in = b_in.at[0, c0:c0 + H].set(bias[tg * H:(tg + 1) * H])
    return w_in, w_hh, b_in


def _pack_state(v):  # (2, 1, H) -> (1, 128): fwd lanes [0,H), bwd lanes [64,64+H)
    out = jnp.zeros((1, HBLK), jnp.float32)
    out = out.at[0, :H].set(v[0, 0])
    out = out.at[0, BWD_OFF:BWD_OFF + H].set(v[1, 0])
    return out


def _pad_trans(m):
    out = jnp.full((8, FEAT_PAD), PAD_NEG, jnp.float32)
    return out.at[:TAGS, :TAGS].set(m)


def bilstm_crf_forward(sentence, params):
    L = int(sentence.shape[0])

    emb = params["embed"][sentence]               # (L, E) embedding gather (glue)
    emb_rev = emb[::-1]
    emb_cat = jnp.zeros((L, 2 * EP), jnp.float32)
    emb_cat = emb_cat.at[:, :EMBED_DIM].set(emb)
    emb_cat = emb_cat.at[:, EP:EP + EMBED_DIM].set(emb_rev)

    w_in, w_hh, b_in = _pack_lstm(params)
    h0 = _pack_state(params["h0"])
    c0 = _pack_state(params["c0"])

    w_out = params["w_out"]                       # (T, 2H)
    wout_p = jnp.zeros((2 * HBLK, FEAT_PAD), jnp.float32)
    wout_p = wout_p.at[:H, :TAGS].set(w_out[:, :H].T)
    wout_p = wout_p.at[HBLK + BWD_OFF:HBLK + BWD_OFF + H, :TAGS].set(w_out[:, H:].T)
    bout_p = jnp.zeros((1, FEAT_PAD), jnp.float32).at[0, :TAGS].set(params["b_out"])

    trans = params["transitions"]
    trans_p = _pad_trans(trans)
    trans_t_p = _pad_trans(trans.T)

    kernel = functools.partial(bilstm_crf_kernel, seq_len=L)
    feats_pad, bp_pad, last = pl.pallas_call(
        kernel,
        out_shape=(
            jax.ShapeDtypeStruct((L, FEAT_PAD), jnp.float32),  # lstm_feats (padded)
            jax.ShapeDtypeStruct((L, FEAT_PAD), jnp.int32),    # backpointers (padded)
            jax.ShapeDtypeStruct((1, 1), jnp.int32),           # best last tag
        ),
        in_specs=[pl.BlockSpec(memory_space=pltpu.MemorySpace.VMEM)] * 10,
        out_specs=(
            pl.BlockSpec(memory_space=pltpu.MemorySpace.VMEM),
            pl.BlockSpec(memory_space=pltpu.MemorySpace.VMEM),
            pl.BlockSpec(memory_space=pltpu.MemorySpace.VMEM),
        ),
        scratch_shapes=[
            pltpu.VMEM((L, NGATE), jnp.float32),      # batched pre-arranged gates
            pltpu.VMEM((L, 2 * HBLK), jnp.float32),   # lstm hidden rows [fwd | bwd]
        ],
    )(emb_cat, w_in, b_in, w_hh, h0, c0, wout_p, bout_p, trans_p, trans_t_p)
    # TODO(synk): for batched sentences add a leading 'parallel' grid axis so
    # v7x's second TensorCore is used.
    return feats_pad[:, :TAGS], bp_pad[:, :TAGS], last


def viterbi_backtrack(bp, last, seq_len):
    # TODO(synk): data-dependent backpointer walk (tiny, scalar) stays in host glue.
    bp = jax.device_get(bp)
    cur = int(jax.device_get(last)[0, 0])
    path = [cur]
    for t in range(seq_len - 1, -1, -1):
        cur = int(bp[t, cur])
        path.append(cur)
    start = path.pop()
    assert start == 3
    path.reverse()
    return path


def _reference_feats(sentence, params):
    """Plain numpy BiLSTM + hidden2tag, used only as a sanity check."""
    emb = np.asarray(params["embed"])[np.asarray(sentence)]

    def run_dir(weights, h0, c0, xs):
        wih, whh, bih, bhh = (np.asarray(w) for w in weights)
        h, c = np.asarray(h0), np.asarray(c0)
        out = []
        for x in xs:
            g = wih @ x + bih + whh @ h + bhh
            i, f, gg, o = np.split(g, 4)
            i = 1.0 / (1.0 + np.exp(-i))
            f = 1.0 / (1.0 + np.exp(-f))
            o = 1.0 / (1.0 + np.exp(-o))
            gg = np.tanh(gg)
            c = f * c + i * gg
            h = o * np.tanh(c)
            out.append(h)
        return out

    h0 = np.asarray(params["h0"])
    c0 = np.asarray(params["c0"])
    f_out = run_dir(params["lstm_f"], h0[0, 0], c0[0, 0], list(emb))
    b_out = run_dir(params["lstm_b"], h0[1, 0], c0[1, 0], list(emb[::-1]))[::-1]
    hcat = np.stack([np.concatenate([f, b]) for f, b in zip(f_out, b_out)])
    return hcat @ np.asarray(params["w_out"]).T + np.asarray(params["b_out"])


if __name__ == "__main__":
    L = 8
    key = jax.random.PRNGKey(0)
    pkey, skey = jax.random.split(key)
    params = init_params(pkey)
    sentence = jax.random.randint(skey, (L,), 0, VOCAB, dtype=jnp.int32)

    feats, bp, last = jax.block_until_ready(bilstm_crf_forward(sentence, params))
    tag_seq = viterbi_backtrack(bp, last, L)

    assert feats.shape == (L, TAGS)
    assert len(tag_seq) == L
    assert all(0 <= t < TAGS for t in tag_seq)
    ref = _reference_feats(sentence, params)
    err = float(np.max(np.abs(np.asarray(feats) - ref)))
    assert err < 5e-2, f"lstm_feats mismatch vs reference: max abs err {err}"
    print("KERNEL_OK")
</pallas_src>

<mosaic_0001>
module attributes {stable_mosaic.version = 11 : i64} {
  func.func @bilstm_crf_kernel(%arg0: memref<8x256xf32, #tpu.memory_space<vmem>>, %arg1: memref<256x512xf32, #tpu.memory_space<vmem>>, %arg2: memref<1x512xf32, #tpu.memory_space<vmem>>, %arg3: memref<128x512xf32, #tpu.memory_space<vmem>>, %arg4: memref<1x128xf32, #tpu.memory_space<vmem>>, %arg5: memref<1x128xf32, #tpu.memory_space<vmem>>, %arg6: memref<256x128xf32, #tpu.memory_space<vmem>>, %arg7: memref<1x128xf32, #tpu.memory_space<vmem>>, %arg8: memref<8x128xf32, #tpu.memory_space<vmem>>, %arg9: memref<8x128xf32, #tpu.memory_space<vmem>>, %arg10: memref<8x128xf32, #tpu.memory_space<vmem>>, %arg11: memref<8x128xi32, #tpu.memory_space<vmem>>, %arg12: memref<1x1xi32, #tpu.memory_space<vmem>>, %arg13: memref<8x512xf32, #tpu.memory_space<vmem>>, %arg14: memref<8x256xf32, #tpu.memory_space<vmem>>) attributes {dimension_semantics = [], scalar_prefetch = 0 : i64, scratch_operands = 2 : i64, tpu.core_type = #tpu.core_type<tc>} {
    %c0 = arith.constant 0 : index
    %c0_0 = arith.constant 0 : index
    %0 = vector.load %arg0[%c0, %c0_0] : memref<8x256xf32, #tpu.memory_space<vmem>>, vector<8x256xf32>
    %c0_1 = arith.constant 0 : index
    %c0_2 = arith.constant 0 : index
    %1 = vector.load %arg1[%c0_1, %c0_2] : memref<256x512xf32, #tpu.memory_space<vmem>>, vector<256x512xf32>
    %cst = arith.constant dense<0.000000e+00> : vector<8x512xf32>
    %2 = tpu.matmul %0, %1, %cst {dimension_numbers = #tpu.dot_dimension_numbers<[1], [0], [0], [1], [0, 0, 1, 1], [], []>} : vector<8x256xf32>, vector<256x512xf32>, vector<8x512xf32> -> vector<8x512xf32>
    %c0_3 = arith.constant 0 : index
    %c0_4 = arith.constant 0 : index
    %3 = vector.load %arg2[%c0_3, %c0_4] : memref<1x512xf32, #tpu.memory_space<vmem>>, vector<1x512xf32>
    %4 = vector.broadcast %3 : vector<1x512xf32> to vector<8x512xf32>
    %5 = arith.addf %2, %4 : vector<8x512xf32>
    %c0_5 = arith.constant 0 : index
    %c0_6 = arith.constant 0 : index
    %6 = vector.load %arg13[%c0_5, %c0_6] : memref<8x512xf32, #tpu.memory_space<vmem>>, vector<8x512xf32>
    tpu.vector_store %arg13[%c0_5, %c0_6], %5 {strides = array<i32>} : memref<8x512xf32, #tpu.memory_space<vmem>>, vector<8x512xf32>,
    %c0_7 = arith.constant 0 : index
    %c0_8 = arith.constant 0 : index
    %7 = vector.load %arg3[%c0_7, %c0_8] : memref<128x512xf32, #tpu.memory_space<vmem>>, vector<128x512xf32>
    %c0_9 = arith.constant 0 : index
    %c0_10 = arith.constant 0 : index
    %8 = vector.load %arg4[%c0_9, %c0_10] : memref<1x128xf32, #tpu.memory_space<vmem>>, vector<1x128xf32>
    %c0_11 = arith.constant 0 : index
    %c0_12 = arith.constant 0 : index
    %9 = vector.load %arg5[%c0_11, %c0_12] : memref<1x128xf32, #tpu.memory_space<vmem>>, vector<1x128xf32>
    %c0_13 = arith.constant 0 : index
    %c0_14 = arith.constant 0 : index
    %10 = vector.load %arg13[%c0_13, %c0_14] : memref<8x512xf32, #tpu.memory_space<vmem>>, vector<1x512xf32>
    %cst_15 = arith.constant dense<0.000000e+00> : vector<1x512xf32>
    %11 = tpu.matmul %8, %7, %cst_15 {dimension_numbers = #tpu.dot_dimension_numbers<[1], [0], [0], [1], [0, 0, 1, 1], [], []>} : vector<1x128xf32>, vector<128x512xf32>, vector<1x512xf32> -> vector<1x512xf32>
    %12 = arith.addf %10, %11 : vector<1x512xf32>
    %13 = vector.extract_strided_slice %12 {offsets = [0, 0], sizes = [1, 384], strides = [1, 1]} : vector<1x512xf32> to vector<1x384xf32>
    %cst_16 = arith.constant 0.000000e+00 : f32
    %14 = vector.broadcast %cst_16 : f32 to vector<1x384xf32>
    %15 = arith.subf %14, %13 : vector<1x384xf32>
    %16 = math.exp %15 : vector<1x384xf32>
    %cst_17 = arith.constant 1.000000e+00 : f32
    %17 = vector.broadcast %cst_17 : f32 to vector<1x384xf32>
    %18 = arith.addf %17, %16 : vector<1x384xf32>
    %cst_18 = arith.constant 1.000000e+00 : f32
    %19 = vector.broadcast %cst_18 : f32 to vector<1x384xf32>
    %20 = arith.divf %19, %18 : vector<1x384xf32>
    %21 = vector.extract_strided_slice %20 {offsets = [0, 0], sizes = [1, 128], strides = [1, 1]} : vector<1x384xf32> to vector<1x128xf32>
    %22 = vector.extract_strided_slice %20 {offsets = [0, 128], sizes = [1, 128], strides = [1, 1]} : vector<1x384xf32> to vector<1x128xf32>
    %23 = vector.extract_strided_slice %20 {offsets = [0, 256], sizes = [1, 128], strides = [1, 1]} : vector<1x384xf32> to vector<1x128xf32>
    %24 = vector.extract_strided_slice %12 {offsets = [0, 384], sizes = [1, 128], strides = [1, 1]} : vector<1x512xf32> to vector<1x128xf32>
    %25 = math.tanh %24 : vector<1x128xf32>
    %26 = arith.mulf %22, %9 : vector<1x128xf32>
    %27 = arith.mulf %21, %25 : vector<1x128xf32>
    %28 = arith.addf %26, %27 : vector<1x128xf32>
    %29 = math.tanh %28 : vector<1x128xf32>
    %30 = arith.mulf %23, %29 : vector<1x128xf32>
    %c0_19 = arith.constant 0 : index
    %c0_20 = arith.constant 0 : index
    %31 = vector.load %arg14[%c0_19, %c0_20] : memref<8x256xf32, #tpu.memory_space<vmem>>, vector<1x128xf32>
    tpu.vector_store %arg14[%c0_19, %c0_20], %30 {strides = array<i32>} : memref<8x256xf32, #tpu.memory_space<vmem>>, vector<1x128xf32>,
    %c7 = arith.constant 7 : index
    %c128 = arith.constant 128 : index
    %32 = vector.load %arg14[%c7, %c128] : memref<8x256xf32, #tpu.memory_space<vmem>>, vector<1x128xf32>
    tpu.vector_store %arg14[%c7, %c128], %30 {strides = array<i32>} : memref<8x256xf32, #tpu.memory_space<vmem>>, vector<1x128xf32>,
    %c1 = arith.constant 1 : index
    %c0_21 = arith.constant 0 : index
    %33 = vector.load %arg13[%c1, %c0_21] : memref<8x512xf32, #tpu.memory_space<vmem>>, vector<1x512xf32>
    %cst_22 = arith.constant dense<0.000000e+00> : vector<1x512xf32>
    %34 = tpu.matmul %30, %7, %cst_22 {dimension_numbers = #tpu.dot_dimension_numbers<[1], [0], [0], [1], [0, 0, 1, 1], [], []>} : vector<1x128xf32>, vector<128x512xf32>, vector<1x512xf32> -> vector<1x512xf32>
    %35 = arith.addf %33, %34 : vector<1x512xf32>
    %36 = vector.extract_strided_slice %35 {offsets = [0, 0], sizes = [1, 384], strides = [1, 1]} : vector<1x512xf32> to vector<1x384xf32>
    %cst_23 = arith.constant 0.000000e+00 : f32
    %37 = vector.broadcast %cst_23 : f32 to vector<1x384xf32>
    %38 = arith.subf %37, %36 : vector<1x384xf32>
    %39 = math.exp %38 : vector<1x384xf32>
    %cst_24 = arith.constant 1.000000e+00 : f32
    %40 = vector.broadcast %cst_24 : f32 to vector<1x384xf32>
    %41 = arith.addf %40, %39 : vector<1x384xf32>
    %cst_25 = arith.constant 1.000000e+00 : f32
    %42 = vector.broadcast %cst_25 : f32 to vector<1x384xf32>
    %43 = arith.divf %42, %41 : vector<1x384xf32>
    %44 = vector.extract_strided_slice %43 {offsets = [0, 0], sizes = [1, 128], strides = [1, 1]} : vector<1x384xf32> to vector<1x128xf32>
    %45 = vector.extract_strided_slice %43 {offsets = [0, 128], sizes = [1, 128], strides = [1, 1]} : vector<1x384xf32> to vector<1x128xf32>
    %46 = vector.extract_strided_slice %43 {offsets = [0, 256], sizes = [1, 128], strides = [1, 1]} : vector<1x384xf32> to vector<1x128xf32>
    %47 = vector.extract_strided_slice %35 {offsets = [0, 384], sizes = [1, 128], strides = [1, 1]} : vector<1x512xf32> to vector<1x128xf32>
    %48 = math.tanh %47 : vector<1x128xf32>
    %49 = arith.mulf %45, %28 : vector<1x128xf32>
    %50 = arith.mulf %44, %48 : vector<1x128xf32>
    %51 = arith.addf %49, %50 : vector<1x128xf32>
    %52 = math.tanh %51 : vector<1x128xf32>
    %53 = arith.mulf %46, %52 : vector<1x128xf32>
    %c1_26 = arith.constant 1 : index
    %c0_27 = arith.constant 0 : index
    %54 = vector.load %arg14[%c1_26, %c0_27] : memref<8x256xf32, #tpu.memory_space<vmem>>, vector<1x128xf32>
    tpu.vector_store %arg14[%c1_26, %c0_27], %53 {strides = array<i32>} : memref<8x256xf32, #tpu.memory_space<vmem>>, vector<1x128xf32>,
    %c6 = arith.constant 6 : index
    %c128_28 = arith.constant 128 : index
    %55 = vector.load %arg14[%c6, %c128_28] : memref<8x256xf32, #tpu.memory_space<vmem>>, vector<1x128xf32>
    tpu.vector_store %arg14[%c6, %c128_28], %53 {strides = array<i32>} : memref<8x256xf32, #tpu.memory_space<vmem>>, vector<1x128xf32>,
    %c2 = arith.constant 2 : index
    %c0_29 = arith.constant 0 : index
    %56 = vector.load %arg13[%c2, %c0_29] : memref<8x512xf32, #tpu.memory_space<vmem>>, vector<1x512xf32>
    %cst_30 = arith.constant dense<0.000000e+00> : vector<1x512xf32>
    %57 = tpu.matmul %53, %7, %cst_30 {dimension_numbers = #tpu.dot_dimension_numbers<[1], [0], [0], [1], [0, 0, 1, 1], [], []>} : vector<1x128xf32>, vector<128x512xf32>, vector<1x512xf32> -> vector<1x512xf32>
    %58 = arith.addf %56, %57 : vector<1x512xf32>
    %59 = vector.extract_strided_slice %58 {offsets = [0, 0], sizes = [1, 384], strides = [1, 1]} : vector<1x512xf32> to vector<1x384xf32>
    %cst_31 = arith.constant 0.000000e+00 : f32
    %60 = vector.broadcast %cst_31 : f32 to vector<1x384xf32>
    %61 = arith.subf %60, %59 : vector<1x384xf32>
    %62 = math.exp %61 : vector<1x384xf32>
    %cst_32 = arith.constant 1.000000e+00 : f32
    %63 = vector.broadcast %cst_32 : f32 to vector<1x384xf32>
    %64 = arith.addf %63, %62 : vector<1x384xf32>
    %cst_33 = arith.constant 1.000000e+00 : f32
    %65 = vector.broadcast %cst_33 : f32 to vector<1x384xf32>
    %66 = arith.divf %65, %64 : vector<1x384xf32>
    %67 = vector.extract_strided_slice %66 {offsets = [0, 0], sizes = [1, 128], strides = [1, 1]} : vector<1x384xf32> to vector<1x128xf32>
    %68 = vector.extract_strided_slice %66 {offsets = [0, 128], sizes = [1, 128], strides = [1, 1]} : vector<1x384xf32> to vector<1x128xf32>
    %69 = vector.extract_strided_slice %66 {offsets = [0, 256], sizes = [1, 128], strides = [1, 1]} : vector<1x384xf32> to vector<1x128xf32>
    %70 = vector.extract_strided_slice %58 {offsets = [0, 384], sizes = [1, 128], strides = [1, 1]} : vector<1x512xf32> to vector<1x128xf32>
    %71 = math.tanh %70 : vector<1x128xf32>
    %72 = arith.mulf %68, %51 : vector<1x128xf32>
    %73 = arith.mulf %67, %71 : vector<1x128xf32>
    %74 = arith.addf %72, %73 : vector<1x128xf32>
    %75 = math.tanh %74 : vector<1x128xf32>
    %76 = arith.mulf %69, %75 : vector<1x128xf32>
    %c2_34 = arith.constant 2 : index
    %c0_35 = arith.constant 0 : index
    %77 = vector.load %arg14[%c2_34, %c0_35] : memref<8x256xf32, #tpu.memory_space<vmem>>, vector<1x128xf32>
    tpu.vector_store %arg14[%c2_34, %c0_35], %76 {strides = array<i32>} : memref<8x256xf32, #tpu.memory_space<vmem>>, vector<1x128xf32>,
    %c5 = arith.constant 5 : index
    %c128_36 = arith.constant 128 : index
    %78 = vector.load %arg14[%c5, %c128_36] : memref<8x256xf32, #tpu.memory_space<vmem>>, vector<1x128xf32>
    tpu.vector_store %arg14[%c5, %c128_36], %76 {strides = array<i32>} : memref<8x256xf32, #tpu.memory_space<vmem>>, vector<1x128xf32>,
    %c3 = arith.constant 3 : index
    %c0_37 = arith.constant 0 : index
    %79 = vector.load %arg13[%c3, %c0_37] : memref<8x512xf32, #tpu.memory_space<vmem>>, vector<1x512xf32>
    %cst_38 = arith.constant dense<0.000000e+00> : vector<1x512xf32>
    %80 = tpu.matmul %76, %7, %cst_38 {dimension_numbers = #tpu.dot_dimension_numbers<[1], [0], [0], [1], [0, 0, 1, 1], [], []>} : vector<1x128xf32>, vector<128x512xf32>, vector<1x512xf32> -> vector<1x512xf32>
    %81 = arith.addf %79, %80 : vector<1x512xf32>
    %82 = vector.extract_strided_slice %81 {offsets = [0, 0], sizes = [1, 384], strides = [1, 1]} : vector<1x512xf32> to vector<1x384xf32>
    %cst_39 = arith.constant 0.000000e+00 : f32
    %83 = vector.broadcast %cst_39 : f32 to vector<1x384xf32>
    %84 = arith.subf %83, %82 : vector<1x384xf32>
    %85 = math.exp %84 : vector<1x384xf32>
    %cst_40 = arith.constant 1.000000e+00 : f32
    %86 = vector.broadcast %cst_40 : f32 to vector<1x384xf32>
    %87 = arith.addf %86, %85 : vector<1x384xf32>
    %cst_41 = arith.constant 1.000000e+00 : f32
    %88 = vector.broadcast %cst_41 : f32 to vector<1x384xf32>
    %89 = arith.divf %88, %87 : vector<1x384xf32>
    %90 = vector.extract_strided_slice %89 {offsets = [0, 0], sizes = [1, 128], strides = [1, 1]} : vector<1x384xf32> to vector<1x128xf32>
    %91 = vector.extract_strided_slice %89 {offsets = [0, 128], sizes = [1, 128], strides = [1, 1]} : vector<1x384xf32> to vector<1x128xf32>
    %92 = vector.extract_strided_slice %89 {offsets = [0, 256], sizes = [1, 128], strides = [1, 1]} : vector<1x384xf32> to vector<1x128xf32>
    %93 = vector.extract_strided_slice %81 {offsets = [0, 384], sizes = [1, 128], strides = [1, 1]} : vector<1x512xf32> to vector<1x128xf32>
    %94 = math.tanh %93 : vector<1x128xf32>
    %95 = arith.mulf %91, %74 : vector<1x128xf32>
    %96 = arith.mulf %90, %94 : vector<1x128xf32>
    %97 = arith.addf %95, %96 : vector<1x128xf32>
    %98 = math.tanh %97 : vector<1x128xf32>
    %99 = arith.mulf %92, %98 : vector<1x128xf32>
    %c3_42 = arith.constant 3 : index
    %c0_43 = arith.constant 0 : index
    %100 = vector.load %arg14[%c3_42, %c0_43] : memref<8x256xf32, #tpu.memory_space<vmem>>, vector<1x128xf32>
    tpu.vector_store %arg14[%c3_42, %c0_43], %99 {strides = array<i32>} : memref<8x256xf32, #tpu.memory_space<vmem>>, vector<1x128xf32>,
    %c4 = arith.constant 4 : index
    %c128_44 = arith.constant 128 : index
    %101 = vector.load %arg14[%c4, %c128_44] : memref<8x256xf32, #tpu.memory_space<vmem>>, vector<1x128xf32>
    tpu.vector_store %arg14[%c4, %c128_44], %99 {strides = array<i32>} : memref<8x256xf32, #tpu.memory_space<vmem>>, vector<1x128xf32>,
    %c4_45 = arith.constant 4 : index
    %c0_46 = arith.constant 0 : index
    %102 = vector.load %arg13[%c4_45, %c0_46] : memref<8x512xf32, #tpu.memory_space<vmem>>, vector<1x512xf32>
    %cst_47 = arith.constant dense<0.000000e+00> : vector<1x512xf32>
    %103 = tpu.matmul %99, %7, %cst_47 {dimension_numbers = #tpu.dot_dimension_numbers<[1], [0], [0], [1], [0, 0, 1, 1], [], []>} : vector<1x128xf32>, vector<128x512xf32>, vector<1x512xf32> -> vector<1x512xf32>
    %104 = arith.addf %102, %103 : vector<1x512xf32>
    %105 = vector.extract_strided_slice %104 {offsets = [0, 0], sizes = [1, 384], strides = [1, 1]} : vector<1x512xf32> to vector<1x384xf32>
    %cst_48 = arith.constant 0.000000e+00 : f32
    %106 = vector.broadcast %cst_48 : f32 to vector<1x384xf32>
    %107 = arith.subf %106, %105 : vector<1x384xf32>
    %108 = math.exp %107 : vector<1x384xf32>
    %cst_49 = arith.constant 1.000000e+00 : f32
    %109 = vector.broadcast %cst_49 : f32 to vector<1x384xf32>
    %110 = arith.addf %109, %108 : vector<1x384xf32>
    %cst_50 = arith.constant 1.000000e+00 : f32
    %111 = vector.broadcast %cst_50 : f32 to vector<1x384xf32>
    %112 = arith.divf %111, %110 : vector<1x384xf32>
    %113 = vector.extract_strided_slice %112 {offsets = [0, 0], sizes = [1, 128], strides = [1, 1]} : vector<1x384xf32> to vector<1x128xf32>
    %114 = vector.extract_strided_slice %112 {offsets = [0, 128], sizes = [1, 128], strides = [1, 1]} : vector<1x384xf32> to vector<1x128xf32>
    %115 = vector.extract_strided_slice %112 {offsets = [0, 256], sizes = [1, 128], strides = [1, 1]} : vector<1x384xf32> to vector<1x128xf32>
    %116 = vector.extract_strided_slice %104 {offsets = [0, 384], sizes = [1, 128], strides = [1, 1]} : vector<1x512xf32> to vector<1x128xf32>
    %117 = math.tanh %116 : vector<1x128xf32>
    %118 = arith.mulf %114, %97 : vector<1x128xf32>
    %119 = arith.mulf %113, %117 : vector<1x128xf32>
    %120 = arith.addf %118, %119 : vector<1x128xf32>
    %121 = math.tanh %120 : vector<1x128xf32>
    %122 = arith.mulf %115, %121 : vector<1x128xf32>
    %c4_51 = arith.constant 4 : index
    %c0_52 = arith.constant 0 : index
    %123 = vector.load %arg14[%c4_51, %c0_52] : memref<8x256xf32, #tpu.memory_space<vmem>>, vector<1x128xf32>
    tpu.vector_store %arg14[%c4_51, %c0_52], %122 {strides = array<i32>} : memref<8x256xf32, #tpu.memory_space<vmem>>, vector<1x128xf32>,
    %c3_53 = arith.constant 3 : index
    %c128_54 = arith.constant 128 : index
    %124 = vector.load %arg14[%c3_53, %c128_54] : memref<8x256xf32, #tpu.memory_space<vmem>>, vector<1x128xf32>
    tpu.vector_store %arg14[%c3_53, %c128_54], %122 {strides = array<i32>} : memref<8x256xf32, #tpu.memory_space<vmem>>, vector<1x128xf32>,
    %c5_55 = arith.constant 5 : index
    %c0_56 = arith.constant 0 : index
    %125 = vector.load %arg13[%c5_55, %c0_56] : memref<8x512xf32, #tpu.memory_space<vmem>>, vector<1x512xf32>
    %cst_57 = arith.constant dense<0.000000e+00> : vector<1x512xf32>
    %126 = tpu.matmul %122, %7, %cst_57 {dimension_numbers = #tpu.dot_dimension_numbers<[1], [0], [0], [1], [0, 0, 1, 1], [], []>} : vector<1x128xf32>, vector<128x512xf32>, vector<1x512xf32> -> vector<1x512xf32>
    %127 = arith.addf %125, %126 : vector<1x512xf32>
    %128 = vector.extract_strided_slice %127 {offsets = [0, 0], sizes = [1, 384], strides = [1, 1]} : vector<1x512xf32> to vector<1x384xf32>
    %cst_58 = arith.constant 0.000000e+00 : f32
    %129 = vector.broadcast %cst_58 : f32 to vector<1x384xf32>
    %130 = arith.subf %129, %128 : vector<1x384xf32>
    %131 = math.exp %130 : vector<1x384xf32>
    %cst_59 = arith.constant 1.000000e+00 : f32
    %132 = vector.broadcast %cst_59 : f32 to vector<1x384xf32>
    %133 = arith.addf %132, %131 : vector<1x384xf32>
    %cst_60 = arith.constant 1.000000e+00 : f32
    %134 = vector.broadcast %cst_60 : f32 to vector<1x384xf32>
    %135 = arith.divf %134, %133 : vector<1x384xf32>
    %136 = vector.extract_strided_slice %135 {offsets = [0, 0], sizes = [1, 128], strides = [1, 1]} : vector<1x384xf32> to vector<1x128xf32>
    %137 = vector.extract_strided_slice %135 {offsets = [0, 128], sizes = [1, 128], strides = [1, 1]} : vector<1x384xf32> to vector<1x128xf32>
    %138 = vector.extract_strided_slice %135 {offsets = [0, 256], sizes = [1, 128], strides = [1, 1]} : vector<1x384xf32> to vector<1x128xf32>
    %139 = vector.extract_strided_slice %127 {offsets = [0, 384], sizes = [1, 128], strides = [1, 1]} : vector<1x512xf32> to vector<1x128xf32>
    %140 = math.tanh %139 : vector<1x128xf32>
    %141 = arith.mulf %137, %120 : vector<1x128xf32>
    %142 = arith.mulf %136, %140 : vector<1x128xf32>
    %143 = arith.addf %141, %142 : vector<1x128xf32>
    %144 = math.tanh %143 : vector<1x128xf32>
    %145 = arith.mulf %138, %144 : vector<1x128xf32>
    %c5_61 = arith.constant 5 : index
    %c0_62 = arith.constant 0 : index
    %146 = vector.load %arg14[%c5_61, %c0_62] : memref<8x256xf32, #tpu.memory_space<vmem>>, vector<1x128xf32>
    tpu.vector_store %arg14[%c5_61, %c0_62], %145 {strides = array<i32>} : memref<8x256xf32, #tpu.memory_space<vmem>>, vector<1x128xf32>,
    %c2_63 = arith.constant 2 : index
    %c128_64 = arith.constant 128 : index
    %147 = vector.load %arg14[%c2_63, %c128_64] : memref<8x256xf32, #tpu.memory_space<vmem>>, vector<1x128xf32>
    tpu.vector_store %arg14[%c2_63, %c128_64], %145 {strides = array<i32>} : memref<8x256xf32, #tpu.memory_space<vmem>>, vector<1x128xf32>,
    %c6_65 = arith.constant 6 : index
    %c0_66 = arith.constant 0 : index
    %148 = vector.load %arg13[%c6_65, %c0_66] : memref<8x512xf32, #tpu.memory_space<vmem>>, vector<1x512xf32>
    %cst_67 = arith.constant dense<0.000000e+00> : vector<1x512xf32>
    %149 = tpu.matmul %145, %7, %cst_67 {dimension_numbers = #tpu.dot_dimension_numbers<[1], [0], [0], [1], [0, 0, 1, 1], [], []>} : vector<1x128xf32>, vector<128x512xf32>, vector<1x512xf32> -> vector<1x512xf32>
    %150 = arith.addf %148, %149 : vector<1x512xf32>
    %151 = vector.extract_strided_slice %150 {offsets = [0, 0], sizes = [1, 384], strides = [1, 1]} : vector<1x512xf32> to vector<1x384xf32>
    %cst_68 = arith.constant 0.000000e+00 : f32
    %152 = vector.broadcast %cst_68 : f32 to vector<1x384xf32>
    %153 = arith.subf %152, %151 : vector<1x384xf32>
    %154 = math.exp %153 : vector<1x384xf32>
    %cst_69 = arith.constant 1.000000e+00 : f32
    %155 = vector.broadcast %cst_69 : f32 to vector<1x384xf32>
    %156 = arith.addf %155, %154 : vector<1x384xf32>
    %cst_70 = arith.constant 1.000000e+00 : f32
    %157 = vector.broadcast %cst_70 : f32 to vector<1x384xf32>
    %158 = arith.divf %157, %156 : vector<1x384xf32>
    %159 = vector.extract_strided_slice %158 {offsets = [0, 0], sizes = [1, 128], strides = [1, 1]} : vector<1x384xf32> to vector<1x128xf32>
    %160 = vector.extract_strided_slice %158 {offsets = [0, 128], sizes = [1, 128], strides = [1, 1]} : vector<1x384xf32> to vector<1x128xf32>
    %161 = vector.extract_strided_slice %158 {offsets = [0, 256], sizes = [1, 128], strides = [1, 1]} : vector<1x384xf32> to vector<1x128xf32>
    %162 = vector.extract_strided_slice %150 {offsets = [0, 384], sizes = [1, 128], strides = [1, 1]} : vector<1x512xf32> to vector<1x128xf32>
    %163 = math.tanh %162 : vector<1x128xf32>
    %164 = arith.mulf %160, %143 : vector<1x128xf32>
    %165 = arith.mulf %159, %163 : vector<1x128xf32>
    %166 = arith.addf %164, %165 : vector<1x128xf32>
    %167 = math.tanh %166 : vector<1x128xf32>
    %168 = arith.mulf %161, %167 : vector<1x128xf32>
    %c6_71 = arith.constant 6 : index
    %c0_72 = arith.constant 0 : index
    %169 = vector.load %arg14[%c6_71, %c0_72] : memref<8x256xf32, #tpu.memory_space<vmem>>, vector<1x128xf32>
    tpu.vector_store %arg14[%c6_71, %c0_72], %168 {strides = array<i32>} : memref<8x256xf32, #tpu.memory_space<vmem>>, vector<1x128xf32>,
    %c1_73 = arith.constant 1 : index
    %c128_74 = arith.constant 128 : index
    %170 = vector.load %arg14[%c1_73, %c128_74] : memref<8x256xf32, #tpu.memory_space<vmem>>, vector<1x128xf32>
    tpu.vector_store %arg14[%c1_73, %c128_74], %168 {strides = array<i32>} : memref<8x256xf32, #tpu.memory_space<vmem>>, vector<1x128xf32>,
    %c7_75 = arith.constant 7 : index
    %c0_76 = arith.constant 0 : index
    %171 = vector.load %arg13[%c7_75, %c0_76] : memref<8x512xf32, #tpu.memory_space<vmem>>, vector<1x512xf32>
    %cst_77 = arith.constant dense<0.000000e+00> : vector<1x512xf32>
    %172 = tpu.matmul %168, %7, %cst_77 {dimension_numbers = #tpu.dot_dimension_numbers<[1], [0], [0], [1], [0, 0, 1, 1], [], []>} : vector<1x128xf32>, vector<128x512xf32>, vector<1x512xf32> -> vector<1x512xf32>
    %173 = arith.addf %171, %172 : vector<1x512xf32>
    %174 = vector.extract_strided_slice %173 {offsets = [0, 0], sizes = [1, 384], strides = [1, 1]} : vector<1x512xf32> to vector<1x384xf32>
    %cst_78 = arith.constant 0.000000e+00 : f32
    %175 = vector.broadcast %cst_78 : f32 to vector<1x384xf32>
    %176 = arith.subf %175, %174 : vector<1x384xf32>
    %177 = math.exp %176 : vector<1x384xf32>
    %cst_79 = arith.constant 1.000000e+00 : f32
    %178 = vector.broadcast %cst_79 : f32 to vector<1x384xf32>
    %179 = arith.addf %178, %177 : vector<1x384xf32>
    %cst_80 = arith.constant 1.000000e+00 : f32
    %180 = vector.broadcast %cst_80 : f32 to vector<1x384xf32>
    %181 = arith.divf %180, %179 : vector<1x384xf32>
    %182 = vector.extract_strided_slice %181 {offsets = [0, 0], sizes = [1, 128], strides = [1, 1]} : vector<1x384xf32> to vector<1x128xf32>
    %183 = vector.extract_strided_slice %181 {offsets = [0, 128], sizes = [1, 128], strides = [1, 1]} : vector<1x384xf32> to vector<1x128xf32>
    %184 = vector.extract_strided_slice %181 {offsets = [0, 256], sizes = [1, 128], strides = [1, 1]} : vector<1x384xf32> to vector<1x128xf32>
    %185 = vector.extract_strided_slice %173 {offsets = [0, 384], sizes = [1, 128], strides = [1, 1]} : vector<1x512xf32> to vector<1x128xf32>
    %186 = math.tanh %185 : vector<1x128xf32>
    %187 = arith.mulf %183, %166 : vector<1x128xf32>
    %188 = arith.mulf %182, %186 : vector<1x128xf32>
    %189 = arith.addf %187, %188 : vector<1x128xf32>
    %190 = math.tanh %189 : vector<1x128xf32>
    %191 = arith.mulf %184, %190 : vector<1x128xf32>
    %c7_81 = arith.constant 7 : index
    %c0_82 = arith.constant 0 : index
    %192 = vector.load %arg14[%c7_81, %c0_82] : memref<8x256xf32, #tpu.memory_space<vmem>>, vector<1x128xf32>
    tpu.vector_store %arg14[%c7_81, %c0_82], %191 {strides = array<i32>} : memref<8x256xf32, #tpu.memory_space<vmem>>, vector<1x128xf32>,
    %c0_83 = arith.constant 0 : index
    %c128_84 = arith.constant 128 : index
    %193 = vector.load %arg14[%c0_83, %c128_84] : memref<8x256xf32, #tpu.memory_space<vmem>>, vector<1x128xf32>
    tpu.vector_store %arg14[%c0_83, %c128_84], %191 {strides = array<i32>} : memref<8x256xf32, #tpu.memory_space<vmem>>, vector<1x128xf32>,
    %c0_85 = arith.constant 0 : index
    %c0_86 = arith.constant 0 : index
    %194 = vector.load %arg14[%c0_85, %c0_86] : memref<8x256xf32, #tpu.memory_space<vmem>>, vector<8x256xf32>
    %c0_87 = arith.constant 0 : index
    %c0_88 = arith.constant 0 : index
    %195 = vector.load %arg6[%c0_87, %c0_88] : memref<256x128xf32, #tpu.memory_space<vmem>>, vector<256x128xf32>
    %cst_89 = arith.constant dense<0.000000e+00> : vector<8x128xf32>
    %196 = tpu.matmul %194, %195, %cst_89 {dimension_numbers = #tpu.dot_dimension_numbers<[1], [0], [0], [1], [0, 0, 1, 1], [], []>} : vector<8x256xf32>, vector<256x128xf32>, vector<8x128xf32> -> vector<8x128xf32>
    %c0_90 = arith.constant 0 : index
    %c0_91 = arith.constant 0 : index
    %197 = vector.load %arg7[%c0_90, %c0_91] : memref<1x128xf32, #tpu.memory_space<vmem>>, vector<1x128xf32>
    %198 = vector.broadcast %197 : vector<1x128xf32> to vector<8x128xf32>
    %199 = arith.addf %196, %198 : vector<8x128xf32>
    %c0_92 = arith.constant 0 : index
    %c0_93 = arith.constant 0 : index
    %200 = vector.load %arg10[%c0_92, %c0_93] : memref<8x128xf32, #tpu.memory_space<vmem>>, vector<8x128xf32>
    tpu.vector_store %arg10[%c0_92, %c0_93], %199 {strides = array<i32>} : memref<8x128xf32, #tpu.memory_space<vmem>>, vector<8x128xf32>,
    %201 = tpu.iota {dimensions = array<i32: 0>} : vector<8x128xi32>
    %202 = tpu.iota {dimensions = array<i32: 1>} : vector<8x128xi32>
    %203 = arith.cmpi eq, %201, %202 : vector<8x128xi32>
    %204 = arith.extui %203 : vector<8x128xi1> to vector<8x128xi32>
    %205 = arith.sitofp %204 : vector<8x128xi32> to vector<8x128xf32>
    %cst_94 = arith.constant dense<0.000000e+00> : vector<8x8xf32>
    %206 = tpu.matmul %205, %199, %cst_94 {dimension_numbers = #tpu.dot_dimension_numbers<[1], [1], [0], [0], [0, 0, 1, 0], [], []>} : vector<8x128xf32>, vector<8x128xf32>, vector<8x8xf32> -> vector<8x8xf32>
    %c0_95 = arith.constant 0 : index
    %c0_96 = arith.constant 0 : index
    %207 = vector.load %arg8[%c0_95, %c0_96] : memref<8x128xf32, #tpu.memory_space<vmem>>, vector<8x128xf32>
    %c0_97 = arith.constant 0 : index
    %c0_98 = arith.constant 0 : index
    %208 = vector.load %arg9[%c0_97, %c0_98] : memref<8x128xf32, #tpu.memory_space<vmem>>, vector<8x128xf32>
    %209 = arith.sitofp %201 : vector<8x128xi32> to vector<8x128xf32>
    %210 = vector.extract_strided_slice %202 {offsets = [0, 0], sizes = [1, 128], strides = [1, 1]} : vector<8x128xi32> to vector<1x128xi32>
    %211 = vector.extract_strided_slice %201 {offsets = [0, 0], sizes = [8, 1], strides = [1, 1]} : vector<8x128xi32> to vector<8x1xi32>
    %212 = arith.sitofp %210 : vector<1x128xi32> to vector<1x128xf32>
    %c3_i32 = arith.constant 3 : i32
    %213 = vector.broadcast %c3_i32 : i32 to vector<1x128xi32>
    %214 = arith.cmpi eq, %210, %213 : vector<1x128xi32>
    %c5_i32 = arith.constant 5 : i32
    %215 = vector.broadcast %c5_i32 : i32 to vector<1x128xi32>
    %216 = arith.cmpi slt, %210, %215 : vector<1x128xi32>
    %cst_99 = arith.constant -1.000000e+04 : f32
    %cst_100 = arith.constant -1.000000e+30 : f32
    %217 = vector.broadcast %cst_99 : f32 to vector<1x128xf32>
    %218 = vector.broadcast %cst_100 : f32 to vector<1x128xf32>
    %219 = arith.select %216, %217, %218 : vector<1x128xi1>, vector<1x128xf32>
    %cst_101 = arith.constant 0.000000e+00 : f32
    %220 = vector.broadcast %cst_101 : f32 to vector<1x128xf32>
    %221 = arith.select %214, %220, %219 : vector<1x128xi1>, vector<1x128xf32>
    %c3_i32_102 = arith.constant 3 : i32
    %222 = vector.broadcast %c3_i32_102 : i32 to vector<8x1xi32>
    %223 = arith.cmpi eq, %211, %222 : vector<8x1xi32>
    %c5_i32_103 = arith.constant 5 : i32
    %224 = vector.broadcast %c5_i32_103 : i32 to vector<8x1xi32>
    %225 = arith.cmpi slt, %211, %224 : vector<8x1xi32>
    %cst_104 = arith.constant -1.000000e+04 : f32
    %cst_105 = arith.constant -1.000000e+30 : f32
    %226 = vector.broadcast %cst_104 : f32 to vector<8x1xf32>
    %227 = vector.broadcast %cst_105 : f32 to vector<8x1xf32>
    %228 = arith.select %225, %226, %227 : vector<8x1xi1>, vector<8x1xf32>
    %cst_106 = arith.constant 0.000000e+00 : f32
    %229 = vector.broadcast %cst_106 : f32 to vector<8x1xf32>
    %230 = arith.select %223, %229, %228 : vector<8x1xi1>, vector<8x1xf32>
    %231 = vector.broadcast %230 : vector<8x1xf32> to vector<8x128xf32>
    %232 = arith.addf %208, %231 : vector<8x128xf32>
    %cst_107 = arith.constant dense<0xFF800000> : vector<128xf32>
    %233 = vector.multi_reduction <maximumf>, %232, %cst_107 [0] : vector<8x128xf32> to vector<128xf32>
    %234 = vector.shape_cast %233 : vector<128xf32> to vector<1x128xf32>
    %235 = vector.broadcast %234 : vector<1x128xf32> to vector<8x128xf32>
    %236 = arith.cmpf oeq, %232, %235 : vector<8x128xf32>
    %cst_108 = arith.constant 8.000000e+00 : f32
    %237 = vector.broadcast %cst_108 : f32 to vector<8x128xf32>
    %238 = arith.select %236, %209, %237 : vector<8x128xi1>, vector<8x128xf32>
    %cst_109 = arith.constant dense<0x7F800000> : vector<128xf32>
    %239 = vector.multi_reduction <minimumf>, %238, %cst_109 [0] : vector<8x128xf32> to vector<128xf32>
    %240 = vector.shape_cast %239 : vector<128xf32> to vector<1x128xf32>
    %241 = arith.fptosi %240 : vector<1x128xf32> to vector<1x128xi32>
    %c0_110 = arith.constant 0 : index
    %c0_111 = arith.constant 0 : index
    %242 = vector.load %arg11[%c0_110, %c0_111] : memref<8x128xi32, #tpu.memory_space<vmem>>, vector<1x128xi32>
    tpu.vector_store %arg11[%c0_110, %c0_111], %241 {strides = array<i32>} : memref<8x128xi32, #tpu.memory_space<vmem>>, vector<1x128xi32>,
    %243 = vector.broadcast %221 : vector<1x128xf32> to vector<8x128xf32>
    %244 = arith.addf %207, %243 : vector<8x128xf32>
    %cst_112 = arith.constant dense<0xFF800000> : vector<8xf32>
    %245 = vector.multi_reduction <maximumf>, %244, %cst_112 [1] : vector<8x128xf32> to vector<8xf32>
    %246 = vector.shape_cast %245 : vector<8xf32> to vector<8x1xf32>
    %247 = vector.extract_strided_slice %199 {offsets = [0, 0], sizes = [1, 128], strides = [1, 1]} : vector<8x128xf32> to vector<1x128xf32>
    %248 = arith.addf %234, %247 : vector<1x128xf32>
    %249 = vector.extract_strided_slice %206 {offsets = [0, 0], sizes = [8, 1], strides = [1, 1]} : vector<8x8xf32> to vector<8x1xf32>
    %250 = arith.addf %246, %249 : vector<8x1xf32>
    %251 = vector.broadcast %250 : vector<8x1xf32> to vector<8x128xf32>
    %252 = arith.addf %208, %251 : vector<8x128xf32>
    %cst_113 = arith.constant dense<0xFF800000> : vector<128xf32>
    %253 = vector.multi_reduction <maximumf>, %252, %cst_113 [0] : vector<8x128xf32> to vector<128xf32>
    %254 = vector.shape_cast %253 : vector<128xf32> to vector<1x128xf32>
    %255 = vector.broadcast %254 : vector<1x128xf32> to vector<8x128xf32>
    %256 = arith.cmpf oeq, %252, %255 : vector<8x128xf32>
    %cst_114 = arith.constant 8.000000e+00 : f32
    %257 = vector.broadcast %cst_114 : f32 to vector<8x128xf32>
    %258 = arith.select %256, %209, %257 : vector<8x128xi1>, vector<8x128xf32>
    %cst_115 = arith.constant dense<0x7F800000> : vector<128xf32>
    %259 = vector.multi_reduction <minimumf>, %258, %cst_115 [0] : vector<8x128xf32> to vector<128xf32>
    %260 = vector.shape_cast %259 : vector<128xf32> to vector<1x128xf32>
    %261 = arith.fptosi %260 : vector<1x128xf32> to vector<1x128xi32>
    %c1_116 = arith.constant 1 : index
    %c0_117 = arith.constant 0 : index
    %262 = vector.load %arg11[%c1_116, %c0_117] : memref<8x128xi32, #tpu.memory_space<vmem>>, vector<1x128xi32>
    tpu.vector_store %arg11[%c1_116, %c0_117], %261 {strides = array<i32>} : memref<8x128xi32, #tpu.memory_space<vmem>>, vector<1x128xi32>,
    %263 = vector.broadcast %248 : vector<1x128xf32> to vector<8x128xf32>
    %264 = arith.addf %207, %263 : vector<8x128xf32>
    %cst_118 = arith.constant dense<0xFF800000> : vector<8xf32>
    %265 = vector.multi_reduction <maximumf>, %264, %cst_118 [1] : vector<8x128xf32> to vector<8xf32>
    %266 = vector.shape_cast %265 : vector<8xf32> to vector<8x1xf32>
    %267 = vector.extract_strided_slice %199 {offsets = [1, 0], sizes = [1, 128], strides = [1, 1]} : vector<8x128xf32> to vector<1x128xf32>
    %268 = arith.addf %254, %267 : vector<1x128xf32>
    %269 = vector.extract_strided_slice %206 {offsets = [0, 1], sizes = [8, 1], strides = [1, 1]} : vector<8x8xf32> to vector<8x1xf32>
    %270 = arith.addf %266, %269 : vector<8x1xf32>
    %271 = vector.broadcast %270 : vector<8x1xf32> to vector<8x128xf32>
    %272 = arith.addf %208, %271 : vector<8x128xf32>
    %cst_119 = arith.constant dense<0xFF800000> : vector<128xf32>
    %273 = vector.multi_reduction <maximumf>, %272, %cst_119 [0] : vector<8x128xf32> to vector<128xf32>
    %274 = vector.shape_cast %273 : vector<128xf32> to vector<1x128xf32>
    %275 = vector.broadcast %274 : vector<1x128xf32> to vector<8x128xf32>
    %276 = arith.cmpf oeq, %272, %275 : vector<8x128xf32>
    %cst_120 = arith.constant 8.000000e+00 : f32
    %277 = vector.broadcast %cst_120 : f32 to vector<8x128xf32>
    %278 = arith.select %276, %209, %277 : vector<8x128xi1>, vector<8x128xf32>
    %cst_121 = arith.constant dense<0x7F800000> : vector<128xf32>
    %279 = vector.multi_reduction <minimumf>, %278, %cst_121 [0] : vector<8x128xf32> to vector<128xf32>
    %280 = vector.shape_cast %279 : vector<128xf32> to vector<1x128xf32>
    %281 = arith.fptosi %280 : vector<1x128xf32> to vector<1x128xi32>
    %c2_122 = arith.constant 2 : index
    %c0_123 = arith.constant 0 : index
    %282 = vector.load %arg11[%c2_122, %c0_123] : memref<8x128xi32, #tpu.memory_space<vmem>>, vector<1x128xi32>
    tpu.vector_store %arg11[%c2_122, %c0_123], %281 {strides = array<i32>} : memref<8x128xi32, #tpu.memory_space<vmem>>, vector<1x128xi32>,
    %283 = vector.broadcast %268 : vector<1x128xf32> to vector<8x128xf32>
    %284 = arith.addf %207, %283 : vector<8x128xf32>
    %cst_124 = arith.constant dense<0xFF800000> : vector<8xf32>
    %285 = vector.multi_reduction <maximumf>, %284, %cst_124 [1] : vector<8x128xf32> to vector<8xf32>
    %286 = vector.shape_cast %285 : vector<8xf32> to vector<8x1xf32>
    %287 = vector.extract_strided_slice %199 {offsets = [2, 0], sizes = [1, 128], strides = [1, 1]} : vector<8x128xf32> to vector<1x128xf32>
    %288 = arith.addf %274, %287 : vector<1x128xf32>
    %289 = vector.extract_strided_slice %206 {offsets = [0, 2], sizes = [8, 1], strides = [1, 1]} : vector<8x8xf32> to vector<8x1xf32>
    %290 = arith.addf %286, %289 : vector<8x1xf32>
    %291 = vector.broadcast %290 : vector<8x1xf32> to vector<8x128xf32>
    %292 = arith.addf %208, %291 : vector<8x128xf32>
    %cst_125 = arith.constant dense<0xFF800000> : vector<128xf32>
    %293 = vector.multi_reduction <maximumf>, %292, %cst_125 [0] : vector<8x128xf32> to vector<128xf32>
    %294 = vector.shape_cast %293 : vector<128xf32> to vector<1x128xf32>
    %295 = vector.broadcast %294 : vector<1x128xf32> to vector<8x128xf32>
    %296 = arith.cmpf oeq, %292, %295 : vector<8x128xf32>
    %cst_126 = arith.constant 8.000000e+00 : f32
    %297 = vector.broadcast %cst_126 : f32 to vector<8x128xf32>
    %298 = arith.select %296, %209, %297 : vector<8x128xi1>, vector<8x128xf32>
    %cst_127 = arith.constant dense<0x7F800000> : vector<128xf32>
    %299 = vector.multi_reduction <minimumf>, %298, %cst_127 [0] : vector<8x128xf32> to vector<128xf32>
    %300 = vector.shape_cast %299 : vector<128xf32> to vector<1x128xf32>
    %301 = arith.fptosi %300 : vector<1x128xf32> to vector<1x128xi32>
    %c3_128 = arith.constant 3 : index
    %c0_129 = arith.constant 0 : index
    %302 = vector.load %arg11[%c3_128, %c0_129] : memref<8x128xi32, #tpu.memory_space<vmem>>, vector<1x128xi32>
    tpu.vector_store %arg11[%c3_128, %c0_129], %301 {strides = array<i32>} : memref<8x128xi32, #tpu.memory_space<vmem>>, vector<1x128xi32>,
    %303 = vector.broadcast %288 : vector<1x128xf32> to vector<8x128xf32>
    %304 = arith.addf %207, %303 : vector<8x128xf32>
    %cst_130 = arith.constant dense<0xFF800000> : vector<8xf32>
    %305 = vector.multi_reduction <maximumf>, %304, %cst_130 [1] : vector<8x128xf32> to vector<8xf32>
    %306 = vector.shape_cast %305 : vector<8xf32> to vector<8x1xf32>
    %307 = vector.extract_strided_slice %199 {offsets = [3, 0], sizes = [1, 128], strides = [1, 1]} : vector<8x128xf32> to vector<1x128xf32>
    %308 = arith.addf %294, %307 : vector<1x128xf32>
    %309 = vector.extract_strided_slice %206 {offsets = [0, 3], sizes = [8, 1], strides = [1, 1]} : vector<8x8xf32> to vector<8x1xf32>
    %310 = arith.addf %306, %309 : vector<8x1xf32>
    %311 = vector.broadcast %310 : vector<8x1xf32> to vector<8x128xf32>
    %312 = arith.addf %208, %311 : vector<8x128xf32>
    %cst_131 = arith.constant dense<0xFF800000> : vector<128xf32>
    %313 = vector.multi_reduction <maximumf>, %312, %cst_131 [0] : vector<8x128xf32> to vector<128xf32>
    %314 = vector.shape_cast %313 : vector<128xf32> to vector<1x128xf32>
    %315 = vector.broadcast %314 : vector<1x128xf32> to vector<8x128xf32>
    %316 = arith.cmpf oeq, %312, %315 : vector<8x128xf32>
    %cst_132 = arith.constant 8.000000e+00 : f32
    %317 = vector.broadcast %cst_132 : f32 to vector<8x128xf32>
    %318 = arith.select %316, %209, %317 : vector<8x128xi1>, vector<8x128xf32>
    %cst_133 = arith.constant dense<0x7F800000> : vector<128xf32>
    %319 = vector.multi_reduction <minimumf>, %318, %cst_133 [0] : vector<8x128xf32> to vector<128xf32>
    %320 = vector.shape_cast %319 : vector<128xf32> to vector<1x128xf32>
    %321 = arith.fptosi %320 : vector<1x128xf32> to vector<1x128xi32>
    %c4_134 = arith.constant 4 : index
    %c0_135 = arith.constant 0 : index
    %322 = vector.load %arg11[%c4_134, %c0_135] : memref<8x128xi32, #tpu.memory_space<vmem>>, vector<1x128xi32>
    tpu.vector_store %arg11[%c4_134, %c0_135], %321 {strides = array<i32>} : memref<8x128xi32, #tpu.memory_space<vmem>>, vector<1x128xi32>,
    %323 = vector.broadcast %308 : vector<1x128xf32> to vector<8x128xf32>
    %324 = arith.addf %207, %323 : vector<8x128xf32>
    %cst_136 = arith.constant dense<0xFF800000> : vector<8xf32>
    %325 = vector.multi_reduction <maximumf>, %324, %cst_136 [1] : vector<8x128xf32> to vector<8xf32>
    %326 = vector.shape_cast %325 : vector<8xf32> to vector<8x1xf32>
    %327 = vector.extract_strided_slice %199 {offsets = [4, 0], sizes = [1, 128], strides = [1, 1]} : vector<8x128xf32> to vector<1x128xf32>
    %328 = arith.addf %314, %327 : vector<1x128xf32>
    %329 = vector.extract_strided_slice %206 {offsets = [0, 4], sizes = [8, 1], strides = [1, 1]} : vector<8x8xf32> to vector<8x1xf32>
    %330 = arith.addf %326, %329 : vector<8x1xf32>
    %331 = vector.broadcast %330 : vector<8x1xf32> to vector<8x128xf32>
    %332 = arith.addf %208, %331 : vector<8x128xf32>
    %cst_137 = arith.constant dense<0xFF800000> : vector<128xf32>
    %333 = vector.multi_reduction <maximumf>, %332, %cst_137 [0] : vector<8x128xf32> to vector<128xf32>
    %334 = vector.shape_cast %333 : vector<128xf32> to vector<1x128xf32>
    %335 = vector.broadcast %334 : vector<1x128xf32> to vector<8x128xf32>
    %336 = arith.cmpf oeq, %332, %335 : vector<8x128xf32>
    %cst_138 = arith.constant 8.000000e+00 : f32
    %337 = vector.broadcast %cst_138 : f32 to vector<8x128xf32>
    %338 = arith.select %336, %209, %337 : vector<8x128xi1>, vector<8x128xf32>
    %cst_139 = arith.constant dense<0x7F800000> : vector<128xf32>
    %339 = vector.multi_reduction <minimumf>, %338, %cst_139 [0] : vector<8x128xf32> to vector<128xf32>
    %340 = vector.shape_cast %339 : vector<128xf32> to vector<1x128xf32>
    %341 = arith.fptosi %340 : vector<1x128xf32> to vector<1x128xi32>
    %c5_140 = arith.constant 5 : index
    %c0_141 = arith.constant 0 : index
    %342 = vector.load %arg11[%c5_140, %c0_141] : memref<8x128xi32, #tpu.memory_space<vmem>>, vector<1x128xi32>
    tpu.vector_store %arg11[%c5_140, %c0_141], %341 {strides = array<i32>} : memref<8x128xi32, #tpu.memory_space<vmem>>, vector<1x128xi32>,
    %343 = vector.broadcast %328 : vector<1x128xf32> to vector<8x128xf32>
    %344 = arith.addf %207, %343 : vector<8x128xf32>
    %cst_142 = arith.constant dense<0xFF800000> : vector<8xf32>
    %345 = vector.multi_reduction <maximumf>, %344, %cst_142 [1] : vector<8x128xf32> to vector<8xf32>
    %346 = vector.shape_cast %345 : vector<8xf32> to vector<8x1xf32>
    %347 = vector.extract_strided_slice %199 {offsets = [5, 0], sizes = [1, 128], strides = [1, 1]} : vector<8x128xf32> to vector<1x128xf32>
    %348 = arith.addf %334, %347 : vector<1x128xf32>
    %349 = vector.extract_strided_slice %206 {offsets = [0, 5], sizes = [8, 1], strides = [1, 1]} : vector<8x8xf32> to vector<8x1xf32>
    %350 = arith.addf %346, %349 : vector<8x1xf32>
    %351 = vector.broadcast %350 : vector<8x1xf32> to vector<8x128xf32>
    %352 = arith.addf %208, %351 : vector<8x128xf32>
    %cst_143 = arith.constant dense<0xFF800000> : vector<128xf32>
    %353 = vector.multi_reduction <maximumf>, %352, %cst_143 [0] : vector<8x128xf32> to vector<128xf32>
    %354 = vector.shape_cast %353 : vector<128xf32> to vector<1x128xf32>
    %355 = vector.broadcast %354 : vector<1x128xf32> to vector<8x128xf32>
    %356 = arith.cmpf oeq, %352, %355 : vector<8x128xf32>
    %cst_144 = arith.constant 8.000000e+00 : f32
    %357 = vector.broadcast %cst_144 : f32 to vector<8x128xf32>
    %358 = arith.select %356, %209, %357 : vector<8x128xi1>, vector<8x128xf32>
    %cst_145 = arith.constant dense<0x7F800000> : vector<128xf32>
    %359 = vector.multi_reduction <minimumf>, %358, %cst_145 [0] : vector<8x128xf32> to vector<128xf32>
    %360 = vector.shape_cast %359 : vector<128xf32> to vector<1x128xf32>
    %361 = arith.fptosi %360 : vector<1x128xf32> to vector<1x128xi32>
    %c6_146 = arith.constant 6 : index
    %c0_147 = arith.constant 0 : index
    %362 = vector.load %arg11[%c6_146, %c0_147] : memref<8x128xi32, #tpu.memory_space<vmem>>, vector<1x128xi32>
    tpu.vector_store %arg11[%c6_146, %c0_147], %361 {strides = array<i32>} : memref<8x128xi32, #tpu.memory_space<vmem>>, vector<1x128xi32>,
    %363 = vector.broadcast %348 : vector<1x128xf32> to vector<8x128xf32>
    %364 = arith.addf %207, %363 : vector<8x128xf32>
    %cst_148 = arith.constant dense<0xFF800000> : vector<8xf32>
    %365 = vector.multi_reduction <maximumf>, %364, %cst_148 [1] : vector<8x128xf32> to vector<8xf32>
    %366 = vector.shape_cast %365 : vector<8xf32> to vector<8x1xf32>
    %367 = vector.extract_strided_slice %206 {offsets = [0, 6], sizes = [8, 1], strides = [1, 1]} : vector<8x8xf32> to vector<8x1xf32>
    %368 = arith.addf %366, %367 : vector<8x1xf32>
    %369 = vector.broadcast %368 : vector<8x1xf32> to vector<8x128xf32>
    %370 = arith.addf %208, %369 : vector<8x128xf32>
    %cst_149 = arith.constant dense<0xFF800000> : vector<128xf32>
    %371 = vector.multi_reduction <maximumf>, %370, %cst_149 [0] : vector<8x128xf32> to vector<128xf32>
    %372 = vector.shape_cast %371 : vector<128xf32> to vector<1x128xf32>
    %373 = vector.broadcast %372 : vector<1x128xf32> to vector<8x128xf32>
    %374 = arith.cmpf oeq, %370, %373 : vector<8x128xf32>
    %cst_150 = arith.constant 8.000000e+00 : f32
    %375 = vector.broadcast %cst_150 : f32 to vector<8x128xf32>
    %376 = arith.select %374, %209, %375 : vector<8x128xi1>, vector<8x128xf32>
    %cst_151 = arith.constant dense<0x7F800000> : vector<128xf32>
    %377 = vector.multi_reduction <minimumf>, %376, %cst_151 [0] : vector<8x128xf32> to vector<128xf32>
    %378 = vector.shape_cast %377 : vector<128xf32> to vector<1x128xf32>
    %379 = arith.fptosi %378 : vector<1x128xf32> to vector<1x128xi32>
    %c7_152 = arith.constant 7 : index
    %c0_153 = arith.constant 0 : index
    %380 = vector.load %arg11[%c7_152, %c0_153] : memref<8x128xi32, #tpu.memory_space<vmem>>, vector<1x128xi32>
    tpu.vector_store %arg11[%c7_152, %c0_153], %379 {strides = array<i32>} : memref<8x128xi32, #tpu.memory_space<vmem>>, vector<1x128xi32>,
    %381 = vector.extract_strided_slice %199 {offsets = [7, 0], sizes = [1, 128], strides = [1, 1]} : vector<8x128xf32> to vector<1x128xf32>
    %382 = arith.addf %372, %381 : vector<1x128xf32>
    %383 = vector.extract_strided_slice %207 {offsets = [4, 0], sizes = [1, 128], strides = [1, 1]} : vector<8x128xf32> to vector<1x128xf32>
    %384 = arith.addf %382, %383 : vector<1x128xf32>
    %cst_154 = arith.constant dense<0xFF800000> : vector<1xf32>
    %385 = vector.multi_reduction <maximumf>, %384, %cst_154 [1] : vector<1x128xf32> to vector<1xf32>
    %386 = vector.shape_cast %385 : vector<1xf32> to vector<1x1xf32>
    %387 = vector.broadcast %386 : vector<1x1xf32> to vector<1x128xf32>
    %388 = arith.cmpf oeq, %384, %387 : vector<1x128xf32>
    %cst_155 = arith.constant 1.280000e+02 : f32
    %389 = vector.broadcast %cst_155 : f32 to vector<1x128xf32>
    %390 = arith.select %388, %212, %389 : vector<1x128xi1>, vector<1x128xf32>
    %cst_156 = arith.constant dense<0x7F800000> : vector<1xf32>
    %391 = vector.multi_reduction <minimumf>, %390, %cst_156 [1] : vector<1x128xf32> to vector<1xf32>
    %392 = vector.shape_cast %391 : vector<1xf32> to vector<1x1xf32>
    %393 = arith.fptosi %392 : vector<1x1xf32> to vector<1x1xi32>
    %c0_157 = arith.constant 0 : index
    %c0_158 = arith.constant 0 : index
    %394 = vector.load %arg12[%c0_157, %c0_158] : memref<1x1xi32, #tpu.memory_space<vmem>>, vector<1x1xi32>
    tpu.vector_store %arg12[%c0_157, %c0_158], %393 {strides = array<i32>} : memref<1x1xi32, #tpu.memory_space<vmem>>, vector<1x1xi32>,
    return
  }
}

</mosaic_0001>

<llo_original>
// kernel: tpu_custom_call.1
$region0: #{tpu_custom_call.1}
  #allocation0 [shape = 'u32[]', space=smem, size = 0x4, offset = 0x4, fixed_abs, tag = 'smem constant byte address 0x4 - core index']
  #allocation1 [shape = 'u32[144,128]{1,0:T(1,128)}', space=vmem, size = 0x12000, scoped, tag = 'internal scratch']
  #allocation2 [shape = 'f32[8,512]{1,0:T(8,128)}', space=vmem, size = 0x4000, scoped, tag = 'scratch operand']
  #allocation3 [shape = 'f32[8,256]{1,0:T(8,128)}', space=vmem, size = 0x2000, scoped, tag = 'scratch operand']
  %s0 = inlined_call_operand.hbm [shape: f32[8,256], index: 0, kind: input, shape index: {}]
  %s1 = inlined_call_operand.hbm [shape: f32[256,512], index: 1, kind: input, shape index: {}]
  %s2 = inlined_call_operand.hbm [shape: f32[1,512], index: 2, kind: input, shape index: {}]
  %s3 = inlined_call_operand.hbm [shape: f32[128,512], index: 3, kind: input, shape index: {}]
  %s4 = inlined_call_operand.vmem [shape: f32[1,128], index: 4, kind: input, shape index: {}]
  %s5 = inlined_call_operand.vmem [shape: f32[1,128], index: 5, kind: input, shape index: {}]
  %s6 = inlined_call_operand.hbm [shape: f32[256,128], index: 6, kind: input, shape index: {}]
  %s7 = inlined_call_operand.vmem [shape: f32[1,128], index: 7, kind: input, shape index: {}]
  %s8 = inlined_call_operand.vmem [shape: f32[8,128], index: 8, kind: input, shape index: {}]
  %s9 = inlined_call_operand.vmem [shape: f32[8,128], index: 9, kind: input, shape index: {}]
  %s10 = inlined_call_operand.hbm [shape: f32[8,128], index: 10, kind: output, shape index: {0}]
  %s11 = inlined_call_operand.hbm [shape: s32[8,128], index: 11, kind: output, shape index: {1}]
  %s12 = inlined_call_operand.hbm [shape: s32[1,1], index: 12, kind: output, shape index: {2}]
  %13 = xla_tuple %s10, %s11, %s12
  %s14 = sld [smem:[#allocation0]]
  $region86: #{tpu_custom_call.1} parent=0
    _
  %s16 = ssub.s32 1, %s14
  %s17 = scalar_select 0, %s16, %s14
  $region1: #{tpu_custom_call.1} parent=0
    #allocation4 [shape = 'u8[8192]{0}', space=vmem, size = 0x2000, scoped, tag = 'input window, operand 0, single buffered']
    #allocation5 [shape = 's32[1]{0}', space=sflag, size = 0x4, scoped, tag = 'scoped memory for tpu_custom_call.1']
    #allocation6 [shape = 's32[1]{0}', space=sflag, size = 0x4, scoped, tag = 'scoped memory for tpu_custom_call.1']
    #allocation7 [shape = 'u8[524288]{0}', space=vmem, size = 0x80000, scoped, tag = 'input window, operand 1, single buffered']
    #allocation8 [shape = 's32[1]{0}', space=sflag, size = 0x4, scoped, tag = 'scoped memory for tpu_custom_call.1']
    #allocation9 [shape = 'u8[2048]{0}', space=vmem, size = 0x800, scoped, tag = 'input window, operand 2, single buffered']
    #allocation10 [shape = 'u8[262144]{0}', space=vmem, size = 0x40000, scoped, tag = 'input window, operand 3, single buffered']
    #allocation11 [shape = 's32[1]{0}', space=sflag, size = 0x4, scoped, tag = 'scoped memory for tpu_custom_call.1']
    #allocation12 [shape = 'u8[131072]{0}', space=vmem, size = 0x20000, scoped, tag = 'input window, operand 6, single buffered']
    #allocation13 [shape = 'u8[4096]{0}', space=vmem, size = 0x1000, scoped, tag = 'output window, operand 0, single buffered']
    #allocation14 [shape = 'u8[4096]{0}', space=vmem, size = 0x1000, scoped, tag = 'output window, operand 1, single buffered']
    #allocation15 [shape = 's32[1]{0}', space=sflag, size = 0x4, scoped, tag = 'scoped memory for tpu_custom_call.1']
    #allocation16 [shape = 'u8[512]{0}', space=vmem, size = 0x400, scoped, tag = 'output window, operand 2, single buffered']
    %18 = vsyncpa [#allocation5], 0
    %19 = vsyncpa [#allocation8], 0
    %20 = vsyncpa [#allocation11], 0
    %21 = vsyncpa [#allocation6], 0
    %22 = vsyncpa [#allocation15], 0
    // Predicated region
    $region2: #{tpu_custom_call.1} parent=1 // pred_check
      _
    $region3: #{tpu_custom_call.1} parent=1 // pred_check_branch
      %24 = sbr.rel (0) target = $region5
    $region4: #{tpu_custom_call.1} parent=1 // pred_region
      %s26 = ssub.s32 256, 256
      %27 = vsyncadd [#allocation5], %s26
      %s29 = sshll.u32 [#allocation4], 4
      %s30 = int_to_ptr.vmem [resolvable:$true] %s29
      %32 = dma.hbm_to_vmem [thread:$0]  %s0, 256, %s30, [#allocation5]
    $region5: #{tpu_custom_call.1} parent=1 // pred_fallthru
      _
    // Predicated region
    $region6: #{tpu_custom_call.1} parent=1 // pred_check
      _
    $region7: #{tpu_custom_call.1} parent=1 // pred_check_branch
      %34 = sbr.rel (0) target = $region9
    $region8: #{tpu_custom_call.1} parent=1 // pred_region
      %s36 = ssub.s32 16384, 16384
      %37 = vsyncadd [#allocation8], %s36
      %s38 = sshll.u32 [#allocation7], 4
      %s39 = int_to_ptr.vmem [resolvable:$true] %s38
      %44 = dma.hbm_to_vmem [thread:$0]  %s1, 16384, %s39, [#allocation8], 512, 512, 32
    $region9: #{tpu_custom_call.1} parent=1 // pred_fallthru
      _
    // Predicated region
    $region10: #{tpu_custom_call.1} parent=1 // pred_check
      _
    $region11: #{tpu_custom_call.1} parent=1 // pred_check_branch
      %46 = sbr.rel (0) target = $region13
    $region12: #{tpu_custom_call.1} parent=1 // pred_region
      %s48 = ssub.s32 64, 64
      %49 = vsyncadd [#allocation8], %s48
      %s51 = sshll.u32 [#allocation9], 4
      %s52 = int_to_ptr.vmem [resolvable:$true] %s51
      %54 = dma.hbm_to_vmem [thread:$0]  %s2, 64, %s52, [#allocation8]
    $region13: #{tpu_custom_call.1} parent=1 // pred_fallthru
      _
    // Predicated region
    $region14: #{tpu_custom_call.1} parent=1 // pred_check
      _
    $region15: #{tpu_custom_call.1} parent=1 // pred_check_branch
      %56 = sbr.rel (0) target = $region17
    $region16: #{tpu_custom_call.1} parent=1 // pred_region
      %s58 = ssub.s32 8192, 8192
      %59 = vsyncadd [#allocation11], %s58
      %s60 = sshll.u32 [#allocation10], 4
      %s61 = int_to_ptr.vmem [resolvable:$true] %s60
      %66 = dma.hbm_to_vmem [thread:$0]  %s3, 8192, %s61, [#allocation11], 512, 512, 32
    $region17: #{tpu_custom_call.1} parent=1 // pred_fallthru
      _
    // Predicated region
    $region18: #{tpu_custom_call.1} parent=1 // pred_check
      _
    $region19: #{tpu_custom_call.1} parent=1 // pred_check_branch
      %68 = sbr.rel (0) target = $region21
    $region20: #{tpu_custom_call.1} parent=1 // pred_region
      _
    $region21: #{tpu_custom_call.1} parent=1 // pred_fallthru
      _
    // Predicated region
    $region22: #{tpu_custom_call.1} parent=1 // pred_check
      _
    $region23: #{tpu_custom_call.1} parent=1 // pred_check_branch
      %70 = sbr.rel (0) target = $region25
    $region24: #{tpu_custom_call.1} parent=1 // pred_region
      _
    $region25: #{tpu_custom_call.1} parent=1 // pred_fallthru
      _
    // Predicated region
    $region26: #{tpu_custom_call.1} parent=1 // pred_check
      _
    $region27: #{tpu_custom_call.1} parent=1 // pred_check_branch
      %72 = sbr.rel (0) target = $region29
    $region28: #{tpu_custom_call.1} parent=1 // pred_region
      %s74 = ssub.s32 4096, 4096
      %75 = vsyncadd [#allocation11], %s74
      %s76 = sshll.u32 [#allocation12], 4
      %s77 = int_to_ptr.vmem [resolvable:$true] %s76
      %82 = dma.hbm_to_vmem [thread:$0]  %s6, 4096, %s77, [#allocation11], 128, 128, 8
    $region29: #{tpu_custom_call.1} parent=1 // pred_fallthru
      _
    // Predicated region
    $region30: #{tpu_custom_call.1} parent=1 // pred_check
      _
    $region31: #{tpu_custom_call.1} parent=1 // pred_check_branch
      %84 = sbr.rel (0) target = $region33
    $region32: #{tpu_custom_call.1} parent=1 // pred_region
      _
    $region33: #{tpu_custom_call.1} parent=1 // pred_fallthru
      _
    // Predicated region
    $region34: #{tpu_custom_call.1} parent=1 // pred_check
      _
    $region35: #{tpu_custom_call.1} parent=1 // pred_check_branch
      %86 = sbr.rel (0) target = $region37
    $region36: #{tpu_custom_call.1} parent=1 // pred_region
      _
    $region37: #{tpu_custom_call.1} parent=1 // pred_fallthru
      _
    // Predicated region
    $region38: #{tpu_custom_call.1} parent=1 // pred_check
      _
    $region39: #{tpu_custom_call.1} parent=1 // pred_check_branch
      %88 = sbr.rel (0) target = $region41
    $region40: #{tpu_custom_call.1} parent=1 // pred_region
      _
    $region41: #{tpu_custom_call.1} parent=1 // pred_fallthru
      _
    // Predicated region
    $region42: #{tpu_custom_call.1} parent=1 // pred_check
      _
    $region43: #{tpu_custom_call.1} parent=1 // pred_check_branch
      %90 = sbr.rel (0) target = $region45
    $region44: #{tpu_custom_call.1} parent=1 // pred_region
      %91 = dma.done [#allocation5], 256
    $region45: #{tpu_custom_call.1} parent=1 // pred_fallthru
      _
    // Predicated region
    $region46: #{tpu_custom_call.1} parent=1 // pred_check
      _
    $region47: #{tpu_custom_call.1} parent=1 // pred_check_branch
      %93 = sbr.rel (0) target = $region49
    $region48: #{tpu_custom_call.1} parent=1 // pred_region
      %94 = dma.done [#allocation8], 16384
    $region49: #{tpu_custom_call.1} parent=1 // pred_fallthru
      _
    // Predicated region
    $region50: #{tpu_custom_call.1} parent=1 // pred_check
      _
    $region51: #{tpu_custom_call.1} parent=1 // pred_check_branch
      %96 = sbr.rel (0) target = $region53
    $region52: #{tpu_custom_call.1} parent=1 // pred_region
      %97 = dma.done [#allocation8], 64
    $region53: #{tpu_custom_call.1} parent=1 // pred_fallthru
      _
    // Predicated region
    $region54: #{tpu_custom_call.1} parent=1 // pred_check
      _
    $region55: #{tpu_custom_call.1} parent=1 // pred_check_branch
      %99 = sbr.rel (0) target = $region57
    $region56: #{tpu_custom_call.1} parent=1 // pred_region
      %100 = dma.done [#allocation11], 8192
    $region57: #{tpu_custom_call.1} parent=1 // pred_fallthru
      _
    // Predicated region
    $region58: #{tpu_custom_call.1} parent=1 // pred_check
      _
    $region59: #{tpu_custom_call.1} parent=1 // pred_check_branch
      %102 = sbr.rel (0) target = $region61
    $region60: #{tpu_custom_call.1} parent=1 // pred_region
      %103 = dma.done [#allocation11], 4096
    $region61: #{tpu_custom_call.1} parent=1 // pred_fallthru
      _
    %v104 = vld [vmem:[#allocation4] sm:$0xff]
    %v105 = vld [vmem:[#allocation4 + $0x8] sm:$0xff]
    %v106 = vld [vmem:[#allocation7] sm:$0xff]
    %v107 = vld [vmem:[#allocation7 + $0x8] sm:$0xff]
    %v108 = vld [vmem:[#allocation7 + $0x10] sm:$0xff]
    %v109 = vld [vmem:[#allocation7 + $0x18] sm:$0xff]
    %v110 = vld [vmem:[#allocation7 + $0x20] sm:$0xff]
    %v111 = vld [vmem:[#allocation7 + $0x28] sm:$0xff]
    %v112 = vld [vmem:[#allocation7 + $0x30] sm:$0xff]
    %v113 = vld [vmem:[#allocation7 + $0x38] sm:$0xff]
    %v114 = vld [vmem:[#allocation7 + $0x40] sm:$0xff]
    %v115 = vld [vmem:[#allocation7 + $0x48] sm:$0xff]
    %v116 = vld [vmem:[#allocation7 + $0x50] sm:$0xff]
    %v117 = vld [vmem:[#allocation7 + $0x58] sm:$0xff]
    %v118 = vld [vmem:[#allocation7 + $0x60] sm:$0xff]
    %v119 = vld [vmem:[#allocation7 + $0x68] sm:$0xff]
    %v120 = vld [vmem:[#allocation7 + $0x70] sm:$0xff]
    %v121 = vld [vmem:[#allocation7 + $0x78] sm:$0xff]
    %v122 = vld [vmem:[#allocation7 + $0x80] sm:$0xff]
    %v123 = vld [vmem:[#allocation7 + $0x88] sm:$0xff]
    %v124 = vld [vmem:[#allocation7 + $0x90] sm:$0xff]
    %v125 = vld [vmem:[#allocation7 + $0x98] sm:$0xff]
    %v126 = vld [vmem:[#allocation7 + $0xa0] sm:$0xff]
    %v127 = vld [vmem:[#allocation7 + $0xa8] sm:$0xff]
    %v128 = vld [vmem:[#allocation7 + $0xb0] sm:$0xff]
    %v129 = vld [vmem:[#allocation7 + $0xb8] sm:$0xff]
    %v130 = vld [vmem:[#allocation7 + $0xc0] sm:$0xff]
    %v131 = vld [vmem:[#allocation7 + $0xc8] sm:$0xff]
    %v132 = vld [vmem:[#allocation7 + $0xd0] sm:$0xff]
    %v133 = vld [vmem:[#allocation7 + $0xd8] sm:$0xff]
    %v134 = vld [vmem:[#allocation7 + $0xe0] sm:$0xff]
    %v135 = vld [vmem:[#allocation7 + $0xe8] sm:$0xff]
    %v136 = vld [vmem:[#allocation7 + $0xf0] sm:$0xff]
    %v137 = vld [vmem:[#allocation7 + $0xf8] sm:$0xff]
    %v138 = vld [vmem:[#allocation7 + $0x100] sm:$0xff]
    %v139 = vld [vmem:[#allocation7 + $0x108] sm:$0xff]
    %v140 = vld [vmem:[#allocation7 + $0x110] sm:$0xff]
    %v141 = vld [vmem:[#allocation7 + $0x118] sm:$0xff]
    %v142 = vld [vmem:[#allocation7 + $0x120] sm:$0xff]
    %v143 = vld [vmem:[#allocation7 + $0x128] sm:$0xff]
    %v144 = vld [vmem:[#allocation7 + $0x130] sm:$0xff]
    %v145 = vld [vmem:[#allocation7 + $0x138] sm:$0xff]
    %v146 = vld [vmem:[#allocation7 + $0x140] sm:$0xff]
    %v147 = vld [vmem:[#allocation7 + $0x148] sm:$0xff]
    %v148 = vld [vmem:[#allocation7 + $0x150] sm:$0xff]
    %v149 = vld [vmem:[#allocation7 + $0x158] sm:$0xff]
    %v150 = vld [vmem:[#allocation7 + $0x160] sm:$0xff]
    %v151 = vld [vmem:[#allocation7 + $0x168] sm:$0xff]
    %v152 = vld [vmem:[#allocation7 + $0x170] sm:$0xff]
    %v153 = vld [vmem:[#allocation7 + $0x178] sm:$0xff]
    %v154 = vld [vmem:[#allocation7 + $0x180] sm:$0xff]
    %v155 = vld [vmem:[#allocation7 + $0x188] sm:$0xff]
    %v156 = vld [vmem:[#allocation7 + $0x190] sm:$0xff]
    %v157 = vld [vmem:[#allocation7 + $0x198] sm:$0xff]
    %v158 = vld [vmem:[#allocation7 + $0x1a0] sm:$0xff]
    %v159 = vld [vmem:[#allocation7 + $0x1a8] sm:$0xff]
    %v160 = vld [vmem:[#allocation7 + $0x1b0] sm:$0xff]
    %v161 = vld [vmem:[#allocation7 + $0x1b8] sm:$0xff]
    %v162 = vld [vmem:[#allocation7 + $0x1c0] sm:$0xff]
    %v163 = vld [vmem:[#allocation7 + $0x1c8] sm:$0xff]
    %v164 = vld [vmem:[#allocation7 + $0x1d0] sm:$0xff]
    %v165 = vld [vmem:[#allocation7 + $0x1d8] sm:$0xff]
    %v166 = vld [vmem:[#allocation7 + $0x1e0] sm:$0xff]
    %v167 = vld [vmem:[#allocation7 + $0x1e8] sm:$0xff]
    %v168 = vld [vmem:[#allocation7 + $0x1f0] sm:$0xff]
    %v169 = vld [vmem:[#allocation7 + $0x1f8] sm:$0xff]
    %v170 = vld [vmem:[#allocation7 + $0x200] sm:$0xff]
    %v171 = vld [vmem:[#allocation7 + $0x208] sm:$0xff]
    %v172 = vld [vmem:[#allocation7 + $0x210] sm:$0xff]
    %v173 = vld [vmem:[#allocation7 + $0x218] sm:$0xff]
    %v174 = vld [vmem:[#allocation7 + $0x220] sm:$0xff]
    %v175 = vld [vmem:[#allocation7 + $0x228] sm:$0xff]
    %v176 = vld [vmem:[#allocation7 + $0x230] sm:$0xff]
    %v177 = vld [vmem:[#allocation7 + $0x238] sm:$0xff]
    %v178 = vld [vmem:[#allocation7 + $0x240] sm:$0xff]
    %v179 = vld [vmem:[#allocation7 + $0x248] sm:$0xff]
    %v180 = vld [vmem:[#allocation7 + $0x250] sm:$0xff]
    %v181 = vld [vmem:[#allocation7 + $0x258] sm:$0xff]
    %v182 = vld [vmem:[#allocation7 + $0x260] sm:$0xff]
    %v183 = vld [vmem:[#allocation7 + $0x268] sm:$0xff]
    %v184 = vld [vmem:[#allocation7 + $0x270] sm:$0xff]
    %v185 = vld [vmem:[#allocation7 + $0x278] sm:$0xff]
    %v186 = vld [vmem:[#allocation7 + $0x280] sm:$0xff]
    %v187 = vld [vmem:[#allocation7 + $0x288] sm:$0xff]
    %v188 = vld [vmem:[#allocation7 + $0x290] sm:$0xff]
    %v189 = vld [vmem:[#allocation7 + $0x298] sm:$0xff]
    %v190 = vld [vmem:[#allocation7 + $0x2a0] sm:$0xff]
    %v191 = vld [vmem:[#allocation7 + $0x2a8] sm:$0xff]
    %v192 = vld [vmem:[#allocation7 + $0x2b0] sm:$0xff]
    %v193 = vld [vmem:[#allocation7 + $0x2b8] sm:$0xff]
    %v194 = vld [vmem:[#allocation7 + $0x2c0] sm:$0xff]
    %v195 = vld [vmem:[#allocation7 + $0x2c8] sm:$0xff]
    %v196 = vld [vmem:[#allocation7 + $0x2d0] sm:$0xff]
    %v197 = vld [vmem:[#allocation7 + $0x2d8] sm:$0xff]
    %v198 = vld [vmem:[#allocation7 + $0x2e0] sm:$0xff]
    %v199 = vld [vmem:[#allocation7 + $0x2e8] sm:$0xff]
    %v200 = vld [vmem:[#allocation7 + $0x2f0] sm:$0xff]
    %v201 = vld [vmem:[#allocation7 + $0x2f8] sm:$0xff]
    %v202 = vld [vmem:[#allocation7 + $0x300] sm:$0xff]
    %v203 = vld [vmem:[#allocation7 + $0x308] sm:$0xff]
    %v204 = vld [vmem:[#allocation7 + $0x310] sm:$0xff]
    %v205 = vld [vmem:[#allocation7 + $0x318] sm:$0xff]
    %v206 = vld [vmem:[#allocation7 + $0x320] sm:$0xff]
    %v207 = vld [vmem:[#allocation7 + $0x328] sm:$0xff]
    %v208 = vld [vmem:[#allocation7 + $0x330] sm:$0xff]
    %v209 = vld [vmem:[#allocation7 + $0x338] sm:$0xff]
    %v210 = vld [vmem:[#allocation7 + $0x340] sm:$0xff]
    %v211 = vld [vmem:[#allocation7 + $0x348] sm:$0xff]
    %v212 = vld [vmem:[#allocation7 + $0x350] sm:$0xff]
    %v213 = vld [vmem:[#allocation7 + $0x358] sm:$0xff]
    %v214 = vld [vmem:[#allocation7 + $0x360] sm:$0xff]
    %v215 = vld [vmem:[#allocation7 + $0x368] sm:$0xff]
    %v216 = vld [vmem:[#allocation7 + $0x370] sm:$0xff]
    %v217 = vld [vmem:[#allocation7 + $0x378] sm:$0xff]
    %v218 = vld [vmem:[#allocation7 + $0x380] sm:$0xff]
    %v219 = vld [vmem:[#allocation7 + $0x388] sm:$0xff]
    %v220 = vld [vmem:[#allocation7 + $0x390] sm:$0xff]
    %v221 = vld [vmem:[#allocation7 + $0x398] sm:$0xff]
    %v222 = vld [vmem:[#allocation7 + $0x3a0] sm:$0xff]
    %v223 = vld [vmem:[#allocation7 + $0x3a8] sm:$0xff]
    %v224 = vld [vmem:[#allocation7 + $0x3b0] sm:$0xff]
    %v225 = vld [vmem:[#allocation7 + $0x3b8] sm:$0xff]
    %v226 = vld [vmem:[#allocation7 + $0x3c0] sm:$0xff]
    %v227 = vld [vmem:[#allocation7 + $0x3c8] sm:$0xff]
    %v228 = vld [vmem:[#allocation7 + $0x3d0] sm:$0xff]
    %v229 = vld [vmem:[#allocation7 + $0x3d8] sm:$0xff]
    %v230 = vld [vmem:[#allocation7 + $0x3e0] sm:$0xff]
    %v231 = vld [vmem:[#allocation7 + $0x3e8] sm:$0xff]
    %v232 = vld [vmem:[#allocation7 + $0x3f0] sm:$0xff]
    %v233 = vld [vmem:[#allocation7 + $0x3f8] sm:$0xff]
    %v234 = vld [vmem:[#allocation9] sm:$0xf]
    %v236 = vlaneseq
    %v237 = vshrl.u32 %v236, 7
    %v238 = vsub.s32 0, %v237
    %v239 = vrot.slane %v234, %v238
    %v240 = vlaneseq
    %v241 = vshrl.u32 %v240, 7
    %v242 = vsub.s32 1, %v241
    %v243 = vrot.slane %v234, %v242
    %v244 = vlaneseq
    %v245 = vshrl.u32 %v244, 7
    %v246 = vsub.s32 2, %v245
    %v247 = vrot.slane %v234, %v246
    %v248 = vlaneseq
    %v249 = vshrl.u32 %v248, 7
    %v250 = vsub.s32 3, %v249
    %v251 = vrot.slane %v234, %v250
    %256 = vmatprep.subr.mxu0 %v107
    %257 = vmatpush1.msra.mxu0 %v106
    %258 = vmatprep.subr.mxu0 %v111
    %259 = vmatpush1.msra.mxu0 %v110
    %260 = vmatprep.subr.mxu0 %v115
    %261 = vmatpush1.msra.mxu0 %v114
    %262 = vmatprep.subr.mxu0 %v119
    %263 = vmatpush1.msra.mxu0 %v118
    %264 = vmatprep.subr.mxu0 %v123
    %265 = vmatpush1.msra.mxu0 %v122
    %266 = vmatprep.subr.mxu0 %v127
    %267 = vmatpush1.msra.mxu0 %v126
    %268 = vmatprep.subr.mxu0 %v131
    %269 = vmatpush1.msra.mxu0 %v130
    %270 = vmatprep.subr.mxu0 %v135
    %271 = vmatpush1.msra.mxu0 %v134
    %272 = vmatprep.subr.mxu0 %v139
    %273 = vmatpush1.msra.mxu0 %v138
    %274 = vmatprep.subr.mxu0 %v143
    %275 = vmatpush1.msra.mxu0 %v142
    %276 = vmatprep.subr.mxu0 %v147
    %277 = vmatpush1.msra.mxu0 %v146
    %278 = vmatprep.subr.mxu0 %v151
    %279 = vmatpush1.msra.mxu0 %v150
    %280 = vmatprep.subr.mxu0 %v155
    %281 = vmatpush1.msra.mxu0 %v154
    %282 = vmatprep.subr.mxu0 %v159
    %283 = vmatpush1.msra.mxu0 %v158
    %284 = vmatprep.subr.mxu0 %v163
    %285 = vmatpush1.msra.mxu0 %v162
    %286 = vmatprep.subr.mxu0 %v167
    %287 = vmatpush1.msra.mxu0 %v166
    %288 = vmatprep.subr.mxu0 %v171
    %289 = vmatpush1.msra.mxu0 %v170
    %290 = vmatprep.subr.mxu0 %v175
    %291 = vmatpush1.msra.mxu0 %v174
    %292 = vmatprep.subr.mxu0 %v179
    %293 = vmatpush1.msra.mxu0 %v178
    %294 = vmatprep.subr.mxu0 %v183
    %295 = vmatpush1.msra.mxu0 %v182
    %296 = vmatprep.subr.mxu0 %v187
    %297 = vmatpush1.msra.mxu0 %v186
    %298 = vmatprep.subr.mxu0 %v191
    %299 = vmatpush1.msra.mxu0 %v190
    %300 = vmatprep.subr.mxu0 %v195
    %301 = vmatpush1.msra.mxu0 %v194
    %302 = vmatprep.subr.mxu0 %v199
    %303 = vmatpush1.msra.mxu0 %v198
    %304 = vmatprep.subr.mxu0 %v203
    %305 = vmatpush1.msra.mxu0 %v202
    %306 = vmatprep.subr.mxu0 %v207
    %307 = vmatpush1.msra.mxu0 %v206
    %308 = vmatprep.subr.mxu0 %v211
    %309 = vmatpush1.msra.mxu0 %v210
    %310 = vmatprep.subr.mxu0 %v215
    %311 = vmatpush1.msra.mxu0 %v214
    %312 = vmatprep.subr.mxu0 %v219
    %313 = vmatpush1.msra.mxu0 %v218
    %314 = vmatprep.subr.mxu0 %v223
    %315 = vmatpush1.msra.mxu0 %v222
    %316 = vmatprep.subr.mxu0 %v227
    %317 = vmatpush1.msra.mxu0 %v226
    %318 = vmatprep.subr.mxu0 %v231
    %319 = vmatpush1.msra.mxu0 %v230
    %320 = vmatprep.mubr.f32.mxu0 %v105
    %321 = vmatmul.mubr.f32.gmra.mrb[0].mxu0 %v104
    %v322 = vpop.f32.mrb[0].mxu0
    %v323 = vadd.f32 %v239, %v322
    %v324 = vpop.f32.mrb[0].mxu0
    %v325 = vadd.f32 %v243, %v324
    %326 = vdwg.mxu0
    %327 = vmatprep.subr.mxu0 %v109
    %328 = vmatpush1.msra.mxu0 %v108
    %329 = vmatprep.subr.mxu0 %v113
    %330 = vmatpush1.msra.mxu0 %v112
    %331 = vmatprep.subr.mxu0 %v117
    %332 = vmatpush1.msra.mxu0 %v116
    %333 = vmatprep.subr.mxu0 %v121
    %334 = vmatpush1.msra.mxu0 %v120
    %335 = vmatprep.subr.mxu0 %v125
    %336 = vmatpush1.msra.mxu0 %v124
    %337 = vmatprep.subr.mxu0 %v129
    %338 = vmatpush1.msra.mxu0 %v128
    %339 = vmatprep.subr.mxu0 %v133
    %340 = vmatpush1.msra.mxu0 %v132
    %341 = vmatprep.subr.mxu0 %v137
    %342 = vmatpush1.msra.mxu0 %v136
    %343 = vmatprep.subr.mxu0 %v141
    %344 = vmatpush1.msra.mxu0 %v140
    %345 = vmatprep.subr.mxu0 %v145
    %346 = vmatpush1.msra.mxu0 %v144
    %347 = vmatprep.subr.mxu0 %v149
    %348 = vmatpush1.msra.mxu0 %v148
    %349 = vmatprep.subr.mxu0 %v153
    %350 = vmatpush1.msra.mxu0 %v152
    %351 = vmatprep.subr.mxu0 %v157
    %352 = vmatpush1.msra.mxu0 %v156
    %353 = vmatprep.subr.mxu0 %v161
    %354 = vmatpush1.msra.mxu0 %v160
    %355 = vmatprep.subr.mxu0 %v165
    %356 = vmatpush1.msra.mxu0 %v164
    %357 = vmatprep.subr.mxu0 %v169
    %358 = vmatpush1.msra.mxu0 %v168
    %359 = vmatprep.subr.mxu0 %v173
    %360 = vmatpush1.msra.mxu0 %v172
    %361 = vmatprep.subr.mxu0 %v177
    %362 = vmatpush1.msra.mxu0 %v176
    %363 = vmatprep.subr.mxu0 %v181
    %364 = vmatpush1.msra.mxu0 %v180
    %365 = vmatprep.subr.mxu0 %v185
    %366 = vmatpush1.msra.mxu0 %v184
    %367 = vmatprep.subr.mxu0 %v189
    %368 = vmatpush1.msra.mxu0 %v188
    %369 = vmatprep.subr.mxu0 %v193
    %370 = vmatpush1.msra.mxu0 %v192
    %371 = vmatprep.subr.mxu0 %v197
    %372 = vmatpush1.msra.mxu0 %v196
    %373 = vmatprep.subr.mxu0 %v201
    %374 = vmatpush1.msra.mxu0 %v200
    %375 = vmatprep.subr.mxu0 %v205
    %376 = vmatpush1.msra.mxu0 %v204
    %377 = vmatprep.subr.mxu0 %v209
    %378 = vmatpush1.msra.mxu0 %v208
    %379 = vmatprep.subr.mxu0 %v213
    %380 = vmatpush1.msra.mxu0 %v212
    %381 = vmatprep.subr.mxu0 %v217
    %382 = vmatpush1.msra.mxu0 %v216
    %383 = vmatprep.subr.mxu0 %v221
    %384 = vmatpush1.msra.mxu0 %v220
    %385 = vmatprep.subr.mxu0 %v225
    %386 = vmatpush1.msra.mxu0 %v224
    %387 = vmatprep.subr.mxu0 %v229
    %388 = vmatpush1.msra.mxu0 %v228
    %389 = vmatprep.subr.mxu0 %v233
    %390 = vmatpush1.msra.mxu0 %v232
    %391 = vmatprep.mubr.f32.mxu0 %v105
    %392 = vmatmul.mubr.f32.gmra.mrb[0].mxu0 %v104
    %v393 = vpop.f32.mrb[0].mxu0
    %v394 = vadd.f32 %v247, %v393
    %v395 = vpop.f32.mrb[0].mxu0
    %v396 = vadd.f32 %v251, %v395
    %397 = vdwg.mxu0
    %398 = vst [vmem:[#allocation2] sm:$0xff] %v323
    %399 = vst [vmem:[#allocation2 + $0x8] sm:$0xff] %v325
    %400 = vst [vmem:[#allocation2 + $0x10] sm:$0xff] %v394
    %401 = vst [vmem:[#allocation2 + $0x18] sm:$0xff] %v396
    %v402 = vld [vmem:[#allocation10] sm:$0xff]
    %v403 = vld [vmem:[#allocation10 + $0x8] sm:$0xff]
    %v404 = vld [vmem:[#allocation10 + $0x10] sm:$0xff]
    %v405 = vld [vmem:[#allocation10 + $0x18] sm:$0xff]
    %v406 = vld [vmem:[#allocation10 + $0x20] sm:$0xff]
    %v407 = vld [vmem:[#allocation10 + $0x28] sm:$0xff]
    %v408 = vld [vmem:[#allocation10 + $0x30] sm:$0xff]
    %v409 = vld [vmem:[#allocation10 + $0x38] sm:$0xff]
    %v410 = vld [vmem:[#allocation10 + $0x40] sm:$0xff]
    %v411 = vld [vmem:[#allocation10 + $0x48] sm:$0xff]
    %v412 = vld [vmem:[#allocation10 + $0x50] sm:$0xff]
    %v413 = vld [vmem:[#allocation10 + $0x58] sm:$0xff]
    %v414 = vld [vmem:[#allocation10 + $0x60] sm:$0xff]
    %v415 = vld [vmem:[#allocation10 + $0x68] sm:$0xff]
    %v416 = vld [vmem:[#allocation10 + $0x70] sm:$0xff]
    %v417 = vld [vmem:[#allocation10 + $0x78] sm:$0xff]
    %v418 = vld [vmem:[#allocation10 + $0x80] sm:$0xff]
    %v419 = vld [vmem:[#allocation10 + $0x88] sm:$0xff]
    %v420 = vld [vmem:[#allocation10 + $0x90] sm:$0xff]
    %v421 = vld [vmem:[#allocation10 + $0x98] sm:$0xff]
    %v422 = vld [vmem:[#allocation10 + $0xa0] sm:$0xff]
    %v423 = vld [vmem:[#allocation10 + $0xa8] sm:$0xff]
    %v424 = vld [vmem:[#allocation10 + $0xb0] sm:$0xff]
    %v425 = vld [vmem:[#allocation10 + $0xb8] sm:$0xff]
    %v426 = vld [vmem:[#allocation10 + $0xc0] sm:$0xff]
    %v427 = vld [vmem:[#allocation10 + $0xc8] sm:$0xff]
    %v428 = vld [vmem:[#allocation10 + $0xd0] sm:$0xff]
    %v429 = vld [vmem:[#allocation10 + $0xd8] sm:$0xff]
    %v430 = vld [vmem:[#allocation10 + $0xe0] sm:$0xff]
    %v431 = vld [vmem:[#allocation10 + $0xe8] sm:$0xff]
    %v432 = vld [vmem:[#allocation10 + $0xf0] sm:$0xff]
    %v433 = vld [vmem:[#allocation10 + $0xf8] sm:$0xff]
    %v434 = vld [vmem:[#allocation10 + $0x100] sm:$0xff]
    %v435 = vld [vmem:[#allocation10 + $0x108] sm:$0xff]
    %v436 = vld [vmem:[#allocation10 + $0x110] sm:$0xff]
    %v437 = vld [vmem:[#allocation10 + $0x118] sm:$0xff]
    %v438 = vld [vmem:[#allocation10 + $0x120] sm:$0xff]
    %v439 = vld [vmem:[#allocation10 + $0x128] sm:$0xff]
    %v440 = vld [vmem:[#allocation10 + $0x130] sm:$0xff]
    %v441 = vld [vmem:[#allocation10 + $0x138] sm:$0xff]
    %v442 = vld [vmem:[#allocation10 + $0x140] sm:$0xff]
    %v443 = vld [vmem:[#allocation10 + $0x148] sm:$0xff]
    %v444 = vld [vmem:[#allocation10 + $0x150] sm:$0xff]
    %v445 = vld [vmem:[#allocation10 + $0x158] sm:$0xff]
    %v446 = vld [vmem:[#allocation10 + $0x160] sm:$0xff]
    %v447 = vld [vmem:[#allocation10 + $0x168] sm:$0xff]
    %v448 = vld [vmem:[#allocation10 + $0x170] sm:$0xff]
    %v449 = vld [vmem:[#allocation10 + $0x178] sm:$0xff]
    %v450 = vld [vmem:[#allocation10 + $0x180] sm:$0xff]
    %v451 = vld [vmem:[#allocation10 + $0x188] sm:$0xff]
    %v452 = vld [vmem:[#allocation10 + $0x190] sm:$0xff]
    %v453 = vld [vmem:[#allocation10 + $0x198] sm:$0xff]
    %v454 = vld [vmem:[#allocation10 + $0x1a0] sm:$0xff]
    %v455 = vld [vmem:[#allocation10 + $0x1a8] sm:$0xff]
    %v456 = vld [vmem:[#allocation10 + $0x1b0] sm:$0xff]
    %v457 = vld [vmem:[#allocation10 + $0x1b8] sm:$0xff]
    %v458 = vld [vmem:[#allocation10 + $0x1c0] sm:$0xff]
    %v459 = vld [vmem:[#allocation10 + $0x1c8] sm:$0xff]
    %v460 = vld [vmem:[#allocation10 + $0x1d0] sm:$0xff]
    %v461 = vld [vmem:[#allocation10 + $0x1d8] sm:$0xff]
    %v462 = vld [vmem:[#allocation10 + $0x1e0] sm:$0xff]
    %v463 = vld [vmem:[#allocation10 + $0x1e8] sm:$0xff]
    %v464 = vld [vmem:[#allocation10 + $0x1f0] sm:$0xff]
    %v465 = vld [vmem:[#allocation10 + $0x1f8] sm:$0xff]
    %v466 = vld [vmem:[%s4] sm:$0x1]
    %v467 = vld [vmem:[%s5] sm:$0x1]
    %v468 = vld [vmem:[#allocation2] ss:$8 sm:$0xf]
    %469 = vmatprep.subr.mxu0 %v403
    %470 = vmatpush1.msra.mxu0 %v402
    %471 = vmatprep.subr.mxu0 %v407
    %472 = vmatpush1.msra.mxu0 %v406
    %473 = vmatprep.subr.mxu0 %v411
    %474 = vmatpush1.msra.mxu0 %v410
    %475 = vmatprep.subr.mxu0 %v415
    %476 = vmatpush1.msra.mxu0 %v414
    %477 = vmatprep.subr.mxu0 %v419
    %478 = vmatpush1.msra.mxu0 %v418
    %479 = vmatprep.subr.mxu0 %v423
    %480 = vmatpush1.msra.mxu0 %v422
    %481 = vmatprep.subr.mxu0 %v427
    %482 = vmatpush1.msra.mxu0 %v426
    %483 = vmatprep.subr.mxu0 %v431
    %484 = vmatpush1.msra.mxu0 %v430
    %485 = vmatprep.subr.mxu0 %v435
    %486 = vmatpush1.msra.mxu0 %v434
    %487 = vmatprep.subr.mxu0 %v439
    %488 = vmatpush1.msra.mxu0 %v438
    %489 = vmatprep.subr.mxu0 %v443
    %490 = vmatpush1.msra.mxu0 %v442
    %491 = vmatprep.subr.mxu0 %v447
    %492 = vmatpush1.msra.mxu0 %v446
    %493 = vmatprep.subr.mxu0 %v451
    %494 = vmatpush1.msra.mxu0 %v450
    %495 = vmatprep.subr.mxu0 %v455
    %496 = vmatpush1.msra.mxu0 %v454
    %497 = vmatprep.subr.mxu0 %v459
    %498 = vmatpush1.msra.mxu0 %v458
    %499 = vmatprep.subr.mxu0 %v463
    %500 = vmatpush1.msra.mxu0 %v462
    %501 = vmatprep.subr.mxu0 0.0
    %502 = vmatpush1.msra.mxu0 0.0
    %503 = vmatprep.subr.mxu0 0.0
    %504 = vmatpush1.msra.mxu0 0.0
    %505 = vmatprep.subr.mxu0 0.0
    %506 = vmatpush1.msra.mxu0 0.0
    %507 = vmatprep.subr.mxu0 0.0
    %508 = vmatpush1.msra.mxu0 0.0
    %509 = vmatprep.subr.mxu0 0.0
    %510 = vmatpush1.msra.mxu0 0.0
    %511 = vmatprep.subr.mxu0 0.0
    %512 = vmatpush1.msra.mxu0 0.0
    %513 = vmatprep.subr.mxu0 0.0
    %514 = vmatpush1.msra.mxu0 0.0
    %515 = vmatprep.subr.mxu0 0.0
    %516 = vmatpush1.msra.mxu0 0.0
    %517 = vmatprep.subr.mxu0 0.0
    %518 = vmatpush1.msra.mxu0 0.0
    %519 = vmatprep.subr.mxu0 0.0
    %520 = vmatpush1.msra.mxu0 0.0
    %521 = vmatprep.subr.mxu0 0.0
    %522 = vmatpush1.msra.mxu0 0.0
    %523 = vmatprep.subr.mxu0 0.0
    %524 = vmatpush1.msra.mxu0 0.0
    %525 = vmatprep.subr.mxu0 0.0
    %526 = vmatpush1.msra.mxu0 0.0
    %527 = vmatprep.subr.mxu0 0.0
    %528 = vmatpush1.msra.mxu0 0.0
    %529 = vmatprep.subr.mxu0 0.0
    %530 = vmatpush1.msra.mxu0 0.0
    %531 = vmatprep.subr.mxu0 0.0
    %532 = vmatpush1.msra.mxu0 0.0
    %533 = vmatprep.mubr.f32.mxu0 0.0
    %534 = vmatmul.mubr.f32.gmra.mrb[0].mxu0 %v466
    %v535 = vpop.f32.mrb[0].mxu0
    %v536 = vadd.f32 0.0, %v535
    %v537 = vpop.f32.mrb[0].mxu0
    %v538 = vadd.f32 0.0, %v537
    %539 = vdwg.mxu0
    %540 = vmatprep.subr.mxu0 %v405
    %541 = vmatpush1.msra.mxu0 %v404
    %542 = vmatprep.subr.mxu0 %v409
    %543 = vmatpush1.msra.mxu0 %v408
    %544 = vmatprep.subr.mxu0 %v413
    %545 = vmatpush1.msra.mxu0 %v412
    %546 = vmatprep.subr.mxu0 %v417
    %547 = vmatpush1.msra.mxu0 %v416
    %548 = vmatprep.subr.mxu0 %v421
    %549 = vmatpush1.msra.mxu0 %v420
    %550 = vmatprep.subr.mxu0 %v425
    %551 = vmatpush1.msra.mxu0 %v424
    %552 = vmatprep.subr.mxu0 %v429
    %553 = vmatpush1.msra.mxu0 %v428
    %554 = vmatprep.subr.mxu0 %v433
    %555 = vmatpush1.msra.mxu0 %v432
    %556 = vmatprep.subr.mxu0 %v437
    %557 = vmatpush1.msra.mxu0 %v436
    %558 = vmatprep.subr.mxu0 %v441
    %559 = vmatpush1.msra.mxu0 %v440
    %560 = vmatprep.subr.mxu0 %v445
    %561 = vmatpush1.msra.mxu0 %v444
    %562 = vmatprep.subr.mxu0 %v449
    %563 = vmatpush1.msra.mxu0 %v448
    %564 = vmatprep.subr.mxu0 %v453
    %565 = vmatpush1.msra.mxu0 %v452
    %566 = vmatprep.subr.mxu0 %v457
    %567 = vmatpush1.msra.mxu0 %v456
    %568 = vmatprep.subr.mxu0 %v461
    %569 = vmatpush1.msra.mxu0 %v460
    %570 = vmatprep.subr.mxu0 %v465
    %571 = vmatpush1.msra.mxu0 %v464
    %572 = vmatprep.subr.mxu0 0.0
    %573 = vmatpush1.msra.mxu0 0.0
    %574 = vmatprep.subr.mxu0 0.0
    %575 = vmatpush1.msra.mxu0 0.0
    %576 = vmatprep.subr.mxu0 0.0
    %577 = vmatpush1.msra.mxu0 0.0
    %578 = vmatprep.subr.mxu0 0.0
    %579 = vmatpush1.msra.mxu0 0.0
    %580 = vmatprep.subr.mxu0 0.0
    %581 = vmatpush1.msra.mxu0 0.0
    %582 = vmatprep.subr.mxu0 0.0
    %583 = vmatpush1.msra.mxu0 0.0
    %584 = vmatprep.subr.mxu0 0.0
    %585 = vmatpush1.msra.mxu0 0.0
    %586 = vmatprep.subr.mxu0 0.0
    %587 = vmatpush1.msra.mxu0 0.0
    %588 = vmatprep.subr.mxu0 0.0
    %589 = vmatpush1.msra.mxu0 0.0
    %590 = vmatprep.subr.mxu0 0.0
    %591 = vmatpush1.msra.mxu0 0.0
    %592 = vmatprep.subr.mxu0 0.0
    %593 = vmatpush1.msra.mxu0 0.0
    %594 = vmatprep.subr.mxu0 0.0
    %595 = vmatpush1.msra.mxu0 0.0
    %596 = vmatprep.subr.mxu0 0.0
    %597 = vmatpush1.msra.mxu0 0.0
    %598 = vmatprep.subr.mxu0 0.0
    %599 = vmatpush1.msra.mxu0 0.0
    %600 = vmatprep.subr.mxu0 0.0
    %601 = vmatpush1.msra.mxu0 0.0
    %602 = vmatprep.subr.mxu0 0.0
    %603 = vmatpush1.msra.mxu0 0.0
    %604 = vmatprep.mubr.f32.mxu0 0.0
    %605 = vmatmul.mubr.f32.gmra.mrb[0].mxu0 %v466
    %v606 = vpop.f32.mrb[0].mxu0
    %v607 = vadd.f32 0.0, %v606
    %v608 = vpop.f32.mrb[0].mxu0
    %v609 = vadd.f32 0.0, %v608
    %610 = vdwg.mxu0
    %v615 = vcombine.low %v536, %v538
    %v616 = vcombine.low %v607, %v609
    %v618 = vunpack.c.l.s4 1966171168
    %v619 = vunpack.c.0.s8 %v618
    %v620 = vlaneseq
    %v621 = vshrl.u32 %v620, 7
    %v622 = vsub.s32 %v619, %v621
    %v623 = vrot.slane %v615, %v622
    %v625 = vunpack.c.l.s4 1966171168
    %v626 = vunpack.c.0.s8 %v625
    %v627 = vlaneseq
    %v628 = vshrl.u32 %v627, 7
    %v629 = vsub.s32 %v626, %v628
    %v630 = vrot.slane %v616, %v629
    %v631 = vcombine.low %v623, %v630
    %v633 = vunpack.c.l.s4 1966171168
    %v634 = vunpack.c.0.s8 %v633
    %v635 = vlaneseq
    %v636 = vshrl.u32 %v635, 7
    %v637 = vsub.s32 %v634, %v636
    %v638 = vrot.slane %v631, %v637
    %v640 = vadd.f32 %v468, %v638
    %v641 = vsub.f32 0.0, %v640
    %v642 = vmul.f32 %v641, 1.442695
    %v643 = vpow.pop %v642
    %v644 = vadd.f32 %v643, 1.0
    %v645 = vrcp.pop %v644
    %v646 = vmul.f32 1.0, %v645
    %v648 = vrot.slane %v640, 3
    %v650 = vtanh.pop %v648
    %v652 = vrot.slane %v646, 1
    %v654 = vmul.f32 %v652, %v467
    %v655 = vmul.f32 %v646, %v650
    %v656 = vadd.f32 %v654, %v655
    %v657 = vtanh.pop %v656
    %v658 = vrot.slane %v646, 2
    %v660 = vmul.f32 %v658, %v657
    %661 = vst [vmem:[#allocation3] sm:$0x1] %v660
    %662 = vst [vmem:[#allocation3 + $0xf] sm:$0x1] %v660
    %s663 = scalar_lea.vmem [#allocation2], 1
    %v664 = vld [vmem:[%s663] ss:$8 sm:$0xf]
    %665 = vmatprep.subr.mxu0 %v403
    %666 = vmatpush1.msra.mxu0 %v402
    %667 = vmatprep.subr.mxu0 %v407
    %668 = vmatpush1.msra.mxu0 %v406
    %669 = vmatprep.subr.mxu0 %v411
    %670 = vmatpush1.msra.mxu0 %v410
    %671 = vmatprep.subr.mxu0 %v415
    %672 = vmatpush1.msra.mxu0 %v414
    %673 = vmatprep.subr.mxu0 %v419
    %674 = vmatpush1.msra.mxu0 %v418
    %675 = vmatprep.subr.mxu0 %v423
    %676 = vmatpush1.msra.mxu0 %v422
    %677 = vmatprep.subr.mxu0 %v427
    %678 = vmatpush1.msra.mxu0 %v426
    %679 = vmatprep.subr.mxu0 %v431
    %680 = vmatpush1.msra.mxu0 %v430
    %681 = vmatprep.subr.mxu0 %v435
    %682 = vmatpush1.msra.mxu0 %v434
    %683 = vmatprep.subr.mxu0 %v439
    %684 = vmatpush1.msra.mxu0 %v438
    %685 = vmatprep.subr.mxu0 %v443
    %686 = vmatpush1.msra.mxu0 %v442
    %687 = vmatprep.subr.mxu0 %v447
    %688 = vmatpush1.msra.mxu0 %v446
    %689 = vmatprep.subr.mxu0 %v451
    %690 = vmatpush1.msra.mxu0 %v450
    %691 = vmatprep.subr.mxu0 %v455
    %692 = vmatpush1.msra.mxu0 %v454
    %693 = vmatprep.subr.mxu0 %v459
    %694 = vmatpush1.msra.mxu0 %v458
    %695 = vmatprep.subr.mxu0 %v463
    %696 = vmatpush1.msra.mxu0 %v462
    %697 = vmatprep.subr.mxu0 0.0
    %698 = vmatpush1.msra.mxu0 0.0
    %699 = vmatprep.subr.mxu0 0.0
    %700 = vmatpush1.msra.mxu0 0.0
    %701 = vmatprep.subr.mxu0 0.0
    %702 = vmatpush1.msra.mxu0 0.0
    %703 = vmatprep.subr.mxu0 0.0
    %704 = vmatpush1.msra.mxu0 0.0
    %705 = vmatprep.subr.mxu0 0.0
    %706 = vmatpush1.msra.mxu0 0.0
    %707 = vmatprep.subr.mxu0 0.0
    %708 = vmatpush1.msra.mxu0 0.0
    %709 = vmatprep.subr.mxu0 0.0
    %710 = vmatpush1.msra.mxu0 0.0
    %711 = vmatprep.subr.mxu0 0.0
    %712 = vmatpush1.msra.mxu0 0.0
    %713 = vmatprep.subr.mxu0 0.0
    %714 = vmatpush1.msra.mxu0 0.0
    %715 = vmatprep.subr.mxu0 0.0
    %716 = vmatpush1.msra.mxu0 0.0
    %717 = vmatprep.subr.mxu0 0.0
    %718 = vmatpush1.msra.mxu0 0.0
    %719 = vmatprep.subr.mxu0 0.0
    %720 = vmatpush1.msra.mxu0 0.0
    %721 = vmatprep.subr.mxu0 0.0
    %722 = vmatpush1.msra.mxu0 0.0
    %723 = vmatprep.subr.mxu0 0.0
    %724 = vmatpush1.msra.mxu0 0.0
    %725 = vmatprep.subr.mxu0 0.0
    %726 = vmatpush1.msra.mxu0 0.0
    %727 = vmatprep.subr.mxu0 0.0
    %728 = vmatpush1.msra.mxu0 0.0
    %729 = vmatprep.mubr.f32.mxu0 0.0
    %730 = vmatmul.mubr.f32.gmra.mrb[0].mxu0 %v660
    %v731 = vpop.f32.mrb[0].mxu0
    %v732 = vadd.f32 0.0, %v731
    %v733 = vpop.f32.mrb[0].mxu0
    %v734 = vadd.f32 0.0, %v733
    %735 = vdwg.mxu0
    %736 = vmatprep.subr.mxu0 %v405
    %737 = vmatpush1.msra.mxu0 %v404
    %738 = vmatprep.subr.mxu0 %v409
    %739 = vmatpush1.msra.mxu0 %v408
    %740 = vmatprep.subr.mxu0 %v413
    %741 = vmatpush1.msra.mxu0 %v412
    %742 = vmatprep.subr.mxu0 %v417
    %743 = vmatpush1.msra.mxu0 %v416
    %744 = vmatprep.subr.mxu0 %v421
    %745 = vmatpush1.msra.mxu0 %v420
    %746 = vmatprep.subr.mxu0 %v425
    %747 = vmatpush1.msra.mxu0 %v424
    %748 = vmatprep.subr.mxu0 %v429
    %749 = vmatpush1.msra.mxu0 %v428
    %750 = vmatprep.subr.mxu0 %v433
    %751 = vmatpush1.msra.mxu0 %v432
    %752 = vmatprep.subr.mxu0 %v437
    %753 = vmatpush1.msra.mxu0 %v436
    %754 = vmatprep.subr.mxu0 %v441
    %755 = vmatpush1.msra.mxu0 %v440
    %756 = vmatprep.subr.mxu0 %v445
    %757 = vmatpush1.msra.mxu0 %v444
    %758 = vmatprep.subr.mxu0 %v449
    %759 = vmatpush1.msra.mxu0 %v448
    %760 = vmatprep.subr.mxu0 %v453
    %761 = vmatpush1.msra.mxu0 %v452
    %762 = vmatprep.subr.mxu0 %v457
    %763 = vmatpush1.msra.mxu0 %v456
    %764 = vmatprep.subr.mxu0 %v461
    %765 = vmatpush1.msra.mxu0 %v460
    %766 = vmatprep.subr.mxu0 %v465
    %767 = vmatpush1.msra.mxu0 %v464
    %768 = vmatprep.subr.mxu0 0.0
    %769 = vmatpush1.msra.mxu0 0.0
    %770 = vmatprep.subr.mxu0 0.0
    %771 = vmatpush1.msra.mxu0 0.0
    %772 = vmatprep.subr.mxu0 0.0
    %773 = vmatpush1.msra.mxu0 0.0
    %774 = vmatprep.subr.mxu0 0.0
    %775 = vmatpush1.msra.mxu0 0.0
    %776 = vmatprep.subr.mxu0 0.0
    %777 = vmatpush1.msra.mxu0 0.0
    %778 = vmatprep.subr.mxu0 0.0
    %779 = vmatpush1.msra.mxu0 0.0
    %780 = vmatprep.subr.mxu0 0.0
    %781 = vmatpush1.msra.mxu0 0.0
    %782 = vmatprep.subr.mxu0 0.0
    %783 = vmatpush1.msra.mxu0 0.0
    %784 = vmatprep.subr.mxu0 0.0
    %785 = vmatpush1.msra.mxu0 0.0
    %786 = vmatprep.subr.mxu0 0.0
    %787 = vmatpush1.msra.mxu0 0.0
    %788 = vmatprep.subr.mxu0 0.0
    %789 = vmatpush1.msra.mxu0 0.0
    %790 = vmatprep.subr.mxu0 0.0
    %791 = vmatpush1.msra.mxu0 0.0
    %792 = vmatprep.subr.mxu0 0.0
    %793 = vmatpush1.msra.mxu0 0.0
    %794 = vmatprep.subr.mxu0 0.0
    %795 = vmatpush1.msra.mxu0 0.0
    %796 = vmatprep.subr.mxu0 0.0
    %797 = vmatpush1.msra.mxu0 0.0
    %798 = vmatprep.subr.mxu0 0.0
    %799 = vmatpush1.msra.mxu0 0.0
    %800 = vmatprep.mubr.f32.mxu0 0.0
    %801 = vmatmul.mubr.f32.gmra.mrb[0].mxu0 %v660
    %v802 = vpop.f32.mrb[0].mxu0
    %v803 = vadd.f32 0.0, %v802
    %v804 = vpop.f32.mrb[0].mxu0
    %v805 = vadd.f32 0.0, %v804
    %806 = vdwg.mxu0
    %v811 = vcombine.low %v732, %v734
    %v812 = vcombine.low %v803, %v805
    %v814 = vunpack.c.l.s4 1966171168
    %v815 = vunpack.c.0.s8 %v814
    %v816 = vlaneseq
    %v817 = vshrl.u32 %v816, 7
    %v818 = vsub.s32 %v815, %v817
    %v819 = vrot.slane %v811, %v818
    %v821 = vunpack.c.l.s4 1966171168
    %v822 = vunpack.c.0.s8 %v821
    %v823 = vlaneseq
    %v824 = vshrl.u32 %v823, 7
    %v825 = vsub.s32 %v822, %v824
    %v826 = vrot.slane %v812, %v825
    %v827 = vcombine.low %v819, %v826
    %v829 = vunpack.c.l.s4 1966171168
    %v830 = vunpack.c.0.s8 %v829
    %v831 = vlaneseq
    %v832 = vshrl.u32 %v831, 7
    %v833 = vsub.s32 %v830, %v832
    %v834 = vrot.slane %v827, %v833
    %v836 = vadd.f32 %v664, %v834
    %v837 = vsub.f32 0.0, %v836
    %v838 = vmul.f32 %v837, 1.442695
    %v839 = vpow.pop %v838
    %v840 = vadd.f32 %v839, 1.0
    %v841 = vrcp.pop %v840
    %v842 = vmul.f32 1.0, %v841
    %v844 = vrot.slane %v836, 3
    %v846 = vtanh.pop %v844
    %v848 = vrot.slane %v842, 1
    %v850 = vmul.f32 %v848, %v656
    %v851 = vmul.f32 %v842, %v846
    %v852 = vadd.f32 %v850, %v851
    %v853 = vtanh.pop %v852
    %v854 = vrot.slane %v842, 2
    %v856 = vmul.f32 %v854, %v853
    %857 = vst [vmem:[#allocation3 + $0x1] sm:$0x1] %v856
    %858 = vst [vmem:[#allocation3 + $0xe] sm:$0x1] %v856
    %s859 = scalar_lea.vmem [#allocation2], 2
    %v860 = vld [vmem:[%s859] ss:$8 sm:$0xf]
    %861 = vmatprep.subr.mxu0 %v403
    %862 = vmatpush1.msra.mxu0 %v402
    %863 = vmatprep.subr.mxu0 %v407
    %864 = vmatpush1.msra.mxu0 %v406
    %865 = vmatprep.subr.mxu0 %v411
    %866 = vmatpush1.msra.mxu0 %v410
    %867 = vmatprep.subr.mxu0 %v415
    %868 = vmatpush1.msra.mxu0 %v414
    %869 = vmatprep.subr.mxu0 %v419
    %870 = vmatpush1.msra.mxu0 %v418
    %871 = vmatprep.subr.mxu0 %v423
    %872 = vmatpush1.msra.mxu0 %v422
    %873 = vmatprep.subr.mxu0 %v427
    %874 = vmatpush1.msra.mxu0 %v426
    %875 = vmatprep.subr.mxu0 %v431
    %876 = vmatpush1.msra.mxu0 %v430
    %877 = vmatprep.subr.mxu0 %v435
    %878 = vmatpush1.msra.mxu0 %v434
    %879 = vmatprep.subr.mxu0 %v439
    %880 = vmatpush1.msra.mxu0 %v438
    %881 = vmatprep.subr.mxu0 %v443
    %882 = vmatpush1.msra.mxu0 %v442
    %883 = vmatprep.subr.mxu0 %v447
    %884 = vmatpush1.msra.mxu0 %v446
    %885 = vmatprep.subr.mxu0 %v451
    %886 = vmatpush1.msra.mxu0 %v450
    %887 = vmatprep.subr.mxu0 %v455
    %888 = vmatpush1.msra.mxu0 %v454
    %889 = vmatprep.subr.mxu0 %v459
    %890 = vmatpush1.msra.mxu0 %v458
    %891 = vmatprep.subr.mxu0 %v463
    %892 = vmatpush1.msra.mxu0 %v462
    %893 = vmatprep.subr.mxu0 0.0
    %894 = vmatpush1.msra.mxu0 0.0
    %895 = vmatprep.subr.mxu0 0.0
    %896 = vmatpush1.msra.mxu0 0.0
    %897 = vmatprep.subr.mxu0 0.0
    %898 = vmatpush1.msra.mxu0 0.0
    %899 = vmatprep.subr.mxu0 0.0
    %900 = vmatpush1.msra.mxu0 0.0
    %901 = vmatprep.subr.mxu0 0.0
    %902 = vmatpush1.msra.mxu0 0.0
    %903 = vmatprep.subr.mxu0 0.0
    %904 = vmatpush1.msra.mxu0 0.0
    %905 = vmatprep.subr.mxu0 0.0
    %906 = vmatpush1.msra.mxu0 0.0
    %907 = vmatprep.subr.mxu0 0.0
    %908 = vmatpush1.msra.mxu0 0.0
    %909 = vmatprep.subr.mxu0 0.0
    %910 = vmatpush1.msra.mxu0 0.0
    %911 = vmatprep.subr.mxu0 0.0
    %912 = vmatpush1.msra.mxu0 0.0
    %913 = vmatprep.subr.mxu0 0.0
    %914 = vmatpush1.msra.mxu0 0.0
    %915 = vmatprep.subr.mxu0 0.0
    %916 = vmatpush1.msra.mxu0 0.0
    %917 = vmatprep.subr.mxu0 0.0
    %918 = vmatpush1.msra.mxu0 0.0
    %919 = vmatprep.subr.mxu0 0.0
    %920 = vmatpush1.msra.mxu0 0.0
    %921 = vmatprep.subr.mxu0 0.0
    %922 = vmatpush1.msra.mxu0 0.0
    %923 = vmatprep.subr.mxu0 0.0
    %924 = vmatpush1.msra.mxu0 0.0
    %925 = vmatprep.mubr.f32.mxu0 0.0
    %926 = vmatmul.mubr.f32.gmra.mrb[0].mxu0 %v856
    %v927 = vpop.f32.mrb[0].mxu0
    %v928 = vadd.f32 0.0, %v927
    %v929 = vpop.f32.mrb[0].mxu0
    %v930 = vadd.f32 0.0, %v929
    %931 = vdwg.mxu0
    %932 = vmatprep.subr.mxu0 %v405
    %933 = vmatpush1.msra.mxu0 %v404
    %934 = vmatprep.subr.mxu0 %v409
    %935 = vmatpush1.msra.mxu0 %v408
    %936 = vmatprep.subr.mxu0 %v413
    %937 = vmatpush1.msra.mxu0 %v412
    %938 = vmatprep.subr.mxu0 %v417
    %939 = vmatpush1.msra.mxu0 %v416
    %940 = vmatprep.subr.mxu0 %v421
    %941 = vmatpush1.msra.mxu0 %v420
    %942 = vmatprep.subr.mxu0 %v425
    %943 = vmatpush1.msra.mxu0 %v424
    %944 = vmatprep.subr.mxu0 %v429
    %945 = vmatpush1.msra.mxu0 %v428
    %946 = vmatprep.subr.mxu0 %v433
    %947 = vmatpush1.msra.mxu0 %v432
    %948 = vmatprep.subr.mxu0 %v437
    %949 = vmatpush1.msra.mxu0 %v436
    %950 = vmatprep.subr.mxu0 %v441
    %951 = vmatpush1.msra.mxu0 %v440
    %952 = vmatprep.subr.mxu0 %v445
    %953 = vmatpush1.msra.mxu0 %v444
    %954 = vmatprep.subr.mxu0 %v449
    %955 = vmatpush1.msra.mxu0 %v448
    %956 = vmatprep.subr.mxu0 %v453
    %957 = vmatpush1.msra.mxu0 %v452
    %958 = vmatprep.subr.mxu0 %v457
    %959 = vmatpush1.msra.mxu0 %v456
    %960 = vmatprep.subr.mxu0 %v461
    %961 = vmatpush1.msra.mxu0 %v460
    %962 = vmatprep.subr.mxu0 %v465
    %963 = vmatpush1.msra.mxu0 %v464
    %964 = vmatprep.subr.mxu0 0.0
    %965 = vmatpush1.msra.mxu0 0.0
    %966 = vmatprep.subr.mxu0 0.0
    %967 = vmatpush1.msra.mxu0 0.0
    %968 = vmatprep.subr.mxu0 0.0
    %969 = vmatpush1.msra.mxu0 0.0
    %970 = vmatprep.subr.mxu0 0.0
    %971 = vmatpush1.msra.mxu0 0.0
    %972 = vmatprep.subr.mxu0 0.0
    %973 = vmatpush1.msra.mxu0 0.0
    %974 = vmatprep.subr.mxu0 0.0
    %975 = vmatpush1.msra.mxu0 0.0
    %976 = vmatprep.subr.mxu0 0.0
    %977 = vmatpush1.msra.mxu0 0.0
    %978 = vmatprep.subr.mxu0 0.0
    %979 = vmatpush1.msra.mxu0 0.0
    %980 = vmatprep.subr.mxu0 0.0
    %981 = vmatpush1.msra.mxu0 0.0
    %982 = vmatprep.subr.mxu0 0.0
    %983 = vmatpush1.msra.mxu0 0.0
    %984 = vmatprep.subr.mxu0 0.0
    %985 = vmatpush1.msra.mxu0 0.0
    %986 = vmatprep.subr.mxu0 0.0
    %987 = vmatpush1.msra.mxu0 0.0
    %988 = vmatprep.subr.mxu0 0.0
    %989 = vmatpush1.msra.mxu0 0.0
    %990 = vmatprep.subr.mxu0 0.0
    %991 = vmatpush1.msra.mxu0 0.0
    %992 = vmatprep.subr.mxu0 0.0
    %993 = vmatpush1.msra.mxu0 0.0
    %994 = vmatprep.subr.mxu0 0.0
    %995 = vmatpush1.msra.mxu0 0.0
    %996 = vmatprep.mubr.f32.mxu0 0.0
    %997 = vmatmul.mubr.f32.gmra.mrb[0].mxu0 %v856
    %v998 = vpop.f32.mrb[0].mxu0
    %v999 = vadd.f32 0.0, %v998
    %v1000 = vpop.f32.mrb[0].mxu0
    %v1001 = vadd.f32 0.0, %v1000
    %1002 = vdwg.mxu0
    %v1007 = vcombine.low %v928, %v930
    %v1008 = vcombine.low %v999, %v1001
    %v1010 = vunpack.c.l.s4 1966171168
    %v1011 = vunpack.c.0.s8 %v1010
    %v1012 = vlaneseq
    %v1013 = vshrl.u32 %v1012, 7
    %v1014 = vsub.s32 %v1011, %v1013
    %v1015 = vrot.slane %v1007, %v1014
    %v1017 = vunpack.c.l.s4 1966171168
    %v1018 = vunpack.c.0.s8 %v1017
    %v1019 = vlaneseq
    %v1020 = vshrl.u32 %v1019, 7
    %v1021 = vsub.s32 %v1018, %v1020
    %v1022 = vrot.slane %v1008, %v1021
    %v1023 = vcombine.low %v1015, %v1022
    %v1025 = vunpack.c.l.s4 1966171168
    %v1026 = vunpack.c.0.s8 %v1025
    %v1027 = vlaneseq
    %v1028 = vshrl.u32 %v1027, 7
    %v1029 = vsub.s32 %v1026, %v1028
    %v1030 = vrot.slane %v1023, %v1029
    %v1032 = vadd.f32 %v860, %v1030
    %v1033 = vsub.f32 0.0, %v1032
    %v1034 = vmul.f32 %v1033, 1.442695
    %v1035 = vpow.pop %v1034
    %v1036 = vadd.f32 %v1035, 1.0
    %v1037 = vrcp.pop %v1036
    %v1038 = vmul.f32 1.0, %v1037
    %v1040 = vrot.slane %v1032, 3
    %v1042 = vtanh.pop %v1040
    %v1044 = vrot.slane %v1038, 1
    %v1046 = vmul.f32 %v1044, %v852
    %v1047 = vmul.f32 %v1038, %v1042
    %v1048 = vadd.f32 %v1046, %v1047
    %v1049 = vtanh.pop %v1048
    %v1050 = vrot.slane %v1038, 2
    %v1052 = vmul.f32 %v1050, %v1049
    %1053 = vst [vmem:[#allocation3 + $0x2] sm:$0x1] %v1052
    %1054 = vst [vmem:[#allocation3 + $0xd] sm:$0x1] %v1052
    %s1055 = scalar_lea.vmem [#allocation2], 3
    %v1056 = vld [vmem:[%s1055] ss:$8 sm:$0xf]
    %1057 = vmatprep.subr.mxu0 %v403
    %1058 = vmatpush1.msra.mxu0 %v402
    %1059 = vmatprep.subr.mxu0 %v407
    %1060 = vmatpush1.msra.mxu0 %v406
    %1061 = vmatprep.subr.mxu0 %v411
    %1062 = vmatpush1.msra.mxu0 %v410
    %1063 = vmatprep.subr.mxu0 %v415
    %1064 = vmatpush1.msra.mxu0 %v414
    %1065 = vmatprep.subr.mxu0 %v419
    %1066 = vmatpush1.msra.mxu0 %v418
    %1067 = vmatprep.subr.mxu0 %v423
    %1068 = vmatpush1.msra.mxu0 %v422
    %1069 = vmatprep.subr.mxu0 %v427
    %1070 = vmatpush1.msra.mxu0 %v426
    %1071 = vmatprep.subr.mxu0 %v431
    %1072 = vmatpush1.msra.mxu0 %v430
    %1073 = vmatprep.subr.mxu0 %v435
    %1074 = vmatpush1.msra.mxu0 %v434
    %1075 = vmatprep.subr.mxu0 %v439
    %1076 = vmatpush1.msra.mxu0 %v438
    %1077 = vmatprep.subr.mxu0 %v443
    %1078 = vmatpush1.msra.mxu0 %v442
    %1079 = vmatprep.subr.mxu0 %v447
    %1080 = vmatpush1.msra.mxu0 %v446
    %1081 = vmatprep.subr.mxu0 %v451
    %1082 = vmatpush1.msra.mxu0 %v450
    %1083 = vmatprep.subr.mxu0 %v455
    %1084 = vmatpush1.msra.mxu0 %v454
    %1085 = vmatprep.subr.mxu0 %v459
    %1086 = vmatpush1.msra.mxu0 %v458
    %1087 = vmatprep.subr.mxu0 %v463
    %1088 = vmatpush1.msra.mxu0 %v462
    %1089 = vmatprep.subr.mxu0 0.0
    %1090 = vmatpush1.msra.mxu0 0.0
    %1091 = vmatprep.subr.mxu0 0.0
    %1092 = vmatpush1.msra.mxu0 0.0
    %1093 = vmatprep.subr.mxu0 0.0
    %1094 = vmatpush1.msra.mxu0 0.0
    %1095 = vmatprep.subr.mxu0 0.0
    %1096 = vmatpush1.msra.mxu0 0.0
    %1097 = vmatprep.subr.mxu0 0.0
    %1098 = vmatpush1.msra.mxu0 0.0
    %1099 = vmatprep.subr.mxu0 0.0
    %1100 = vmatpush1.msra.mxu0 0.0
    %1101 = vmatprep.subr.mxu0 0.0
    %1102 = vmatpush1.msra.mxu0 0.0
    %1103 = vmatprep.subr.mxu0 0.0
    %1104 = vmatpush1.msra.mxu0 0.0
    %1105 = vmatprep.subr.mxu0 0.0
    %1106 = vmatpush1.msra.mxu0 0.0
    %1107 = vmatprep.subr.mxu0 0.0
    %1108 = vmatpush1.msra.mxu0 0.0
    %1109 = vmatprep.subr.mxu0 0.0
    %1110 = vmatpush1.msra.mxu0 0.0
    %1111 = vmatprep.subr.mxu0 0.0
    %1112 = vmatpush1.msra.mxu0 0.0
    %1113 = vmatprep.subr.mxu0 0.0
    %1114 = vmatpush1.msra.mxu0 0.0
    %1115 = vmatprep.subr.mxu0 0.0
    %1116 = vmatpush1.msra.mxu0 0.0
    %1117 = vmatprep.subr.mxu0 0.0
    %1118 = vmatpush1.msra.mxu0 0.0
    %1119 = vmatprep.subr.mxu0 0.0
    %1120 = vmatpush1.msra.mxu0 0.0
    %1121 = vmatprep.mubr.f32.mxu0 0.0
    %1122 = vmatmul.mubr.f32.gmra.mrb[0].mxu0 %v1052
    %v1123 = vpop.f32.mrb[0].mxu0
    %v1124 = vadd.f32 0.0, %v1123
    %v1125 = vpop.f32.mrb[0].mxu0
    %v1126 = vadd.f32 0.0, %v1125
    %1127 = vdwg.mxu0
    %1128 = vmatprep.subr.mxu0 %v405
    %1129 = vmatpush1.msra.mxu0 %v404
    %1130 = vmatprep.subr.mxu0 %v409
    %1131 = vmatpush1.msra.mxu0 %v408
    %1132 = vmatprep.subr.mxu0 %v413
    %1133 = vmatpush1.msra.mxu0 %v412
    %1134 = vmatprep.subr.mxu0 %v417
    %1135 = vmatpush1.msra.mxu0 %v416
    %1136 = vmatprep.subr.mxu0 %v421
    %1137 = vmatpush1.msra.mxu0 %v420
    %1138 = vmatprep.subr.mxu0 %v425
    %1139 = vmatpush1.msra.mxu0 %v424
    %1140 = vmatprep.subr.mxu0 %v429
    %1141 = vmatpush1.msra.mxu0 %v428
    %1142 = vmatprep.subr.mxu0 %v433
    %1143 = vmatpush1.msra.mxu0 %v432
    %1144 = vmatprep.subr.mxu0 %v437
    %1145 = vmatpush1.msra.mxu0 %v436
    %1146 = vmatprep.subr.mxu0 %v441
    %1147 = vmatpush1.msra.mxu0 %v440
    %1148 = vmatprep.subr.mxu0 %v445
    %1149 = vmatpush1.msra.mxu0 %v444
    %1150 = vmatprep.subr.mxu0 %v449
    %1151 = vmatpush1.msra.mxu0 %v448
    %1152 = vmatprep.subr.mxu0 %v453
    %1153 = vmatpush1.msra.mxu0 %v452
    %1154 = vmatprep.subr.mxu0 %v457
    %1155 = vmatpush1.msra.mxu0 %v456
    %1156 = vmatprep.subr.mxu0 %v461
    %1157 = vmatpush1.msra.mxu0 %v460
    %1158 = vmatprep.subr.mxu0 %v465
    %1159 = vmatpush1.msra.mxu0 %v464
    %1160 = vmatprep.subr.mxu0 0.0
    %1161 = vmatpush1.msra.mxu0 0.0
    %1162 = vmatprep.subr.mxu0 0.0
    %1163 = vmatpush1.msra.mxu0 0.0
    %1164 = vmatprep.subr.mxu0 0.0
    %1165 = vmatpush1.msra.mxu0 0.0
    %1166 = vmatprep.subr.mxu0 0.0
    %1167 = vmatpush1.msra.mxu0 0.0
    %1168 = vmatprep.subr.mxu0 0.0
    %1169 = vmatpush1.msra.mxu0 0.0
    %1170 = vmatprep.subr.mxu0 0.0
    %1171 = vmatpush1.msra.mxu0 0.0
    %1172 = vmatprep.subr.mxu0 0.0
    %1173 = vmatpush1.msra.mxu0 0.0
    %1174 = vmatprep.subr.mxu0 0.0
    %1175 = vmatpush1.msra.mxu0 0.0
    %1176 = vmatprep.subr.mxu0 0.0
    %1177 = vmatpush1.msra.mxu0 0.0
    %1178 = vmatprep.subr.mxu0 0.0
    %1179 = vmatpush1.msra.mxu0 0.0
    %1180 = vmatprep.subr.mxu0 0.0
    %1181 = vmatpush1.msra.mxu0 0.0
    %1182 = vmatprep.subr.mxu0 0.0
    %1183 = vmatpush1.msra.mxu0 0.0
    %1184 = vmatprep.subr.mxu0 0.0
    %1185 = vmatpush1.msra.mxu0 0.0
    %1186 = vmatprep.subr.mxu0 0.0
    %1187 = vmatpush1.msra.mxu0 0.0
    %1188 = vmatprep.subr.mxu0 0.0
    %1189 = vmatpush1.msra.mxu0 0.0
    %1190 = vmatprep.subr.mxu0 0.0
    %1191 = vmatpush1.msra.mxu0 0.0
    %1192 = vmatprep.mubr.f32.mxu0 0.0
    %1193 = vmatmul.mubr.f32.gmra.mrb[0].mxu0 %v1052
    %v1194 = vpop.f32.mrb[0].mxu0
    %v1195 = vadd.f32 0.0, %v1194
    %v1196 = vpop.f32.mrb[0].mxu0
    %v1197 = vadd.f32 0.0, %v1196
    %1198 = vdwg.mxu0
    %v1203 = vcombine.low %v1124, %v1126
    %v1204 = vcombine.low %v1195, %v1197
    %v1206 = vunpack.c.l.s4 1966171168
    %v1207 = vunpack.c.0.s8 %v1206
    %v1208 = vlaneseq
    %v1209 = vshrl.u32 %v1208, 7
    %v1210 = vsub.s32 %v1207, %v1209
    %v1211 = vrot.slane %v1203, %v1210
    %v1213 = vunpack.c.l.s4 1966171168
    %v1214 = vunpack.c.0.s8 %v1213
    %v1215 = vlaneseq
    %v1216 = vshrl.u32 %v1215, 7
    %v1217 = vsub.s32 %v1214, %v1216
    %v1218 = vrot.slane %v1204, %v1217
    %v1219 = vcombine.low %v1211, %v1218
    %v1221 = vunpack.c.l.s4 1966171168
    %v1222 = vunpack.c.0.s8 %v1221
    %v1223 = vlaneseq
    %v1224 = vshrl.u32 %v1223, 7
    %v1225 = vsub.s32 %v1222, %v1224
    %v1226 = vrot.slane %v1219, %v1225
    %v1228 = vadd.f32 %v1056, %v1226
    %v1229 = vsub.f32 0.0, %v1228
    %v1230 = vmul.f32 %v1229, 1.442695
    %v1231 = vpow.pop %v1230
    %v1232 = vadd.f32 %v1231, 1.0
    %v1233 = vrcp.pop %v1232
    %v1234 = vmul.f32 1.0, %v1233
    %v1236 = vrot.slane %v1228, 3
    %v1238 = vtanh.pop %v1236
    %v1240 = vrot.slane %v1234, 1
    %v1242 = vmul.f32 %v1240, %v1048
    %v1243 = vmul.f32 %v1234, %v1238
    %v1244 = vadd.f32 %v1242, %v1243
    %v1245 = vtanh.pop %v1244
    %v1246 = vrot.slane %v1234, 2
    %v1248 = vmul.f32 %v1246, %v1245
    %1249 = vst [vmem:[#allocation3 + $0x3] sm:$0x1] %v1248
    %1250 = vst [vmem:[#allocation3 + $0xc] sm:$0x1] %v1248
    %s1251 = scalar_lea.vmem [#allocation2], 4
    %v1252 = vld [vmem:[%s1251] ss:$8 sm:$0xf]
    %1253 = vmatprep.subr.mxu0 %v403
    %1254 = vmatpush1.msra.mxu0 %v402
    %1255 = vmatprep.subr.mxu0 %v407
    %1256 = vmatpush1.msra.mxu0 %v406
    %1257 = vmatprep.subr.mxu0 %v411
    %1258 = vmatpush1.msra.mxu0 %v410
    %1259 = vmatprep.subr.mxu0 %v415
    %1260 = vmatpush1.msra.mxu0 %v414
    %1261 = vmatprep.subr.mxu0 %v419
    %1262 = vmatpush1.msra.mxu0 %v418
    %1263 = vmatprep.subr.mxu0 %v423
    %1264 = vmatpush1.msra.mxu0 %v422
    %1265 = vmatprep.subr.mxu0 %v427
    %1266 = vmatpush1.msra.mxu0 %v426
    %1267 = vmatprep.subr.mxu0 %v431
    %1268 = vmatpush1.msra.mxu0 %v430
    %1269 = vmatprep.subr.mxu0 %v435
    %1270 = vmatpush1.msra.mxu0 %v434
    %1271 = vmatprep.subr.mxu0 %v439
    %1272 = vmatpush1.msra.mxu0 %v438
    %1273 = vmatprep.subr.mxu0 %v443
    %1274 = vmatpush1.msra.mxu0 %v442
    %1275 = vmatprep.subr.mxu0 %v447
    %1276 = vmatpush1.msra.mxu0 %v446
    %1277 = vmatprep.subr.mxu0 %v451
    %1278 = vmatpush1.msra.mxu0 %v450
    %1279 = vmatprep.subr.mxu0 %v455
    %1280 = vmatpush1.msra.mxu0 %v454
    %1281 = vmatprep.subr.mxu0 %v459
    %1282 = vmatpush1.msra.mxu0 %v458
    %1283 = vmatprep.subr.mxu0 %v463
    %1284 = vmatpush1.msra.mxu0 %v462
    %1285 = vmatprep.subr.mxu0 0.0
    %1286 = vmatpush1.msra.mxu0 0.0
    %1287 = vmatprep.subr.mxu0 0.0
    %1288 = vmatpush1.msra.mxu0 0.0
    %1289 = vmatprep.subr.mxu0 0.0
    %1290 = vmatpush1.msra.mxu0 0.0
    %1291 = vmatprep.subr.mxu0 0.0
    %1292 = vmatpush1.msra.mxu0 0.0
    %1293 = vmatprep.subr.mxu0 0.0
    %1294 = vmatpush1.msra.mxu0 0.0
    %1295 = vmatprep.subr.mxu0 0.0
    %1296 = vmatpush1.msra.mxu0 0.0
    %1297 = vmatprep.subr.mxu0 0.0
    %1298 = vmatpush1.msra.mxu0 0.0
    %1299 = vmatprep.subr.mxu0 0.0
    %1300 = vmatpush1.msra.mxu0 0.0
    %1301 = vmatprep.subr.mxu0 0.0
    %1302 = vmatpush1.msra.mxu0 0.0
    %1303 = vmatprep.subr.mxu0 0.0
    %1304 = vmatpush1.msra.mxu0 0.0
    %1305 = vmatprep.subr.mxu0 0.0
    %1306 = vmatpush1.msra.mxu0 0.0
    %1307 = vmatprep.subr.mxu0 0.0
    %1308 = vmatpush1.msra.mxu0 0.0
    %1309 = vmatprep.subr.mxu0 0.0
    %1310 = vmatpush1.msra.mxu0 0.0
    %1311 = vmatprep.subr.mxu0 0.0
    %1312 = vmatpush1.msra.mxu0 0.0
    %1313 = vmatprep.subr.mxu0 0.0
    %1314 = vmatpush1.msra.mxu0 0.0
    %1315 = vmatprep.subr.mxu0 0.0
    %1316 = vmatpush1.msra.mxu0 0.0
    %1317 = vmatprep.mubr.f32.mxu0 0.0
    %1318 = vmatmul.mubr.f32.gmra.mrb[0].mxu0 %v1248
    %v1319 = vpop.f32.mrb[0].mxu0
    %v1320 = vadd.f32 0.0, %v1319
    %v1321 = vpop.f32.mrb[0].mxu0
    %v1322 = vadd.f32 0.0, %v1321
    %1323 = vdwg.mxu0
    %1324 = vmatprep.subr.mxu0 %v405
    %1325 = vmatpush1.msra.mxu0 %v404
    %1326 = vmatprep.subr.mxu0 %v409
    %1327 = vmatpush1.msra.mxu0 %v408
    %1328 = vmatprep.subr.mxu0 %v413
    %1329 = vmatpush1.msra.mxu0 %v412
    %1330 = vmatprep.subr.mxu0 %v417
    %1331 = vmatpush1.msra.mxu0 %v416
    %1332 = vmatprep.subr.mxu0 %v421
    %1333 = vmatpush1.msra.mxu0 %v420
    %1334 = vmatprep.subr.mxu0 %v425
    %1335 = vmatpush1.msra.mxu0 %v424
    %1336 = vmatprep.subr.mxu0 %v429
    %1337 = vmatpush1.msra.mxu0 %v428
    %1338 = vmatprep.subr.mxu0 %v433
    %1339 = vmatpush1.msra.mxu0 %v432
    %1340 = vmatprep.subr.mxu0 %v437
    %1341 = vmatpush1.msra.mxu0 %v436
    %1342 = vmatprep.subr.mxu0 %v441
    %1343 = vmatpush1.msra.mxu0 %v440
    %1344 = vmatprep.subr.mxu0 %v445
    %1345 = vmatpush1.msra.mxu0 %v444
    %1346 = vmatprep.subr.mxu0 %v449
    %1347 = vmatpush1.msra.mxu0 %v448
    %1348 = vmatprep.subr.mxu0 %v453
    %1349 = vmatpush1.msra.mxu0 %v452
    %1350 = vmatprep.subr.mxu0 %v457
    %1351 = vmatpush1.msra.mxu0 %v456
    %1352 = vmatprep.subr.mxu0 %v461
    %1353 = vmatpush1.msra.mxu0 %v460
    %1354 = vmatprep.subr.mxu0 %v465
    %1355 = vmatpush1.msra.mxu0 %v464
    %1356 = vmatprep.subr.mxu0 0.0
    %1357 = vmatpush1.msra.mxu0 0.0
    %1358 = vmatprep.subr.mxu0 0.0
    %1359 = vmatpush1.msra.mxu0 0.0
    %1360 = vmatprep.subr.mxu0 0.0
    %1361 = vmatpush1.msra.mxu0 0.0
    %1362 = vmatprep.subr.mxu0 0.0
    %1363 = vmatpush1.msra.mxu0 0.0
    %1364 = vmatprep.subr.mxu0 0.0
    %1365 = vmatpush1.msra.mxu0 0.0
    %1366 = vmatprep.subr.mxu0 0.0
    %1367 = vmatpush1.msra.mxu0 0.0
    %1368 = vmatprep.subr.mxu0 0.0
    %1369 = vmatpush1.msra.mxu0 0.0
    %1370 = vmatprep.subr.mxu0 0.0
    %1371 = vmatpush1.msra.mxu0 0.0
    %1372 = vmatprep.subr.mxu0 0.0
    %1373 = vmatpush1.msra.mxu0 0.0
    %1374 = vmatprep.subr.mxu0 0.0
    %1375 = vmatpush1.msra.mxu0 0.0
    %1376 = vmatprep.subr.mxu0 0.0
    %1377 = vmatpush1.msra.mxu0 0.0
    %1378 = vmatprep.subr.mxu0 0.0
    %1379 = vmatpush1.msra.mxu0 0.0
    %1380 = vmatprep.subr.mxu0 0.0
    %1381 = vmatpush1.msra.mxu0 0.0
    %1382 = vmatprep.subr.mxu0 0.0
    %1383 = vmatpush1.msra.mxu0 0.0
    %1384 = vmatprep.subr.mxu0 0.0
    %1385 = vmatpush1.msra.mxu0 0.0
    %1386 = vmatprep.subr.mxu0 0.0
    %1387 = vmatpush1.msra.mxu0 0.0
    %1388 = vmatprep.mubr.f32.mxu0 0.0
    %1389 = vmatmul.mubr.f32.gmra.mrb[0].mxu0 %v1248
    %v1390 = vpop.f32.mrb[0].mxu0
    %v1391 = vadd.f32 0.0, %v1390
    %v1392 = vpop.f32.mrb[0].mxu0
    %v1393 = vadd.f32 0.0, %v1392
    %1394 = vdwg.mxu0
    %v1399 = vcombine.low %v1320, %v1322
    %v1400 = vcombine.low %v1391, %v1393
    %v1402 = vunpack.c.l.s4 1966171168
    %v1403 = vunpack.c.0.s8 %v1402
    %v1404 = vlaneseq
    %v1405 = vshrl.u32 %v1404, 7
    %v1406 = vsub.s32 %v1403, %v1405
    %v1407 = vrot.slane %v1399, %v1406
    %v1409 = vunpack.c.l.s4 1966171168
    %v1410 = vunpack.c.0.s8 %v1409
    %v1411 = vlaneseq
    %v1412 = vshrl.u32 %v1411, 7
    %v1413 = vsub.s32 %v1410, %v1412
    %v1414 = vrot.slane %v1400, %v1413
    %v1415 = vcombine.low %v1407, %v1414
    %v1417 = vunpack.c.l.s4 1966171168
    %v1418 = vunpack.c.0.s8 %v1417
    %v1419 = vlaneseq
    %v1420 = vshrl.u32 %v1419, 7
    %v1421 = vsub.s32 %v1418, %v1420
    %v1422 = vrot.slane %v1415, %v1421
    %v1424 = vadd.f32 %v1252, %v1422
    %v1425 = vsub.f32 0.0, %v1424
    %v1426 = vmul.f32 %v1425, 1.442695
    %v1427 = vpow.pop %v1426
    %v1428 = vadd.f32 %v1427, 1.0
    %v1429 = vrcp.pop %v1428
    %v1430 = vmul.f32 1.0, %v1429
    %v1432 = vrot.slane %v1424, 3
    %v1434 = vtanh.pop %v1432
    %v1436 = vrot.slane %v1430, 1
    %v1438 = vmul.f32 %v1436, %v1244
    %v1439 = vmul.f32 %v1430, %v1434
    %v1440 = vadd.f32 %v1438, %v1439
    %v1441 = vtanh.pop %v1440
    %v1442 = vrot.slane %v1430, 2
    %v1444 = vmul.f32 %v1442, %v1441
    %1445 = vst [vmem:[#allocation3 + $0x4] sm:$0x1] %v1444
    %1446 = vst [vmem:[#allocation3 + $0xb] sm:$0x1] %v1444
    %s1447 = scalar_lea.vmem [#allocation2], 5
    %v1448 = vld [vmem:[%s1447] ss:$8 sm:$0xf]
    %1449 = vmatprep.subr.mxu0 %v403
    %1450 = vmatpush1.msra.mxu0 %v402
    %1451 = vmatprep.subr.mxu0 %v407
    %1452 = vmatpush1.msra.mxu0 %v406
    %1453 = vmatprep.subr.mxu0 %v411
    %1454 = vmatpush1.msra.mxu0 %v410
    %1455 = vmatprep.subr.mxu0 %v415
    %1456 = vmatpush1.msra.mxu0 %v414
    %1457 = vmatprep.subr.mxu0 %v419
    %1458 = vmatpush1.msra.mxu0 %v418
    %1459 = vmatprep.subr.mxu0 %v423
    %1460 = vmatpush1.msra.mxu0 %v422
    %1461 = vmatprep.subr.mxu0 %v427
    %1462 = vmatpush1.msra.mxu0 %v426
    %1463 = vmatprep.subr.mxu0 %v431
    %1464 = vmatpush1.msra.mxu0 %v430
    %1465 = vmatprep.subr.mxu0 %v435
    %1466 = vmatpush1.msra.mxu0 %v434
    %1467 = vmatprep.subr.mxu0 %v439
    %1468 = vmatpush1.msra.mxu0 %v438
    %1469 = vmatprep.subr.mxu0 %v443
    %1470 = vmatpush1.msra.mxu0 %v442
    %1471 = vmatprep.subr.mxu0 %v447
    %1472 = vmatpush1.msra.mxu0 %v446
    %1473 = vmatprep.subr.mxu0 %v451
    %1474 = vmatpush1.msra.mxu0 %v450
    %1475 = vmatprep.subr.mxu0 %v455
    %1476 = vmatpush1.msra.mxu0 %v454
    %1477 = vmatprep.subr.mxu0 %v459
    %1478 = vmatpush1.msra.mxu0 %v458
    %1479 = vmatprep.subr.mxu0 %v463
    %1480 = vmatpush1.msra.mxu0 %v462
    %1481 = vmatprep.subr.mxu0 0.0
    %1482 = vmatpush1.msra.mxu0 0.0
    %1483 = vmatprep.subr.mxu0 0.0
    %1484 = vmatpush1.msra.mxu0 0.0
    %1485 = vmatprep.subr.mxu0 0.0
    %1486 = vmatpush1.msra.mxu0 0.0
    %1487 = vmatprep.subr.mxu0 0.0
    %1488 = vmatpush1.msra.mxu0 0.0
    %1489 = vmatprep.subr.mxu0 0.0
    %1490 = vmatpush1.msra.mxu0 0.0
    %1491 = vmatprep.subr.mxu0 0.0
    %1492 = vmatpush1.msra.mxu0 0.0
    %1493 = vmatprep.subr.mxu0 0.0
    %1494 = vmatpush1.msra.mxu0 0.0
    %1495 = vmatprep.subr.mxu0 0.0
    %1496 = vmatpush1.msra.mxu0 0.0
    %1497 = vmatprep.subr.mxu0 0.0
    %1498 = vmatpush1.msra.mxu0 0.0
    %1499 = vmatprep.subr.mxu0 0.0
    %1500 = vmatpush1.msra.mxu0 0.0
    %1501 = vmatprep.subr.mxu0 0.0
    %1502 = vmatpush1.msra.mxu0 0.0
    %1503 = vmatprep.subr.mxu0 0.0
    %1504 = vmatpush1.msra.mxu0 0.0
    %1505 = vmatprep.subr.mxu0 0.0
    %1506 = vmatpush1.msra.mxu0 0.0
    %1507 = vmatprep.subr.mxu0 0.0
    %1508 = vmatpush1.msra.mxu0 0.0
    %1509 = vmatprep.subr.mxu0 0.0
    %1510 = vmatpush1.msra.mxu0 0.0
    %1511 = vmatprep.subr.mxu0 0.0
    %1512 = vmatpush1.msra.mxu0 0.0
    %1513 = vmatprep.mubr.f32.mxu0 0.0
    %1514 = vmatmul.mubr.f32.gmra.mrb[0].mxu0 %v1444
    %v1515 = vpop.f32.mrb[0].mxu0
    %v1516 = vadd.f32 0.0, %v1515
    %v1517 = vpop.f32.mrb[0].mxu0
    %v1518 = vadd.f32 0.0, %v1517
    %1519 = vdwg.mxu0
    %1520 = vmatprep.subr.mxu0 %v405
    %1521 = vmatpush1.msra.mxu0 %v404
    %1522 = vmatprep.subr.mxu0 %v409
    %1523 = vmatpush1.msra.mxu0 %v408
    %1524 = vmatprep.subr.mxu0 %v413
    %1525 = vmatpush1.msra.mxu0 %v412
    %1526 = vmatprep.subr.mxu0 %v417
    %1527 = vmatpush1.msra.mxu0 %v416
    %1528 = vmatprep.subr.mxu0 %v421
    %1529 = vmatpush1.msra.mxu0 %v420
    %1530 = vmatprep.subr.mxu0 %v425
    %1531 = vmatpush1.msra.mxu0 %v424
    %1532 = vmatprep.subr.mxu0 %v429
    %1533 = vmatpush1.msra.mxu0 %v428
    %1534 = vmatprep.subr.mxu0 %v433
    %1535 = vmatpush1.msra.mxu0 %v432
    %1536 = vmatprep.subr.mxu0 %v437
    %1537 = vmatpush1.msra.mxu0 %v436
    %1538 = vmatprep.subr.mxu0 %v441
    %1539 = vmatpush1.msra.mxu0 %v440
    %1540 = vmatprep.subr.mxu0 %v445
    %1541 = vmatpush1.msra.mxu0 %v444
    %1542 = vmatprep.subr.mxu0 %v449
    %1543 = vmatpush1.msra.mxu0 %v448
    %1544 = vmatprep.subr.mxu0 %v453
    %1545 = vmatpush1.msra.mxu0 %v452
    %1546 = vmatprep.subr.mxu0 %v457
    %1547 = vmatpush1.msra.mxu0 %v456
    %1548 = vmatprep.subr.mxu0 %v461
    %1549 = vmatpush1.msra.mxu0 %v460
    %1550 = vmatprep.subr.mxu0 %v465
    %1551 = vmatpush1.msra.mxu0 %v464
    %1552 = vmatprep.subr.mxu0 0.0
    %1553 = vmatpush1.msra.mxu0 0.0
    %1554 = vmatprep.subr.mxu0 0.0
    %1555 = vmatpush1.msra.mxu0 0.0
    %1556 = vmatprep.subr.mxu0 0.0
    %1557 = vmatpush1.msra.mxu0 0.0
    %1558 = vmatprep.subr.mxu0 0.0
    %1559 = vmatpush1.msra.mxu0 0.0
    %1560 = vmatprep.subr.mxu0 0.0
    %1561 = vmatpush1.msra.mxu0 0.0
    %1562 = vmatprep.subr.mxu0 0.0
    %1563 = vmatpush1.msra.mxu0 0.0
    %1564 = vmatprep.subr.mxu0 0.0
    %1565 = vmatpush1.msra.mxu0 0.0
    %1566 = vmatprep.subr.mxu0 0.0
    %1567 = vmatpush1.msra.mxu0 0.0
    %1568 = vmatprep.subr.mxu0 0.0
    %1569 = vmatpush1.msra.mxu0 0.0
    %1570 = vmatprep.subr.mxu0 0.0
    %1571 = vmatpush1.msra.mxu0 0.0
    %1572 = vmatprep.subr.mxu0 0.0
    %1573 = vmatpush1.msra.mxu0 0.0
    %1574 = vmatprep.subr.mxu0 0.0
    %1575 = vmatpush1.msra.mxu0 0.0
    %1576 = vmatprep.subr.mxu0 0.0
    %1577 = vmatpush1.msra.mxu0 0.0
    %1578 = vmatprep.subr.mxu0 0.0
    %1579 = vmatpush1.msra.mxu0 0.0
    %1580 = vmatprep.subr.mxu0 0.0
    %1581 = vmatpush1.msra.mxu0 0.0
    %1582 = vmatprep.subr.mxu0 0.0
    %1583 = vmatpush1.msra.mxu0 0.0
    %1584 = vmatprep.mubr.f32.mxu0 0.0
    %1585 = vmatmul.mubr.f32.gmra.mrb[0].mxu0 %v1444
    %v1586 = vpop.f32.mrb[0].mxu0
    %v1587 = vadd.f32 0.0, %v1586
    %v1588 = vpop.f32.mrb[0].mxu0
    %v1589 = vadd.f32 0.0, %v1588
    %1590 = vdwg.mxu0
    %v1595 = vcombine.low %v1516, %v1518
    %v1596 = vcombine.low %v1587, %v1589
    %v1598 = vunpack.c.l.s4 1966171168
    %v1599 = vunpack.c.0.s8 %v1598
    %v1600 = vlaneseq
    %v1601 = vshrl.u32 %v1600, 7
    %v1602 = vsub.s32 %v1599, %v1601
    %v1603 = vrot.slane %v1595, %v1602
    %v1605 = vunpack.c.l.s4 1966171168
    %v1606 = vunpack.c.0.s8 %v1605
    %v1607 = vlaneseq
    %v1608 = vshrl.u32 %v1607, 7
    %v1609 = vsub.s32 %v1606, %v1608
    %v1610 = vrot.slane %v1596, %v1609
    %v1611 = vcombine.low %v1603, %v1610
    %v1613 = vunpack.c.l.s4 1966171168
    %v1614 = vunpack.c.0.s8 %v1613
    %v1615 = vlaneseq
    %v1616 = vshrl.u32 %v1615, 7
    %v1617 = vsub.s32 %v1614, %v1616
    %v1618 = vrot.slane %v1611, %v1617
    %v1620 = vadd.f32 %v1448, %v1618
    %v1621 = vsub.f32 0.0, %v1620
    %v1622 = vmul.f32 %v1621, 1.442695
    %v1623 = vpow.pop %v1622
    %v1624 = vadd.f32 %v1623, 1.0
    %v1625 = vrcp.pop %v1624
    %v1626 = vmul.f32 1.0, %v1625
    %v1628 = vrot.slane %v1620, 3
    %v1630 = vtanh.pop %v1628
    %v1632 = vrot.slane %v1626, 1
    %v1634 = vmul.f32 %v1632, %v1440
    %v1635 = vmul.f32 %v1626, %v1630
    %v1636 = vadd.f32 %v1634, %v1635
    %v1637 = vtanh.pop %v1636
    %v1638 = vrot.slane %v1626, 2
    %v1640 = vmul.f32 %v1638, %v1637
    %1641 = vst [vmem:[#allocation3 + $0x5] sm:$0x1] %v1640
    %1642 = vst [vmem:[#allocation3 + $0xa] sm:$0x1] %v1640
    %s1643 = scalar_lea.vmem [#allocation2], 6
    %v1644 = vld [vmem:[%s1643] ss:$8 sm:$0xf]
    %1645 = vmatprep.subr.mxu0 %v403
    %1646 = vmatpush1.msra.mxu0 %v402
    %1647 = vmatprep.subr.mxu0 %v407
    %1648 = vmatpush1.msra.mxu0 %v406
    %1649 = vmatprep.subr.mxu0 %v411
    %1650 = vmatpush1.msra.mxu0 %v410
    %1651 = vmatprep.subr.mxu0 %v415
    %1652 = vmatpush1.msra.mxu0 %v414
    %1653 = vmatprep.subr.mxu0 %v419
    %1654 = vmatpush1.msra.mxu0 %v418
    %1655 = vmatprep.subr.mxu0 %v423
    %1656 = vmatpush1.msra.mxu0 %v422
    %1657 = vmatprep.subr.mxu0 %v427
    %1658 = vmatpush1.msra.mxu0 %v426
    %1659 = vmatprep.subr.mxu0 %v431
    %1660 = vmatpush1.msra.mxu0 %v430
    %1661 = vmatprep.subr.mxu0 %v435
    %1662 = vmatpush1.msra.mxu0 %v434
    %1663 = vmatprep.subr.mxu0 %v439
    %1664 = vmatpush1.msra.mxu0 %v438
    %1665 = vmatprep.subr.mxu0 %v443
    %1666 = vmatpush1.msra.mxu0 %v442
    %1667 = vmatprep.subr.mxu0 %v447
    %1668 = vmatpush1.msra.mxu0 %v446
    %1669 = vmatprep.subr.mxu0 %v451
    %1670 = vmatpush1.msra.mxu0 %v450
    %1671 = vmatprep.subr.mxu0 %v455
    %1672 = vmatpush1.msra.mxu0 %v454
    %1673 = vmatprep.subr.mxu0 %v459
    %1674 = vmatpush1.msra.mxu0 %v458
    %1675 = vmatprep.subr.mxu0 %v463
    %1676 = vmatpush1.msra.mxu0 %v462
    %1677 = vmatprep.subr.mxu0 0.0
    %1678 = vmatpush1.msra.mxu0 0.0
    %1679 = vmatprep.subr.mxu0 0.0
    %1680 = vmatpush1.msra.mxu0 0.0
    %1681 = vmatprep.subr.mxu0 0.0
    %1682 = vmatpush1.msra.mxu0 0.0
    %1683 = vmatprep.subr.mxu0 0.0
    %1684 = vmatpush1.msra.mxu0 0.0
    %1685 = vmatprep.subr.mxu0 0.0
    %1686 = vmatpush1.msra.mxu0 0.0
    %1687 = vmatprep.subr.mxu0 0.0
    %1688 = vmatpush1.msra.mxu0 0.0
    %1689 = vmatprep.subr.mxu0 0.0
    %1690 = vmatpush1.msra.mxu0 0.0
    %1691 = vmatprep.subr.mxu0 0.0
    %1692 = vmatpush1.msra.mxu0 0.0
    %1693 = vmatprep.subr.mxu0 0.0
    %1694 = vmatpush1.msra.mxu0 0.0
    %1695 = vmatprep.subr.mxu0 0.0
    %1696 = vmatpush1.msra.mxu0 0.0
    %1697 = vmatprep.subr.mxu0 0.0
    %1698 = vmatpush1.msra.mxu0 0.0
    %1699 = vmatprep.subr.mxu0 0.0
    %1700 = vmatpush1.msra.mxu0 0.0
    %1701 = vmatprep.subr.mxu0 0.0
    %1702 = vmatpush1.msra.mxu0 0.0
    %1703 = vmatprep.subr.mxu0 0.0
    %1704 = vmatpush1.msra.mxu0 0.0
    %1705 = vmatprep.subr.mxu0 0.0
    %1706 = vmatpush1.msra.mxu0 0.0
    %1707 = vmatprep.subr.mxu0 0.0
    %1708 = vmatpush1.msra.mxu0 0.0
    %1709 = vmatprep.mubr.f32.mxu0 0.0
    %1710 = vmatmul.mubr.f32.gmra.mrb[0].mxu0 %v1640
    %v1711 = vpop.f32.mrb[0].mxu0
    %v1712 = vadd.f32 0.0, %v1711
    %v1713 = vpop.f32.mrb[0].mxu0
    %v1714 = vadd.f32 0.0, %v1713
    %1715 = vdwg.mxu0
    %1716 = vmatprep.subr.mxu0 %v405
    %1717 = vmatpush1.msra.mxu0 %v404
    %1718 = vmatprep.subr.mxu0 %v409
    %1719 = vmatpush1.msra.mxu0 %v408
    %1720 = vmatprep.subr.mxu0 %v413
    %1721 = vmatpush1.msra.mxu0 %v412
    %1722 = vmatprep.subr.mxu0 %v417
    %1723 = vmatpush1.msra.mxu0 %v416
    %1724 = vmatprep.subr.mxu0 %v421
    %1725 = vmatpush1.msra.mxu0 %v420
    %1726 = vmatprep.subr.mxu0 %v425
    %1727 = vmatpush1.msra.mxu0 %v424
    %1728 = vmatprep.subr.mxu0 %v429
    %1729 = vmatpush1.msra.mxu0 %v428
    %1730 = vmatprep.subr.mxu0 %v433
    %1731 = vmatpush1.msra.mxu0 %v432
    %1732 = vmatprep.subr.mxu0 %v437
    %1733 = vmatpush1.msra.mxu0 %v436
    %1734 = vmatprep.subr.mxu0 %v441
    %1735 = vmatpush1.msra.mxu0 %v440
    %1736 = vmatprep.subr.mxu0 %v445
    %1737 = vmatpush1.msra.mxu0 %v444
    %1738 = vmatprep.subr.mxu0 %v449
    %1739 = vmatpush1.msra.mxu0 %v448
    %1740 = vmatprep.subr.mxu0 %v453
    %1741 = vmatpush1.msra.mxu0 %v452
    %1742 = vmatprep.subr.mxu0 %v457
    %1743 = vmatpush1.msra.mxu0 %v456
    %1744 = vmatprep.subr.mxu0 %v461
    %1745 = vmatpush1.msra.mxu0 %v460
    %1746 = vmatprep.subr.mxu0 %v465
    %1747 = vmatpush1.msra.mxu0 %v464
    %1748 = vmatprep.subr.mxu0 0.0
    %1749 = vmatpush1.msra.mxu0 0.0
    %1750 = vmatprep.subr.mxu0 0.0
    %1751 = vmatpush1.msra.mxu0 0.0
    %1752 = vmatprep.subr.mxu0 0.0
    %1753 = vmatpush1.msra.mxu0 0.0
    %1754 = vmatprep.subr.mxu0 0.0
    %1755 = vmatpush1.msra.mxu0 0.0
    %1756 = vmatprep.subr.mxu0 0.0
    %1757 = vmatpush1.msra.mxu0 0.0
    %1758 = vmatprep.subr.mxu0 0.0
    %1759 = vmatpush1.msra.mxu0 0.0
    %1760 = vmatprep.subr.mxu0 0.0
    %1761 = vmatpush1.msra.mxu0 0.0
    %1762 = vmatprep.subr.mxu0 0.0
    %1763 = vmatpush1.msra.mxu0 0.0
    %1764 = vmatprep.subr.mxu0 0.0
    %1765 = vmatpush1.msra.mxu0 0.0
    %1766 = vmatprep.subr.mxu0 0.0
    %1767 = vmatpush1.msra.mxu0 0.0
    %1768 = vmatprep.subr.mxu0 0.0
    %1769 = vmatpush1.msra.mxu0 0.0
    %1770 = vmatprep.subr.mxu0 0.0
    %1771 = vmatpush1.msra.mxu0 0.0
    %1772 = vmatprep.subr.mxu0 0.0
    %1773 = vmatpush1.msra.mxu0 0.0
    %1774 = vmatprep.subr.mxu0 0.0
    %1775 = vmatpush1.msra.mxu0 0.0
    %1776 = vmatprep.subr.mxu0 0.0
    %1777 = vmatpush1.msra.mxu0 0.0
    %1778 = vmatprep.subr.mxu0 0.0
    %1779 = vmatpush1.msra.mxu0 0.0
    %1780 = vmatprep.mubr.f32.mxu0 0.0
    %1781 = vmatmul.mubr.f32.gmra.mrb[0].mxu0 %v1640
    %v1782 = vpop.f32.mrb[0].mxu0
    %v1783 = vadd.f32 0.0, %v1782
    %v1784 = vpop.f32.mrb[0].mxu0
    %v1785 = vadd.f32 0.0, %v1784
    %1786 = vdwg.mxu0
    %v1791 = vcombine.low %v1712, %v1714
    %v1792 = vcombine.low %v1783, %v1785
    %v1794 = vunpack.c.l.s4 1966171168
    %v1795 = vunpack.c.0.s8 %v1794
    %v1796 = vlaneseq
    %v1797 = vshrl.u32 %v1796, 7
    %v1798 = vsub.s32 %v1795, %v1797
    %v1799 = vrot.slane %v1791, %v1798
    %v1801 = vunpack.c.l.s4 1966171168
    %v1802 = vunpack.c.0.s8 %v1801
    %v1803 = vlaneseq
    %v1804 = vshrl.u32 %v1803, 7
    %v1805 = vsub.s32 %v1802, %v1804
    %v1806 = vrot.slane %v1792, %v1805
    %v1807 = vcombine.low %v1799, %v1806
    %v1809 = vunpack.c.l.s4 1966171168
    %v1810 = vunpack.c.0.s8 %v1809
    %v1811 = vlaneseq
    %v1812 = vshrl.u32 %v1811, 7
    %v1813 = vsub.s32 %v1810, %v1812
    %v1814 = vrot.slane %v1807, %v1813
    %v1816 = vadd.f32 %v1644, %v1814
    %v1817 = vsub.f32 0.0, %v1816
    %v1818 = vmul.f32 %v1817, 1.442695
    %v1819 = vpow.pop %v1818
    %v1820 = vadd.f32 %v1819, 1.0
    %v1821 = vrcp.pop %v1820
    %v1822 = vmul.f32 1.0, %v1821
    %v1824 = vrot.slane %v1816, 3
    %v1826 = vtanh.pop %v1824
    %v1828 = vrot.slane %v1822, 1
    %v1830 = vmul.f32 %v1828, %v1636
    %v1831 = vmul.f32 %v1822, %v1826
    %v1832 = vadd.f32 %v1830, %v1831
    %v1833 = vtanh.pop %v1832
    %v1834 = vrot.slane %v1822, 2
    %v1836 = vmul.f32 %v1834, %v1833
    %1837 = vst [vmem:[#allocation3 + $0x6] sm:$0x1] %v1836
    %1838 = vst [vmem:[#allocation3 + $0x9] sm:$0x1] %v1836
    %s1839 = scalar_lea.vmem [#allocation2], 7
    %v1840 = vld [vmem:[%s1839] ss:$8 sm:$0xf]
    %1841 = vmatprep.subr.mxu0 %v403
    %1842 = vmatpush1.msra.mxu0 %v402
    %1843 = vmatprep.subr.mxu0 %v407
    %1844 = vmatpush1.msra.mxu0 %v406
    %1845 = vmatprep.subr.mxu0 %v411
    %1846 = vmatpush1.msra.mxu0 %v410
    %1847 = vmatprep.subr.mxu0 %v415
    %1848 = vmatpush1.msra.mxu0 %v414
    %1849 = vmatprep.subr.mxu0 %v419
    %1850 = vmatpush1.msra.mxu0 %v418
    %1851 = vmatprep.subr.mxu0 %v423
    %1852 = vmatpush1.msra.mxu0 %v422
    %1853 = vmatprep.subr.mxu0 %v427
    %1854 = vmatpush1.msra.mxu0 %v426
    %1855 = vmatprep.subr.mxu0 %v431
    %1856 = vmatpush1.msra.mxu0 %v430
    %1857 = vmatprep.subr.mxu0 %v435
    %1858 = vmatpush1.msra.mxu0 %v434
    %1859 = vmatprep.subr.mxu0 %v439
    %1860 = vmatpush1.msra.mxu0 %v438
    %1861 = vmatprep.subr.mxu0 %v443
    %1862 = vmatpush1.msra.mxu0 %v442
    %1863 = vmatprep.subr.mxu0 %v447
    %1864 = vmatpush1.msra.mxu0 %v446
    %1865 = vmatprep.subr.mxu0 %v451
    %1866 = vmatpush1.msra.mxu0 %v450
    %1867 = vmatprep.subr.mxu0 %v455
    %1868 = vmatpush1.msra.mxu0 %v454
    %1869 = vmatprep.subr.mxu0 %v459
    %1870 = vmatpush1.msra.mxu0 %v458
    %1871 = vmatprep.subr.mxu0 %v463
    %1872 = vmatpush1.msra.mxu0 %v462
    %1873 = vmatprep.subr.mxu0 0.0
    %1874 = vmatpush1.msra.mxu0 0.0
    %1875 = vmatprep.subr.mxu0 0.0
    %1876 = vmatpush1.msra.mxu0 0.0
    %1877 = vmatprep.subr.mxu0 0.0
    %1878 = vmatpush1.msra.mxu0 0.0
    %1879 = vmatprep.subr.mxu0 0.0
    %1880 = vmatpush1.msra.mxu0 0.0
    %1881 = vmatprep.subr.mxu0 0.0
    %1882 = vmatpush1.msra.mxu0 0.0
    %1883 = vmatprep.subr.mxu0 0.0
    %1884 = vmatpush1.msra.mxu0 0.0
    %1885 = vmatprep.subr.mxu0 0.0
    %1886 = vmatpush1.msra.mxu0 0.0
    %1887 = vmatprep.subr.mxu0 0.0
    %1888 = vmatpush1.msra.mxu0 0.0
    %1889 = vmatprep.subr.mxu0 0.0
    %1890 = vmatpush1.msra.mxu0 0.0
    %1891 = vmatprep.subr.mxu0 0.0
    %1892 = vmatpush1.msra.mxu0 0.0
    %1893 = vmatprep.subr.mxu0 0.0
    %1894 = vmatpush1.msra.mxu0 0.0
    %1895 = vmatprep.subr.mxu0 0.0
    %1896 = vmatpush1.msra.mxu0 0.0
    %1897 = vmatprep.subr.mxu0 0.0
    %1898 = vmatpush1.msra.mxu0 0.0
    %1899 = vmatprep.subr.mxu0 0.0
    %1900 = vmatpush1.msra.mxu0 0.0
    %1901 = vmatprep.subr.mxu0 0.0
    %1902 = vmatpush1.msra.mxu0 0.0
    %1903 = vmatprep.subr.mxu0 0.0
    %1904 = vmatpush1.msra.mxu0 0.0
    %1905 = vmatprep.mubr.f32.mxu0 0.0
    %1906 = vmatmul.mubr.f32.gmra.mrb[0].mxu0 %v1836
    %v1907 = vpop.f32.mrb[0].mxu0
    %v1908 = vadd.f32 0.0, %v1907
    %v1909 = vpop.f32.mrb[0].mxu0
    %v1910 = vadd.f32 0.0, %v1909
    %1911 = vdwg.mxu0
    %1912 = vmatprep.subr.mxu0 %v405
    %1913 = vmatpush1.msra.mxu0 %v404
    %1914 = vmatprep.subr.mxu0 %v409
    %1915 = vmatpush1.msra.mxu0 %v408
    %1916 = vmatprep.subr.mxu0 %v413
    %1917 = vmatpush1.msra.mxu0 %v412
    %1918 = vmatprep.subr.mxu0 %v417
    %1919 = vmatpush1.msra.mxu0 %v416
    %1920 = vmatprep.subr.mxu0 %v421
    %1921 = vmatpush1.msra.mxu0 %v420
    %1922 = vmatprep.subr.mxu0 %v425
    %1923 = vmatpush1.msra.mxu0 %v424
    %1924 = vmatprep.subr.mxu0 %v429
    %1925 = vmatpush1.msra.mxu0 %v428
    %1926 = vmatprep.subr.mxu0 %v433
    %1927 = vmatpush1.msra.mxu0 %v432
    %1928 = vmatprep.subr.mxu0 %v437
    %1929 = vmatpush1.msra.mxu0 %v436
    %1930 = vmatprep.subr.mxu0 %v441
    %1931 = vmatpush1.msra.mxu0 %v440
    %1932 = vmatprep.subr.mxu0 %v445
    %1933 = vmatpush1.msra.mxu0 %v444
    %1934 = vmatprep.subr.mxu0 %v449
    %1935 = vmatpush1.msra.mxu0 %v448
    %1936 = vmatprep.subr.mxu0 %v453
    %1937 = vmatpush1.msra.mxu0 %v452
    %1938 = vmatprep.subr.mxu0 %v457
    %1939 = vmatpush1.msra.mxu0 %v456
    %1940 = vmatprep.subr.mxu0 %v461
    %1941 = vmatpush1.msra.mxu0 %v460
    %1942 = vmatprep.subr.mxu0 %v465
    %1943 = vmatpush1.msra.mxu0 %v464
    %1944 = vmatprep.subr.mxu0 0.0
    %1945 = vmatpush1.msra.mxu0 0.0
    %1946 = vmatprep.subr.mxu0 0.0
    %1947 = vmatpush1.msra.mxu0 0.0
    %1948 = vmatprep.subr.mxu0 0.0
    %1949 = vmatpush1.msra.mxu0 0.0
    %1950 = vmatprep.subr.mxu0 0.0
    %1951 = vmatpush1.msra.mxu0 0.0
    %1952 = vmatprep.subr.mxu0 0.0
    %1953 = vmatpush1.msra.mxu0 0.0
    %1954 = vmatprep.subr.mxu0 0.0
    %1955 = vmatpush1.msra.mxu0 0.0
    %1956 = vmatprep.subr.mxu0 0.0
    %1957 = vmatpush1.msra.mxu0 0.0
    %1958 = vmatprep.subr.mxu0 0.0
    %1959 = vmatpush1.msra.mxu0 0.0
    %1960 = vmatprep.subr.mxu0 0.0
    %1961 = vmatpush1.msra.mxu0 0.0
    %1962 = vmatprep.subr.mxu0 0.0
    %1963 = vmatpush1.msra.mxu0 0.0
    %1964 = vmatprep.subr.mxu0 0.0
    %1965 = vmatpush1.msra.mxu0 0.0
    %1966 = vmatprep.subr.mxu0 0.0
    %1967 = vmatpush1.msra.mxu0 0.0
    %1968 = vmatprep.subr.mxu0 0.0
    %1969 = vmatpush1.msra.mxu0 0.0
    %1970 = vmatprep.subr.mxu0 0.0
    %1971 = vmatpush1.msra.mxu0 0.0
    %1972 = vmatprep.subr.mxu0 0.0
    %1973 = vmatpush1.msra.mxu0 0.0
    %1974 = vmatprep.subr.mxu0 0.0
    %1975 = vmatpush1.msra.mxu0 0.0
    %1976 = vmatprep.mubr.f32.mxu0 0.0
    %1977 = vmatmul.mubr.f32.gmra.mrb[0].mxu0 %v1836
    %v1978 = vpop.f32.mrb[0].mxu0
    %v1979 = vadd.f32 0.0, %v1978
    %v1980 = vpop.f32.mrb[0].mxu0
    %v1981 = vadd.f32 0.0, %v1980
    %1982 = vdwg.mxu0
    %v1987 = vcombine.low %v1908, %v1910
    %v1988 = vcombine.low %v1979, %v1981
    %v1990 = vunpack.c.l.s4 1966171168
    %v1991 = vunpack.c.0.s8 %v1990
    %v1992 = vlaneseq
    %v1993 = vshrl.u32 %v1992, 7
    %v1994 = vsub.s32 %v1991, %v1993
    %v1995 = vrot.slane %v1987, %v1994
    %v1997 = vunpack.c.l.s4 1966171168
    %v1998 = vunpack.c.0.s8 %v1997
    %v1999 = vlaneseq
    %v2000 = vshrl.u32 %v1999, 7
    %v2001 = vsub.s32 %v1998, %v2000
    %v2002 = vrot.slane %v1988, %v2001
    %v2003 = vcombine.low %v1995, %v2002
    %v2005 = vunpack.c.l.s4 1966171168
    %v2006 = vunpack.c.0.s8 %v2005
    %v2007 = vlaneseq
    %v2008 = vshrl.u32 %v2007, 7
    %v2009 = vsub.s32 %v2006, %v2008
    %v2010 = vrot.slane %v2003, %v2009
    %v2012 = vadd.f32 %v1840, %v2010
    %v2013 = vsub.f32 0.0, %v2012
    %v2014 = vmul.f32 %v2013, 1.442695
    %v2015 = vpow.pop %v2014
    %v2016 = vadd.f32 %v2015, 1.0
    %v2017 = vrcp.pop %v2016
    %v2018 = vmul.f32 1.0, %v2017
    %v2020 = vrot.slane %v2012, 3
    %v2022 = vtanh.pop %v2020
    %v2024 = vrot.slane %v2018, 1
    %v2026 = vmul.f32 %v2024, %v1832
    %v2027 = vmul.f32 %v2018, %v2022
    %v2028 = vadd.f32 %v2026, %v2027
    %v2029 = vtanh.pop %v2028
    %v2030 = vrot.slane %v2018, 2
    %v2032 = vmul.f32 %v2030, %v2029
    %2033 = vst [vmem:[#allocation3 + $0x7] sm:$0x1] %v2032
    %2034 = vst [vmem:[#allocation3 + $0x8] sm:$0x1] %v2032
    %v2035 = vld [vmem:[#allocation3] sm:$0xff]
    %v2036 = vld [vmem:[#allocation3 + $0x8] sm:$0xff]
    %v2037 = vld [vmem:[#allocation12] sm:$0xff]
    %v2038 = vld [vmem:[#allocation12 + $0x8] sm:$0xff]
    %v2039 = vld [vmem:[#allocation12 + $0x10] sm:$0xff]
    %v2040 = vld [vmem:[#allocation12 + $0x18] sm:$0xff]
    %v2041 = vld [vmem:[#allocation12 + $0x20] sm:$0xff]
    %v2042 = vld [vmem:[#allocation12 + $0x28] sm:$0xff]
    %v2043 = vld [vmem:[#allocation12 + $0x30] sm:$0xff]
    %v2044 = vld [vmem:[#allocation12 + $0x38] sm:$0xff]
    %v2045 = vld [vmem:[#allocation12 + $0x40] sm:$0xff]
    %v2046 = vld [vmem:[#allocation12 + $0x48] sm:$0xff]
    %v2047 = vld [vmem:[#allocation12 + $0x50] sm:$0xff]
    %v2048 = vld [vmem:[#allocation12 + $0x58] sm:$0xff]
    %v2049 = vld [vmem:[#allocation12 + $0x60] sm:$0xff]
    %v2050 = vld [vmem:[#allocation12 + $0x68] sm:$0xff]
    %v2051 = vld [vmem:[#allocation12 + $0x70] sm:$0xff]
    %v2052 = vld [vmem:[#allocation12 + $0x78] sm:$0xff]
    %v2053 = vld [vmem:[#allocation12 + $0x80] sm:$0xff]
    %v2054 = vld [vmem:[#allocation12 + $0x88] sm:$0xff]
    %v2055 = vld [vmem:[#allocation12 + $0x90] sm:$0xff]
    %v2056 = vld [vmem:[#allocation12 + $0x98] sm:$0xff]
    %v2057 = vld [vmem:[#allocation12 + $0xa0] sm:$0xff]
    %v2058 = vld [vmem:[#allocation12 + $0xa8] sm:$0xff]
    %v2059 = vld [vmem:[#allocation12 + $0xb0] sm:$0xff]
    %v2060 = vld [vmem:[#allocation12 + $0xb8] sm:$0xff]
    %v2061 = vld [vmem:[#allocation12 + $0xc0] sm:$0xff]
    %v2062 = vld [vmem:[#allocation12 + $0xc8] sm:$0xff]
    %v2063 = vld [vmem:[#allocation12 + $0xd0] sm:$0xff]
    %v2064 = vld [vmem:[#allocation12 + $0xd8] sm:$0xff]
    %v2065 = vld [vmem:[#allocation12 + $0xe0] sm:$0xff]
    %v2066 = vld [vmem:[#allocation12 + $0xe8] sm:$0xff]
    %v2067 = vld [vmem:[#allocation12 + $0xf0] sm:$0xff]
    %v2068 = vld [vmem:[#allocation12 + $0xf8] sm:$0xff]
    %v2069 = vld [vmem:[%s7] sm:$0x1]
    %v2071 = vlaneseq
    %v2072 = vshrl.u32 %v2071, 7
    %v2073 = vsub.s32 0, %v2072
    %v2074 = vrot.slane %v2069, %v2073
    %2076 = vmatprep.subr.mxu0 0.0
    %2077 = vmatpush1.msra.mxu0 %v2037
    %2078 = vmatprep.subr.mxu0 0.0
    %2079 = vmatpush1.msra.mxu0 %v2038
    %2080 = vmatprep.subr.mxu0 0.0
    %2081 = vmatpush1.msra.mxu0 %v2039
    %2082 = vmatprep.subr.mxu0 0.0
    %2083 = vmatpush1.msra.mxu0 %v2040
    %2084 = vmatprep.subr.mxu0 0.0
    %2085 = vmatpush1.msra.mxu0 %v2041
    %2086 = vmatprep.subr.mxu0 0.0
    %2087 = vmatpush1.msra.mxu0 %v2042
    %2088 = vmatprep.subr.mxu0 0.0
    %2089 = vmatpush1.msra.mxu0 %v2043
    %2090 = vmatprep.subr.mxu0 0.0
    %2091 = vmatpush1.msra.mxu0 %v2044
    %2092 = vmatprep.subr.mxu0 0.0
    %2093 = vmatpush1.msra.mxu0 %v2045
    %2094 = vmatprep.subr.mxu0 0.0
    %2095 = vmatpush1.msra.mxu0 %v2046
    %2096 = vmatprep.subr.mxu0 0.0
    %2097 = vmatpush1.msra.mxu0 %v2047
    %2098 = vmatprep.subr.mxu0 0.0
    %2099 = vmatpush1.msra.mxu0 %v2048
    %2100 = vmatprep.subr.mxu0 0.0
    %2101 = vmatpush1.msra.mxu0 %v2049
    %2102 = vmatprep.subr.mxu0 0.0
    %2103 = vmatpush1.msra.mxu0 %v2050
    %2104 = vmatprep.subr.mxu0 0.0
    %2105 = vmatpush1.msra.mxu0 %v2051
    %2106 = vmatprep.subr.mxu0 0.0
    %2107 = vmatpush1.msra.mxu0 %v2052
    %2108 = vmatprep.subr.mxu0 0.0
    %2109 = vmatpush1.msra.mxu0 %v2053
    %2110 = vmatprep.subr.mxu0 0.0
    %2111 = vmatpush1.msra.mxu0 %v2054
    %2112 = vmatprep.subr.mxu0 0.0
    %2113 = vmatpush1.msra.mxu0 %v2055
    %2114 = vmatprep.subr.mxu0 0.0
    %2115 = vmatpush1.msra.mxu0 %v2056
    %2116 = vmatprep.subr.mxu0 0.0
    %2117 = vmatpush1.msra.mxu0 %v2057
    %2118 = vmatprep.subr.mxu0 0.0
    %2119 = vmatpush1.msra.mxu0 %v2058
    %2120 = vmatprep.subr.mxu0 0.0
    %2121 = vmatpush1.msra.mxu0 %v2059
    %2122 = vmatprep.subr.mxu0 0.0
    %2123 = vmatpush1.msra.mxu0 %v2060
    %2124 = vmatprep.subr.mxu0 0.0
    %2125 = vmatpush1.msra.mxu0 %v2061
    %2126 = vmatprep.subr.mxu0 0.0
    %2127 = vmatpush1.msra.mxu0 %v2062
    %2128 = vmatprep.subr.mxu0 0.0
    %2129 = vmatpush1.msra.mxu0 %v2063
    %2130 = vmatprep.subr.mxu0 0.0
    %2131 = vmatpush1.msra.mxu0 %v2064
    %2132 = vmatprep.subr.mxu0 0.0
    %2133 = vmatpush1.msra.mxu0 %v2065
    %2134 = vmatprep.subr.mxu0 0.0
    %2135 = vmatpush1.msra.mxu0 %v2066
    %2136 = vmatprep.subr.mxu0 0.0
    %2137 = vmatpush1.msra.mxu0 %v2067
    %2138 = vmatprep.subr.mxu0 0.0
    %2139 = vmatpush1.msra.mxu0 %v2068
    %2140 = vmatprep.mubr.f32.mxu0 %v2036
    %2141 = vmatmul.mubr.f32.gmra.mrb[0].mxu0 %v2035
    %v2142 = vpop.f32.mrb[0].mxu0
    %v2143 = vadd.f32 %v2074, %v2142
    %v2144 = vpop.f32.mrb[0].mxu0
    %2145 = vdwg.mxu0
    %2146 = vst [vmem:[#allocation13] sm:$0xff] %v2143
    %v2147 = vlaneseq
    %v2148 = vshrl.u32 %v2147, 7
    %v2149 = vlaneseq
    %v2150 = vand.u32 %v2149, 127
    %vm2151 = vcmp.eq.s32.totalorder %v2148, %v2150
    %v2152 = vsel %vm2151, 1, 0
    %v2153 = vcvt.s32.f32 %v2152
    %2154 = vmatprep.subr.mxu0 0.0
    %2155 = vmatpush1.xpose.msra.mxu0 %v2143
    %2156 = vmatprep.subr.mxu0 0.0
    %2157 = vmatpush1.xpose.msra.mxu0 0.0
    %2158 = vmatprep.subr.mxu0 0.0
    %2159 = vmatpush1.xpose.msra.mxu0 0.0
    %2160 = vmatprep.subr.mxu0 0.0
    %2161 = vmatpush1.xpose.msra.mxu0 0.0
    %2162 = vmatprep.subr.mxu0 0.0
    %2163 = vmatpush1.xpose.msra.mxu0 0.0
    %2164 = vmatprep.subr.mxu0 0.0
    %2165 = vmatpush1.xpose.msra.mxu0 0.0
    %2166 = vmatprep.subr.mxu0 0.0
    %2167 = vmatpush1.xpose.msra.mxu0 0.0
    %2168 = vmatprep.subr.mxu0 0.0
    %2169 = vmatpush1.xpose.msra.mxu0 0.0
    %2170 = vmatprep.subr.mxu0 0.0
    %2171 = vmatpush1.xpose.msra.mxu0 0.0
    %2172 = vmatprep.subr.mxu0 0.0
    %2173 = vmatpush1.xpose.msra.mxu0 0.0
    %2174 = vmatprep.subr.mxu0 0.0
    %2175 = vmatpush1.xpose.msra.mxu0 0.0
    %2176 = vmatprep.subr.mxu0 0.0
    %2177 = vmatpush1.xpose.msra.mxu0 0.0
    %2178 = vmatprep.subr.mxu0 0.0
    %2179 = vmatpush1.xpose.msra.mxu0 0.0
    %2180 = vmatprep.subr.mxu0 0.0
    %2181 = vmatpush1.xpose.msra.mxu0 0.0
    %2182 = vmatprep.subr.mxu0 0.0
    %2183 = vmatpush1.xpose.msra.mxu0 0.0
    %2184 = vmatprep.subr.mxu0 0.0
    %2185 = vmatpush1.xpose.msra.mxu0 0.0
    %2186 = vmatprep.subr.mxu0 0.0
    %2187 = vmatpush1.xpose.msra.mxu0 0.0
    %2188 = vmatprep.subr.mxu0 0.0
    %2189 = vmatpush1.xpose.msra.mxu0 0.0
    %2190 = vmatprep.subr.mxu0 0.0
    %2191 = vmatpush1.xpose.msra.mxu0 0.0
    %2192 = vmatprep.subr.mxu0 0.0
    %2193 = vmatpush1.xpose.msra.mxu0 0.0
    %2194 = vmatprep.subr.mxu0 0.0
    %2195 = vmatpush1.xpose.msra.mxu0 0.0
    %2196 = vmatprep.subr.mxu0 0.0
    %2197 = vmatpush1.xpose.msra.mxu0 0.0
    %2198 = vmatprep.subr.mxu0 0.0
    %2199 = vmatpush1.xpose.msra.mxu0 0.0
    %2200 = vmatprep.subr.mxu0 0.0
    %2201 = vmatpush1.xpose.msra.mxu0 0.0
    %2202 = vmatprep.subr.mxu0 0.0
    %2203 = vmatpush1.xpose.msra.mxu0 0.0
    %2204 = vmatprep.subr.mxu0 0.0
    %2205 = vmatpush1.xpose.msra.mxu0 0.0
    %2206 = vmatprep.subr.mxu0 0.0
    %2207 = vmatpush1.xpose.msra.mxu0 0.0
    %2208 = vmatprep.subr.mxu0 0.0
    %2209 = vmatpush1.xpose.msra.mxu0 0.0
    %2210 = vmatprep.subr.mxu0 0.0
    %2211 = vmatpush1.xpose.msra.mxu0 0.0
    %2212 = vmatprep.subr.mxu0 0.0
    %2213 = vmatpush1.xpose.msra.mxu0 0.0
    %2214 = vmatprep.subr.mxu0 0.0
    %2215 = vmatpush1.xpose.msra.mxu0 0.0
    %2216 = vmatprep.subr.mxu0 0.0
    %2217 = vmatpush1.xpose.msra.mxu0 0.0
    %2218 = vmatprep.mubr.f32.mxu0 0.0
    %2219 = vmatmul.mubr.f32.gmra.mrb[0].mxu0 %v2153
    %v2220 = vpop.f32.mrb[0].mxu0
    %v2221 = vadd.f32 0.0, %v2220
    %v2222 = vpop.f32.mrb[0].mxu0
    %2223 = vdwg.mxu0
    %v2224 = vld [vmem:[%s8] sm:$0xff]
    %v2225 = vld [vmem:[%s9] sm:$0xff]
    %v2226 = vcvt.s32.f32 %v2148
    %v2227 = vcvt.s32.f32 %v2150
    %vm2228 = vcmp.eq.s32.totalorder %v2150, 3
    %vm2229 = vcmp.lt.s32.totalorder %v2150, 5
    %v2230 = vsel %vm2229, -10000.0, -1e+30
    %v2231 = vsel %vm2228, 0.0, %v2230
    %vm2232 = vcmp.eq.s32.totalorder %v2148, 3
    %vm2233 = vcmp.lt.s32.totalorder %v2148, 5
    %v2234 = vsel %vm2233, -10000.0, -1e+30
    %v2235 = vsel %vm2232, 0.0, %v2234
    %v2236 = vadd.f32 %v2225, %v2235
    %v2237 = vrot.slane %v2236, 4
    %v2238 = vmax.f32 %v2236, %v2237
    %v2239 = vrot.slane %v2238, 2
    %v2240 = vmax.f32 %v2238, %v2239
    %v2241 = vrot.slane %v2240, 1
    %v2242 = vmax.f32 %v2240, %v2241
    %vm2243 = vcmp.eq.f32.partialorder %v2236, %v2242
    %v2244 = vsel %vm2243, %v2226, 8.0
    %v2245 = vrot.slane %v2244, 4
    %v2246 = vmin.f32 %v2244, %v2245
    %v2247 = vrot.slane %v2246, 2
    %v2248 = vmin.f32 %v2246, %v2247
    %v2249 = vrot.slane %v2248, 1
    %v2250 = vmin.f32 %v2248, %v2249
    %v2251 = vcvt.f32.s32.to.zero.pseudo %v2250
    %2252 = vst [vmem:[#allocation14] sm:$0x1] %v2251
    %v2253 = vadd.f32 %v2224, %v2231
    %2254 = vmax.xlane.f32.xlu0 %v2253
    %v2255 = vpop.xlane.xlu0 %2254
    %v2256 = vadd.f32 %v2242, %v2143
    %v2257 = vadd.f32 %v2255, %v2221
    %2259 = vset.pattern.permute.xlu0 0
    %2260 = vperm.xlu0 %2259, %v2257
    %v2261 = vpop.permute.xlu0 %2260
    %v2263 = vadd.f32 %v2225, %v2261
    %v2264 = vrot.slane %v2263, 4
    %v2265 = vmax.f32 %v2263, %v2264
    %v2266 = vrot.slane %v2265, 2
    %v2267 = vmax.f32 %v2265, %v2266
    %v2268 = vrot.slane %v2267, 1
    %v2269 = vmax.f32 %v2267, %v2268
    %vm2270 = vcmp.eq.f32.partialorder %v2263, %v2269
    %v2271 = vsel %vm2270, %v2226, 8.0
    %v2272 = vrot.slane %v2271, 4
    %v2273 = vmin.f32 %v2271, %v2272
    %v2274 = vrot.slane %v2273, 2
    %v2275 = vmin.f32 %v2273, %v2274
    %v2276 = vrot.slane %v2275, 1
    %v2277 = vmin.f32 %v2275, %v2276
    %v2278 = vcvt.f32.s32.to.zero.pseudo %v2277
    %2279 = vst [vmem:[#allocation14 + $0x1] sm:$0x1] %v2278
    %v2280 = vlaneseq
    %v2281 = vshrl.u32 %v2280, 7
    %v2282 = vsub.s32 0, %v2281
    %v2283 = vrot.slane %v2256, %v2282
    %v2284 = vadd.f32 %v2224, %v2283
    %2285 = vmax.xlane.f32.xlu0 %v2284
    %v2286 = vpop.xlane.xlu0 %2285
    %v2287 = vadd.f32 %v2269, %v2143
    %v2288 = vadd.f32 %v2286, %v2221
    %2290 = vset.pattern.permute.xlu0 1
    %2291 = vperm.xlu0 %2290, %v2288
    %v2292 = vpop.permute.xlu0 %2291
    %v2294 = vadd.f32 %v2225, %v2292
    %v2295 = vrot.slane %v2294, 4
    %v2296 = vmax.f32 %v2294, %v2295
    %v2297 = vrot.slane %v2296, 2
    %v2298 = vmax.f32 %v2296, %v2297
    %v2299 = vrot.slane %v2298, 1
    %v2300 = vmax.f32 %v2298, %v2299
    %vm2301 = vcmp.eq.f32.partialorder %v2294, %v2300
    %v2302 = vsel %vm2301, %v2226, 8.0
    %v2303 = vrot.slane %v2302, 4
    %v2304 = vmin.f32 %v2302, %v2303
    %v2305 = vrot.slane %v2304, 2
    %v2306 = vmin.f32 %v2304, %v2305
    %v2307 = vrot.slane %v2306, 1
    %v2308 = vmin.f32 %v2306, %v2307
    %v2309 = vcvt.f32.s32.to.zero.pseudo %v2308
    %2310 = vst [vmem:[#allocation14 + $0x2] sm:$0x1] %v2309
    %v2311 = vlaneseq
    %v2312 = vshrl.u32 %v2311, 7
    %v2313 = vsub.s32 1, %v2312
    %v2314 = vrot.slane %v2287, %v2313
    %v2315 = vadd.f32 %v2224, %v2314
    %2316 = vmax.xlane.f32.xlu0 %v2315
    %v2317 = vpop.xlane.xlu0 %2316
    %v2318 = vadd.f32 %v2300, %v2143
    %v2319 = vadd.f32 %v2317, %v2221
    %2321 = vset.pattern.permute.xlu0 2
    %2322 = vperm.xlu0 %2321, %v2319
    %v2323 = vpop.permute.xlu0 %2322
    %v2325 = vadd.f32 %v2225, %v2323
    %v2326 = vrot.slane %v2325, 4
    %v2327 = vmax.f32 %v2325, %v2326
    %v2328 = vrot.slane %v2327, 2
    %v2329 = vmax.f32 %v2327, %v2328
    %v2330 = vrot.slane %v2329, 1
    %v2331 = vmax.f32 %v2329, %v2330
    %vm2332 = vcmp.eq.f32.partialorder %v2325, %v2331
    %v2333 = vsel %vm2332, %v2226, 8.0
    %v2334 = vrot.slane %v2333, 4
    %v2335 = vmin.f32 %v2333, %v2334
    %v2336 = vrot.slane %v2335, 2
    %v2337 = vmin.f32 %v2335, %v2336
    %v2338 = vrot.slane %v2337, 1
    %v2339 = vmin.f32 %v2337, %v2338
    %v2340 = vcvt.f32.s32.to.zero.pseudo %v2339
    %2341 = vst [vmem:[#allocation14 + $0x3] sm:$0x1] %v2340
    %v2342 = vlaneseq
    %v2343 = vshrl.u32 %v2342, 7
    %v2344 = vsub.s32 2, %v2343
    %v2345 = vrot.slane %v2318, %v2344
    %v2346 = vadd.f32 %v2224, %v2345
    %2347 = vmax.xlane.f32.xlu0 %v2346
    %v2348 = vpop.xlane.xlu0 %2347
    %v2349 = vadd.f32 %v2331, %v2143
    %v2350 = vadd.f32 %v2348, %v2221
    %2352 = vset.pattern.permute.xlu0 3
    %2353 = vperm.xlu0 %2352, %v2350
    %v2354 = vpop.permute.xlu0 %2353
    %v2356 = vadd.f32 %v2225, %v2354
    %v2357 = vrot.slane %v2356, 4
    %v2358 = vmax.f32 %v2356, %v2357
    %v2359 = vrot.slane %v2358, 2
    %v2360 = vmax.f32 %v2358, %v2359
    %v2361 = vrot.slane %v2360, 1
    %v2362 = vmax.f32 %v2360, %v2361
    %vm2363 = vcmp.eq.f32.partialorder %v2356, %v2362
    %v2364 = vsel %vm2363, %v2226, 8.0
    %v2365 = vrot.slane %v2364, 4
    %v2366 = vmin.f32 %v2364, %v2365
    %v2367 = vrot.slane %v2366, 2
    %v2368 = vmin.f32 %v2366, %v2367
    %v2369 = vrot.slane %v2368, 1
    %v2370 = vmin.f32 %v2368, %v2369
    %v2371 = vcvt.f32.s32.to.zero.pseudo %v2370
    %2372 = vst [vmem:[#allocation14 + $0x4] sm:$0x1] %v2371
    %v2373 = vlaneseq
    %v2374 = vshrl.u32 %v2373, 7
    %v2375 = vsub.s32 3, %v2374
    %v2376 = vrot.slane %v2349, %v2375
    %v2377 = vadd.f32 %v2224, %v2376
    %2378 = vmax.xlane.f32.xlu0 %v2377
    %v2379 = vpop.xlane.xlu0 %2378
    %v2380 = vadd.f32 %v2362, %v2143
    %v2381 = vadd.f32 %v2379, %v2221
    %2383 = vset.pattern.permute.xlu0 4
    %2384 = vperm.xlu0 %2383, %v2381
    %v2385 = vpop.permute.xlu0 %2384
    %v2387 = vadd.f32 %v2225, %v2385
    %v2388 = vrot.slane %v2387, 4
    %v2389 = vmax.f32 %v2387, %v2388
    %v2390 = vrot.slane %v2389, 2
    %v2391 = vmax.f32 %v2389, %v2390
    %v2392 = vrot.slane %v2391, 1
    %v2393 = vmax.f32 %v2391, %v2392
    %vm2394 = vcmp.eq.f32.partialorder %v2387, %v2393
    %v2395 = vsel %vm2394, %v2226, 8.0
    %v2396 = vrot.slane %v2395, 4
    %v2397 = vmin.f32 %v2395, %v2396
    %v2398 = vrot.slane %v2397, 2
    %v2399 = vmin.f32 %v2397, %v2398
    %v2400 = vrot.slane %v2399, 1
    %v2401 = vmin.f32 %v2399, %v2400
    %v2402 = vcvt.f32.s32.to.zero.pseudo %v2401
    %2403 = vst [vmem:[#allocation14 + $0x5] sm:$0x1] %v2402
    %v2404 = vlaneseq
    %v2405 = vshrl.u32 %v2404, 7
    %v2406 = vsub.s32 4, %v2405
    %v2407 = vrot.slane %v2380, %v2406
    %v2408 = vadd.f32 %v2224, %v2407
    %2409 = vmax.xlane.f32.xlu0 %v2408
    %v2410 = vpop.xlane.xlu0 %2409
    %v2411 = vadd.f32 %v2393, %v2143
    %v2412 = vadd.f32 %v2410, %v2221
    %2414 = vset.pattern.permute.xlu0 5
    %2415 = vperm.xlu0 %2414, %v2412
    %v2416 = vpop.permute.xlu0 %2415
    %v2418 = vadd.f32 %v2225, %v2416
    %v2419 = vrot.slane %v2418, 4
    %v2420 = vmax.f32 %v2418, %v2419
    %v2421 = vrot.slane %v2420, 2
    %v2422 = vmax.f32 %v2420, %v2421
    %v2423 = vrot.slane %v2422, 1
    %v2424 = vmax.f32 %v2422, %v2423
    %vm2425 = vcmp.eq.f32.partialorder %v2418, %v2424
    %v2426 = vsel %vm2425, %v2226, 8.0
    %v2427 = vrot.slane %v2426, 4
    %v2428 = vmin.f32 %v2426, %v2427
    %v2429 = vrot.slane %v2428, 2
    %v2430 = vmin.f32 %v2428, %v2429
    %v2431 = vrot.slane %v2430, 1
    %v2432 = vmin.f32 %v2430, %v2431
    %v2433 = vcvt.f32.s32.to.zero.pseudo %v2432
    %2434 = vst [vmem:[#allocation14 + $0x6] sm:$0x1] %v2433
    %v2435 = vlaneseq
    %v2436 = vshrl.u32 %v2435, 7
    %v2437 = vsub.s32 5, %v2436
    %v2438 = vrot.slane %v2411, %v2437
    %v2439 = vadd.f32 %v2224, %v2438
    %2440 = vmax.xlane.f32.xlu0 %v2439
    %v2441 = vpop.xlane.xlu0 %2440
    %v2442 = vadd.f32 %v2441, %v2221
    %2444 = vset.pattern.permute.xlu0 6
    %2445 = vperm.xlu0 %2444, %v2442
    %v2446 = vpop.permute.xlu0 %2445
    %v2448 = vadd.f32 %v2225, %v2446
    %v2449 = vrot.slane %v2448, 4
    %v2450 = vmax.f32 %v2448, %v2449
    %v2451 = vrot.slane %v2450, 2
    %v2452 = vmax.f32 %v2450, %v2451
    %v2453 = vrot.slane %v2452, 1
    %v2454 = vmax.f32 %v2452, %v2453
    %vm2455 = vcmp.eq.f32.partialorder %v2448, %v2454
    %v2456 = vsel %vm2455, %v2226, 8.0
    %v2457 = vrot.slane %v2456, 4
    %v2458 = vmin.f32 %v2456, %v2457
    %v2459 = vrot.slane %v2458, 2
    %v2460 = vmin.f32 %v2458, %v2459
    %v2461 = vrot.slane %v2460, 1
    %v2462 = vmin.f32 %v2460, %v2461
    %v2463 = vcvt.f32.s32.to.zero.pseudo %v2462
    %2464 = vst [vmem:[#allocation14 + $0x7] sm:$0x1] %v2463
    %v2465 = vadd.f32 %v2454, %v2143
    %v2467 = vrot.slane %v2224, 5
    %v2469 = vadd.f32 %v2465, %v2467
    %vm2470 = vcmask 1047559
    %v2471 = vsel %vm2470, %v2469, -inf
    %2472 = vmax.xlane.f32.xlu0 %v2471
    %v2473 = vpop.xlane.xlu0 %2472
    %vm2474 = vcmp.eq.f32.partialorder %v2469, %v2473
    %v2475 = vsel %vm2474, %v2227, 128.0
    %v2476 = vsel %vm2470, %v2475, inf
    %2477 = vmin.xlane.f32.xlu0 %v2476
    %v2478 = vpop.xlane.xlu0 %2477
    %v2479 = vcvt.f32.s32.to.zero.pseudo %v2478
    %vm2480 = vcmask 7175
    %2481 = vst.msk [vmem:[#allocation16 - $0x7] sm:$0x80] %vm2480, %v2479
    // Predicated region
    $region62: #{tpu_custom_call.1} parent=1 // pred_check
      _
    $region63: #{tpu_custom_call.1} parent=1 // pred_check_branch
      %2483 = sbr.rel (0) target = $region65
    $region64: #{tpu_custom_call.1} parent=1 // pred_region
      %s2485 = ssub.s32 128, 128
      %2486 = vsyncadd [#allocation6], %s2485
      %s2488 = sshll.u32 [#allocation13], 4
      %s2489 = int_to_ptr.vmem [resolvable:$true] %s2488
      %2491 = dma.vmem_to_hbm [thread:$0]  %s2489, 128, %s10, [#allocation6]
    $region65: #{tpu_custom_call.1} parent=1 // pred_fallthru
      _
    // Predicated region
    $region66: #{tpu_custom_call.1} parent=1 // pred_check
      _
    $region67: #{tpu_custom_call.1} parent=1 // pred_check_branch
      %2493 = sbr.rel (0) target = $region69
    $region68: #{tpu_custom_call.1} parent=1 // pred_region
      %s2495 = ssub.s32 128, 128
      %2496 = vsyncadd [#allocation15], %s2495
      %s2498 = sshll.u32 [#allocation14], 4
      %s2499 = int_to_ptr.vmem [resolvable:$true] %s2498
      %2501 = dma.vmem_to_hbm [thread:$0]  %s2499, 128, %s11, [#allocation15]
    $region69: #{tpu_custom_call.1} parent=1 // pred_fallthru
      _
    // Predicated region
    $region70: #{tpu_custom_call.1} parent=1 // pred_check
      _
    $region71: #{tpu_custom_call.1} parent=1 // pred_check_branch
      %2503 = sbr.rel (0) target = $region73
    $region72: #{tpu_custom_call.1} parent=1 // pred_region
      %s2505 = ssub.s32 16, 16
      %2506 = vsyncadd [#allocation15], %s2505
      %s2508 = sshll.u32 [#allocation16], 4
      %s2509 = int_to_ptr.vmem [resolvable:$true] %s2508
      %2511 = dma.vmem_to_hbm [thread:$0]  %s2509, 16, %s12, [#allocation15]
    $region73: #{tpu_custom_call.1} parent=1 // pred_fallthru
      _
    // Predicated region
    $region74: #{tpu_custom_call.1} parent=1 // pred_check
      _
    $region75: #{tpu_custom_call.1} parent=1 // pred_check_branch
      %2513 = sbr.rel (0) target = $region77
    $region76: #{tpu_custom_call.1} parent=1 // pred_region
      %2514 = dma.done [#allocation6], 128
    $region77: #{tpu_custom_call.1} parent=1 // pred_fallthru
      _
    // Predicated region
    $region78: #{tpu_custom_call.1} parent=1 // pred_check
      _
    $region79: #{tpu_custom_call.1} parent=1 // pred_check_branch
      %2516 = sbr.rel (0) target = $region81
    $region80: #{tpu_custom_call.1} parent=1 // pred_region
      %2517 = dma.done [#allocation15], 128
    $region81: #{tpu_custom_call.1} parent=1 // pred_fallthru
      _
    // Predicated region
    $region82: #{tpu_custom_call.1} parent=1 // pred_check
      _
    $region83: #{tpu_custom_call.1} parent=1 // pred_check_branch
      %2519 = sbr.rel (0) target = $region85
    $region84: #{tpu_custom_call.1} parent=1 // pred_region
      %2520 = dma.done [#allocation15], 16
    $region85: #{tpu_custom_call.1} parent=1 // pred_fallthru
      _
    %2521 = vsyncpa [#allocation5], 1
    %2522 = vsyncpa [#allocation8], 1
    %2523 = vsyncpa [#allocation11], 1
    %2524 = vsyncpa [#allocation6], 1
    %2525 = vsyncpa [#allocation15], 1

</llo_original>
